<compile_context>
chip_gen: v7x
topology: tpu7x:2x2x1
jax: 0.10.0
libtpu: 0.0.40
codegen_flags: <defaults>
</compile_context>

<pallas_src>
import numpy as np
import jax
import jax.numpy as jnp
from jax.experimental import pallas as pl
from jax.experimental.pallas import tpu as pltpu


# Static tap / pooling-phase / sub-parity tables.
_TAPS = [(dy, dx) for dy in range(3) for dx in range(3)]
_PHASES = [(py, px) for py in range(2) for px in range(2)]
_PARITIES = [(qy, qx) for qy in range(2) for qx in range(2)]

_PAD = 8          # zero padding on each side of a 49-lane (7x7 raster) plane
_PLANE_W = _PAD + 49 + _PAD + 7   # 72: padded plane width (rounded up)


# ----------------------------- Pallas kernel --------------------------------

def _fused_cnn_kernel(x_ref, mk_ref, w1_ref, b1_ref, w2_ref, b2_ref,
                      wf1_ref, bf1_ref, wf2_ref, bf2_ref, out_ref,
                      xpad, a1pad, p1, p2, flat):
    """Full CNN forward for one image.

    x_ref : (1, 16, 49) bf16   input split into 16 planes X[4i+ry, 4j+rx]
    mk    : (2, 49)     f32    row0: zero where k%7==0, row1: zero where k%7==6
    w1    : (16, 9)     bf16   conv1 weights [co, dy*3+dx]
    w2    : (32, 144)   bf16   conv2 weights [co, (dy*3+dx)*16+ci]
    wf1   : (1568, 32)  bf16   fc1 weights (in, out), in = c*49 + y*7 + x
    wf2   : (32, 10)    f32    fc2 weights (in, out)
    out   : (1, 1, 10)  f32    logits
    """
    mask_l = mk_ref[0:1, :]          # (1, 49)
    mask_r = mk_ref[1:2, :]          # (1, 49)

    # ---- stage 0: zero-padded input phase planes ---------------------------
    xpad[...] = jnp.zeros(xpad.shape, xpad.dtype)
    xpad[:, _PAD:_PAD + 49] = x_ref[0].astype(jnp.float32)          # (16, 49)

    # ---- conv1 (1->16) + bias + ReLU + 2x2 maxpool: 28x28 -> 14x14 ---------
    # Phase-separated patches: p1[t, ph*196 + q*49 + k] = X[2*y1+py+dy-1,
    # 2*x1+px+dx-1] with (y1, x1) = (2*(k//7)+qy, 2*(k%7)+qx).
    for t, (dy, dx) in enumerate(_TAPS):
        for ph, (py, px) in enumerate(_PHASES):
            for q, (qy, qx) in enumerate(_PARITIES):
                u = 2 * qy + py + dy - 1
                v = 2 * qx + px + dx - 1
                su, ru = u // 4, u % 4
                sv, rv = v // 4, v % 4
                src = ru * 4 + rv                  # source input plane
                sh = su * 7 + sv                   # lane shift in the plane
                seg = xpad[src:src + 1, _PAD + sh:_PAD + sh + 49]   # (1, 49)
                if sv == -1:
                    seg = seg * mask_l
                elif sv == 1:
                    seg = seg * mask_r
                col = ph * 196 + q * 49
                p1[t:t + 1, col:col + 49] = seg

    # ONE MXU matmul for conv1 over all 4 pooling phases.
    z1 = jnp.dot(w1_ref[...], p1[...].astype(jnp.bfloat16),
                 preferred_element_type=jnp.float32)                # (16, 784)
    a1 = jnp.maximum(jnp.maximum(z1[:, 0:196], z1[:, 196:392]),
                     jnp.maximum(z1[:, 392:588], z1[:, 588:784]))
    a1 = jnp.maximum(a1 + b1_ref[...], 0.0)                         # (16, 196)
    # a1 lanes: [parity q (y1%2,x1%2)] x [7x7 raster of (y1//2, x1//2)]

    # ---- conv2 (16->32) + bias + ReLU + 2x2 maxpool: 14x14 -> 7x7 ----------
    a1pad[...] = jnp.zeros(a1pad.shape, a1pad.dtype)
    for q in range(4):
        a1pad[q * 16:(q + 1) * 16, _PAD:_PAD + 49] = a1[:, q * 49:(q + 1) * 49]

    for t, (dy, dx) in enumerate(_TAPS):
        for ph, (py, px) in enumerate(_PHASES):
            vy = py + dy - 1
            vx = px + dx - 1
            sy, ry = vy // 2, vy % 2
            sx, rx = vx // 2, vx % 2
            src = ry * 2 + rx                      # source a1 parity plane
            sh = sy * 7 + sx
            blk = a1pad[src * 16:(src + 1) * 16,
                        _PAD + sh:_PAD + sh + 49]                   # (16, 49)
            if sx == -1:
                blk = blk * mask_l
            elif sx == 1:
                blk = blk * mask_r
            p2[t * 16:(t + 1) * 16, ph * 49:(ph + 1) * 49] = blk

    z2 = jnp.dot(w2_ref[...], p2[...].astype(jnp.bfloat16),
                 preferred_element_type=jnp.float32)                # (32, 196)
    a2 = jnp.maximum(jnp.maximum(z2[:, 0:49], z2[:, 49:98]),
                     jnp.maximum(z2[:, 98:147], z2[:, 147:196]))
    a2 = jnp.maximum(a2 + b2_ref[...], 0.0)                         # (32, 49)
    # a2: rows = channels, lanes = y*7+x  ==  PyTorch NCHW flatten order.

    # ---- flatten + fc1 + ReLU + fc2 ----------------------------------------
    flat[...] = jnp.zeros(flat.shape, flat.dtype)
    for c in range(32):
        flat[0:1, c * 49:(c + 1) * 49] = a2[c:c + 1, :]
    h = jnp.dot(flat[...].astype(jnp.bfloat16), wf1_ref[...],
                preferred_element_type=jnp.float32) + bf1_ref[...]  # (8, 32)
    h = jnp.maximum(h, 0.0)
    logits = jnp.dot(h, wf2_ref[...],
                     preferred_element_type=jnp.float32) + bf2_ref[...]
    out_ref[0] = logits[0:1, :].astype(out_ref.dtype)               # (1, 10)


# ------------------------------ JAX wrapper ----------------------------------

def cnn_forward(x_nchw, params):
    """Pallas implementation of CNNModel.forward. x_nchw: (N, 1, 28, 28)."""
    N = x_nchw.shape[0]

    # Split input pixels into 16 mod-4 phase planes of 7x7 (byte-neutral
    # permutation): xplanes[n, ry*4+rx, ii*7+jj] = x[n, 0, 4*ii+ry, 4*jj+rx].
    xr = x_nchw.reshape(N, 28, 28)
    xplanes = (xr.reshape(N, 7, 4, 7, 4)
                 .transpose(0, 2, 4, 1, 3)
                 .reshape(N, 16, 49)
                 .astype(jnp.bfloat16))

    # Column-wrap masks (host constants).
    mk = np.ones((2, 49), np.float32)
    k = np.arange(49)
    mk[0, k % 7 == 0] = 0.0
    mk[1, k % 7 == 6] = 0.0
    mk = jnp.asarray(mk)

    # Weight repacking (trace-time only).
    w1m = params['conv1_w'].reshape(16, 9).astype(jnp.bfloat16)
    b1 = params['conv1_b'].reshape(16, 1)
    w2m = (jnp.transpose(params['conv2_w'], (0, 2, 3, 1))
              .reshape(32, 144).astype(jnp.bfloat16))
    b2 = params['conv2_b'].reshape(32, 1)
    wf1 = params['fc1_w'].T.astype(jnp.bfloat16)      # (1568, 32)
    bf1 = params['fc1_b'].reshape(1, 32)
    wf2 = params['fc2_w'].T                           # (32, 10), f32
    bf2 = params['fc2_b'].reshape(1, 10)

    const = lambda i: (0, 0)
    out = pl.pallas_call(
        _fused_cnn_kernel,
        out_shape=jax.ShapeDtypeStruct((N, 1, 10), jnp.float32),
        grid_spec=pltpu.PrefetchScalarGridSpec(
            num_scalar_prefetch=0,
            grid=(N,),
            in_specs=[
                pl.BlockSpec((1, 16, 49), lambda i: (i, 0, 0)),   # image
                pl.BlockSpec((2, 49), const),                     # masks
                pl.BlockSpec((16, 9), const),                     # conv1 w
                pl.BlockSpec((16, 1), const),                     # conv1 b
                pl.BlockSpec((32, 144), const),                   # conv2 w
                pl.BlockSpec((32, 1), const),                     # conv2 b
                pl.BlockSpec((1568, 32), const),                  # fc1 w
                pl.BlockSpec((1, 32), const),                     # fc1 b
                pl.BlockSpec((32, 10), const),                    # fc2 w
                pl.BlockSpec((1, 10), const),                     # fc2 b
            ],
            out_specs=pl.BlockSpec((1, 1, 10), lambda i: (i, 0, 0)),
            scratch_shapes=[
                pltpu.VMEM((16, _PLANE_W), jnp.float32),   # padded input planes
                pltpu.VMEM((64, _PLANE_W), jnp.float32),   # padded conv1 planes
                pltpu.VMEM((9, 784), jnp.float32),         # conv1 patches
                pltpu.VMEM((144, 196), jnp.float32),       # conv2 patches
                pltpu.VMEM((8, 1568), jnp.float32),        # fc flatten row
            ],
        ),
        compiler_params=pltpu.CompilerParams(
            dimension_semantics=("parallel",)),
    )(xplanes, mk, w1m, b1, w2m, b2, wf1, bf1, wf2, bf2)
    return out.reshape(N, 10)


# ------------------------ reference (plain JAX) ------------------------------

def cnn_reference(x, params):
    def conv(a, w, b):
        y = jax.lax.conv_general_dilated(
            a, w, (1, 1), ((1, 1), (1, 1)),
            dimension_numbers=('NCHW', 'OIHW', 'NCHW'))
        return y + b[None, :, None, None]

    def pool(a):
        return jax.lax.reduce_window(a, -jnp.inf, jax.lax.max,
                                     (1, 1, 2, 2), (1, 1, 2, 2), 'VALID')

    a = pool(jnp.maximum(conv(x, params['conv1_w'], params['conv1_b']), 0.0))
    a = pool(jnp.maximum(conv(a, params['conv2_w'], params['conv2_b']), 0.0))
    a = a.reshape(a.shape[0], -1)
    a = jnp.maximum(a @ params['fc1_w'].T + params['fc1_b'], 0.0)
    return a @ params['fc2_w'].T + params['fc2_b']


# --------------------------------- main --------------------------------------

def init_params(key):
    """Deterministic PyTorch-default-style init (U(-1/sqrt(fan_in), +))."""
    ks = jax.random.split(key, 8)

    def u(k, shape, fan_in):
        bound = 1.0 / np.sqrt(fan_in)
        return jax.random.uniform(k, shape, jnp.float32, -bound, bound)

    return {
        'conv1_w': u(ks[0], (16, 1, 3, 3), 1 * 9),
        'conv1_b': u(ks[1], (16,), 1 * 9),
        'conv2_w': u(ks[2], (32, 16, 3, 3), 16 * 9),
        'conv2_b': u(ks[3], (32,), 16 * 9),
        'fc1_w': u(ks[4], (32, 32 * 7 * 7), 32 * 7 * 7),
        'fc1_b': u(ks[5], (32,), 32 * 7 * 7),
        'fc2_w': u(ks[6], (10, 32), 32),
        'fc2_b': u(ks[7], (10,), 32),
    }


if __name__ == "__main__":
    key = jax.random.PRNGKey(0)
    k_param, k_x = jax.random.split(key)
    params = init_params(k_param)
    # Spatial must be 28x28 so that fc1's 32*7*7 flatten holds.
    x = jax.random.normal(k_x, (2, 1, 28, 28), dtype=jnp.float32)

    out = jax.jit(cnn_forward)(x, params)
    out = jax.block_until_ready(out)

    ref = jax.block_until_ready(cnn_reference(x, params))
    assert out.shape == (2, 10), out.shape
    # bf16 MXU inputs (f32 accumulation) -> slightly loosened tolerance.
    np.testing.assert_allclose(np.asarray(out), np.asarray(ref),
                               rtol=2e-2, atol=2e-2)
    print("KERNEL_OK")
</pallas_src>

<mosaic_0001>
module attributes {stable_mosaic.version = 11 : i64} {
  func.func @_fused_cnn_kernel(%arg0: i32, %arg1: memref<1x16x49xbf16, #tpu.memory_space<vmem>>, %arg2: memref<2x49xf32, #tpu.memory_space<vmem>>, %arg3: memref<16x9xbf16, #tpu.memory_space<vmem>>, %arg4: memref<16x1xf32, #tpu.memory_space<vmem>>, %arg5: memref<32x144xbf16, #tpu.memory_space<vmem>>, %arg6: memref<32x1xf32, #tpu.memory_space<vmem>>, %arg7: memref<1568x32xbf16, #tpu.memory_space<vmem>>, %arg8: memref<1x32xf32, #tpu.memory_space<vmem>>, %arg9: memref<32x10xf32, #tpu.memory_space<vmem>>, %arg10: memref<1x10xf32, #tpu.memory_space<vmem>>, %arg11: memref<1x1x10xf32, #tpu.memory_space<vmem>>, %arg12: memref<16x72xf32, #tpu.memory_space<vmem>>, %arg13: memref<64x72xf32, #tpu.memory_space<vmem>>, %arg14: memref<9x784xf32, #tpu.memory_space<vmem>>, %arg15: memref<144x196xf32, #tpu.memory_space<vmem>>, %arg16: memref<8x1568xf32, #tpu.memory_space<vmem>>) attributes {dimension_semantics = [#tpu.dimension_semantics<parallel>], iteration_bounds = array<i64: 2>, scalar_prefetch = 0 : i64, scratch_operands = 5 : i64, tpu.core_type = #tpu.core_type<tc>, window_params = [{transform_indices = @transform_0, window_bounds = array<i64: 1, 16, 49>}, {pipeline_mode = #tpu.pipeline_mode<synchronous>, transform_indices = @transform_1, window_bounds = array<i64: 2, 49>}, {pipeline_mode = #tpu.pipeline_mode<synchronous>, transform_indices = @transform_2, window_bounds = array<i64: 16, 9>}, {pipeline_mode = #tpu.pipeline_mode<synchronous>, transform_indices = @transform_3, window_bounds = array<i64: 16, 1>}, {pipeline_mode = #tpu.pipeline_mode<synchronous>, transform_indices = @transform_4, window_bounds = array<i64: 32, 144>}, {pipeline_mode = #tpu.pipeline_mode<synchronous>, transform_indices = @transform_5, window_bounds = array<i64: 32, 1>}, {pipeline_mode = #tpu.pipeline_mode<synchronous>, transform_indices = @transform_6, window_bounds = array<i64: 1568, 32>}, {pipeline_mode = #tpu.pipeline_mode<synchronous>, transform_indices = @transform_7, window_bounds = array<i64: 1, 32>}, {pipeline_mode = #tpu.pipeline_mode<synchronous>, transform_indices = @transform_8, window_bounds = array<i64: 32, 10>}, {pipeline_mode = #tpu.pipeline_mode<synchronous>, transform_indices = @transform_9, window_bounds = array<i64: 1, 10>}, {transform_indices = @transform_10, window_bounds = array<i64: 1, 1, 10>}]} {
    %c0 = arith.constant 0 : index
    %c0_0 = arith.constant 0 : index
    %0 = vector.load %arg2[%c0, %c0_0] : memref<2x49xf32, #tpu.memory_space<vmem>>, vector<1x49xf32>
    %c1 = arith.constant 1 : index
    %c0_1 = arith.constant 0 : index
    %1 = vector.load %arg2[%c1, %c0_1] : memref<2x49xf32, #tpu.memory_space<vmem>>, vector<1x49xf32>
    %cst = arith.constant 0.000000e+00 : f32
    %2 = vector.broadcast %cst : f32 to vector<16x72xf32>
    %c0_2 = arith.constant 0 : index
    %c0_3 = arith.constant 0 : index
    %3 = vector.load %arg12[%c0_2, %c0_3] : memref<16x72xf32, #tpu.memory_space<vmem>>, vector<16x72xf32>
    tpu.vector_store %arg12[%c0_2, %c0_3], %2 {strides = array<i32>} : memref<16x72xf32, #tpu.memory_space<vmem>>, vector<16x72xf32>,
    %c0_4 = arith.constant 0 : index
    %c0_5 = arith.constant 0 : index
    %c0_6 = arith.constant 0 : index
    %4 = vector.load %arg1[%c0_4, %c0_5, %c0_6] : memref<1x16x49xbf16, #tpu.memory_space<vmem>>, vector<1x16x49xbf16>
    %5 = vector.shape_cast %4 : vector<1x16x49xbf16> to vector<16x49xbf16>
    %6 = arith.extf %5 : vector<16x49xbf16> to vector<16x49xf32>
    %c0_7 = arith.constant 0 : index
    %c8 = arith.constant 8 : index
    %7 = vector.load %arg12[%c0_7, %c8] : memref<16x72xf32, #tpu.memory_space<vmem>>, vector<16x49xf32>
    tpu.vector_store %arg12[%c0_7, %c8], %6 {strides = array<i32>} : memref<16x72xf32, #tpu.memory_space<vmem>>, vector<16x49xf32>,
    %c15 = arith.constant 15 : index
    %c0_8 = arith.constant 0 : index
    %8 = vector.load %arg12[%c15, %c0_8] : memref<16x72xf32, #tpu.memory_space<vmem>>, vector<1x49xf32>
    %9 = arith.mulf %8, %0 : vector<1x49xf32>
    %c0_9 = arith.constant 0 : index
    %c0_10 = arith.constant 0 : index
    %10 = vector.load %arg14[%c0_9, %c0_10] : memref<9x784xf32, #tpu.memory_space<vmem>>, vector<1x49xf32>
    tpu.vector_store %arg14[%c0_9, %c0_10], %9 {strides = array<i32>} : memref<9x784xf32, #tpu.memory_space<vmem>>, vector<1x49xf32>,
    %c13 = arith.constant 13 : index
    %c1_11 = arith.constant 1 : index
    %11 = vector.load %arg12[%c13, %c1_11] : memref<16x72xf32, #tpu.memory_space<vmem>>, vector<1x49xf32>
    %c0_12 = arith.constant 0 : index
    %c49 = arith.constant 49 : index
    %12 = vector.load %arg14[%c0_12, %c49] : memref<9x784xf32, #tpu.memory_space<vmem>>, vector<1x49xf32>
    tpu.vector_store %arg14[%c0_12, %c49], %11 {strides = array<i32>} : memref<9x784xf32, #tpu.memory_space<vmem>>, vector<1x49xf32>,
    %c7 = arith.constant 7 : index
    %c7_13 = arith.constant 7 : index
    %13 = vector.load %arg12[%c7, %c7_13] : memref<16x72xf32, #tpu.memory_space<vmem>>, vector<1x49xf32>
    %14 = arith.mulf %13, %0 : vector<1x49xf32>
    %c0_14 = arith.constant 0 : index
    %c98 = arith.constant 98 : index
    %15 = vector.load %arg14[%c0_14, %c98] : memref<9x784xf32, #tpu.memory_space<vmem>>, vector<1x49xf32>
    tpu.vector_store %arg14[%c0_14, %c98], %14 {strides = array<i32>} : memref<9x784xf32, #tpu.memory_space<vmem>>, vector<1x49xf32>,
    %c5 = arith.constant 5 : index
    %c8_15 = arith.constant 8 : index
    %16 = vector.load %arg12[%c5, %c8_15] : memref<16x72xf32, #tpu.memory_space<vmem>>, vector<1x49xf32>
    %c0_16 = arith.constant 0 : index
    %c147 = arith.constant 147 : index
    %17 = vector.load %arg14[%c0_16, %c147] : memref<9x784xf32, #tpu.memory_space<vmem>>, vector<1x49xf32>
    tpu.vector_store %arg14[%c0_16, %c147], %16 {strides = array<i32>} : memref<9x784xf32, #tpu.memory_space<vmem>>, vector<1x49xf32>,
    %c12 = arith.constant 12 : index
    %c1_17 = arith.constant 1 : index
    %18 = vector.load %arg12[%c12, %c1_17] : memref<16x72xf32, #tpu.memory_space<vmem>>, vector<1x49xf32>
    %c0_18 = arith.constant 0 : index
    %c196 = arith.constant 196 : index
    %19 = vector.load %arg14[%c0_18, %c196] : memref<9x784xf32, #tpu.memory_space<vmem>>, vector<1x49xf32>
    tpu.vector_store %arg14[%c0_18, %c196], %18 {strides = array<i32>} : memref<9x784xf32, #tpu.memory_space<vmem>>, vector<1x49xf32>,
    %c14 = arith.constant 14 : index
    %c1_19 = arith.constant 1 : index
    %20 = vector.load %arg12[%c14, %c1_19] : memref<16x72xf32, #tpu.memory_space<vmem>>, vector<1x49xf32>
    %c0_20 = arith.constant 0 : index
    %c245 = arith.constant 245 : index
    %21 = vector.load %arg14[%c0_20, %c245] : memref<9x784xf32, #tpu.memory_space<vmem>>, vector<1x49xf32>
    tpu.vector_store %arg14[%c0_20, %c245], %20 {strides = array<i32>} : memref<9x784xf32, #tpu.memory_space<vmem>>, vector<1x49xf32>,
    %c4 = arith.constant 4 : index
    %c8_21 = arith.constant 8 : index
    %22 = vector.load %arg12[%c4, %c8_21] : memref<16x72xf32, #tpu.memory_space<vmem>>, vector<1x49xf32>
    %c0_22 = arith.constant 0 : index
    %c294 = arith.constant 294 : index
    %23 = vector.load %arg14[%c0_22, %c294] : memref<9x784xf32, #tpu.memory_space<vmem>>, vector<1x49xf32>
    tpu.vector_store %arg14[%c0_22, %c294], %22 {strides = array<i32>} : memref<9x784xf32, #tpu.memory_space<vmem>>, vector<1x49xf32>,
    %c6 = arith.constant 6 : index
    %c8_23 = arith.constant 8 : index
    %24 = vector.load %arg12[%c6, %c8_23] : memref<16x72xf32, #tpu.memory_space<vmem>>, vector<1x49xf32>
    %c0_24 = arith.constant 0 : index
    %c343 = arith.constant 343 : index
    %25 = vector.load %arg14[%c0_24, %c343] : memref<9x784xf32, #tpu.memory_space<vmem>>, vector<1x49xf32>
    tpu.vector_store %arg14[%c0_24, %c343], %24 {strides = array<i32>} : memref<9x784xf32, #tpu.memory_space<vmem>>, vector<1x49xf32>,
    %c3 = arith.constant 3 : index
    %c7_25 = arith.constant 7 : index
    %26 = vector.load %arg12[%c3, %c7_25] : memref<16x72xf32, #tpu.memory_space<vmem>>, vector<1x49xf32>
    %27 = arith.mulf %26, %0 : vector<1x49xf32>
    %c0_26 = arith.constant 0 : index
    %c392 = arith.constant 392 : index
    %28 = vector.load %arg14[%c0_26, %c392] : memref<9x784xf32, #tpu.memory_space<vmem>>, vector<1x49xf32>
    tpu.vector_store %arg14[%c0_26, %c392], %27 {strides = array<i32>} : memref<9x784xf32, #tpu.memory_space<vmem>>, vector<1x49xf32>,
    %c1_27 = arith.constant 1 : index
    %c8_28 = arith.constant 8 : index
    %29 = vector.load %arg12[%c1_27, %c8_28] : memref<16x72xf32, #tpu.memory_space<vmem>>, vector<1x49xf32>
    %c0_29 = arith.constant 0 : index
    %c441 = arith.constant 441 : index
    %30 = vector.load %arg14[%c0_29, %c441] : memref<9x784xf32, #tpu.memory_space<vmem>>, vector<1x49xf32>
    tpu.vector_store %arg14[%c0_29, %c441], %29 {strides = array<i32>} : memref<9x784xf32, #tpu.memory_space<vmem>>, vector<1x49xf32>,
    %c11 = arith.constant 11 : index
    %c7_30 = arith.constant 7 : index
    %31 = vector.load %arg12[%c11, %c7_30] : memref<16x72xf32, #tpu.memory_space<vmem>>, vector<1x49xf32>
    %32 = arith.mulf %31, %0 : vector<1x49xf32>
    %c0_31 = arith.constant 0 : index
    %c490 = arith.constant 490 : index
    %33 = vector.load %arg14[%c0_31, %c490] : memref<9x784xf32, #tpu.memory_space<vmem>>, vector<1x49xf32>
    tpu.vector_store %arg14[%c0_31, %c490], %32 {strides = array<i32>} : memref<9x784xf32, #tpu.memory_space<vmem>>, vector<1x49xf32>,
    %c9 = arith.constant 9 : index
    %c8_32 = arith.constant 8 : index
    %34 = vector.load %arg12[%c9, %c8_32] : memref<16x72xf32, #tpu.memory_space<vmem>>, vector<1x49xf32>
    %c0_33 = arith.constant 0 : index
    %c539 = arith.constant 539 : index
    %35 = vector.load %arg14[%c0_33, %c539] : memref<9x784xf32, #tpu.memory_space<vmem>>, vector<1x49xf32>
    tpu.vector_store %arg14[%c0_33, %c539], %34 {strides = array<i32>} : memref<9x784xf32, #tpu.memory_space<vmem>>, vector<1x49xf32>,
    %c0_34 = arith.constant 0 : index
    %c8_35 = arith.constant 8 : index
    %36 = vector.load %arg12[%c0_34, %c8_35] : memref<16x72xf32, #tpu.memory_space<vmem>>, vector<1x49xf32>
    %c0_36 = arith.constant 0 : index
    %c588 = arith.constant 588 : index
    %37 = vector.load %arg14[%c0_36, %c588] : memref<9x784xf32, #tpu.memory_space<vmem>>, vector<1x49xf32>
    tpu.vector_store %arg14[%c0_36, %c588], %36 {strides = array<i32>} : memref<9x784xf32, #tpu.memory_space<vmem>>, vector<1x49xf32>,
    %c2 = arith.constant 2 : index
    %c8_37 = arith.constant 8 : index
    %38 = vector.load %arg12[%c2, %c8_37] : memref<16x72xf32, #tpu.memory_space<vmem>>, vector<1x49xf32>
    %c0_38 = arith.constant 0 : index
    %c637 = arith.constant 637 : index
    %39 = vector.load %arg14[%c0_38, %c637] : memref<9x784xf32, #tpu.memory_space<vmem>>, vector<1x49xf32>
    tpu.vector_store %arg14[%c0_38, %c637], %38 {strides = array<i32>} : memref<9x784xf32, #tpu.memory_space<vmem>>, vector<1x49xf32>,
    %c8_39 = arith.constant 8 : index
    %c8_40 = arith.constant 8 : index
    %40 = vector.load %arg12[%c8_39, %c8_40] : memref<16x72xf32, #tpu.memory_space<vmem>>, vector<1x49xf32>
    %c0_41 = arith.constant 0 : index
    %c686 = arith.constant 686 : index
    %41 = vector.load %arg14[%c0_41, %c686] : memref<9x784xf32, #tpu.memory_space<vmem>>, vector<1x49xf32>
    tpu.vector_store %arg14[%c0_41, %c686], %40 {strides = array<i32>} : memref<9x784xf32, #tpu.memory_space<vmem>>, vector<1x49xf32>,
    %c10 = arith.constant 10 : index
    %c8_42 = arith.constant 8 : index
    %42 = vector.load %arg12[%c10, %c8_42] : memref<16x72xf32, #tpu.memory_space<vmem>>, vector<1x49xf32>
    %c0_43 = arith.constant 0 : index
    %c735 = arith.constant 735 : index
    %43 = vector.load %arg14[%c0_43, %c735] : memref<9x784xf32, #tpu.memory_space<vmem>>, vector<1x49xf32>
    tpu.vector_store %arg14[%c0_43, %c735], %42 {strides = array<i32>} : memref<9x784xf32, #tpu.memory_space<vmem>>, vector<1x49xf32>,
    %c12_44 = arith.constant 12 : index
    %c1_45 = arith.constant 1 : index
    %44 = vector.load %arg12[%c12_44, %c1_45] : memref<16x72xf32, #tpu.memory_space<vmem>>, vector<1x49xf32>
    %c1_46 = arith.constant 1 : index
    %c0_47 = arith.constant 0 : index
    %45 = vector.load %arg14[%c1_46, %c0_47] : memref<9x784xf32, #tpu.memory_space<vmem>>, vector<1x49xf32>
    tpu.vector_store %arg14[%c1_46, %c0_47], %44 {strides = array<i32>} : memref<9x784xf32, #tpu.memory_space<vmem>>, vector<1x49xf32>,
    %c14_48 = arith.constant 14 : index
    %c1_49 = arith.constant 1 : index
    %46 = vector.load %arg12[%c14_48, %c1_49] : memref<16x72xf32, #tpu.memory_space<vmem>>, vector<1x49xf32>
    %c1_50 = arith.constant 1 : index
    %c49_51 = arith.constant 49 : index
    %47 = vector.load %arg14[%c1_50, %c49_51] : memref<9x784xf32, #tpu.memory_space<vmem>>, vector<1x49xf32>
    tpu.vector_store %arg14[%c1_50, %c49_51], %46 {strides = array<i32>} : memref<9x784xf32, #tpu.memory_space<vmem>>, vector<1x49xf32>,
    %c4_52 = arith.constant 4 : index
    %c8_53 = arith.constant 8 : index
    %48 = vector.load %arg12[%c4_52, %c8_53] : memref<16x72xf32, #tpu.memory_space<vmem>>, vector<1x49xf32>
    %c1_54 = arith.constant 1 : index
    %c98_55 = arith.constant 98 : index
    %49 = vector.load %arg14[%c1_54, %c98_55] : memref<9x784xf32, #tpu.memory_space<vmem>>, vector<1x49xf32>
    tpu.vector_store %arg14[%c1_54, %c98_55], %48 {strides = array<i32>} : memref<9x784xf32, #tpu.memory_space<vmem>>, vector<1x49xf32>,
    %c6_56 = arith.constant 6 : index
    %c8_57 = arith.constant 8 : index
    %50 = vector.load %arg12[%c6_56, %c8_57] : memref<16x72xf32, #tpu.memory_space<vmem>>, vector<1x49xf32>
    %c1_58 = arith.constant 1 : index
    %c147_59 = arith.constant 147 : index
    %51 = vector.load %arg14[%c1_58, %c147_59] : memref<9x784xf32, #tpu.memory_space<vmem>>, vector<1x49xf32>
    tpu.vector_store %arg14[%c1_58, %c147_59], %50 {strides = array<i32>} : memref<9x784xf32, #tpu.memory_space<vmem>>, vector<1x49xf32>,
    %c13_60 = arith.constant 13 : index
    %c1_61 = arith.constant 1 : index
    %52 = vector.load %arg12[%c13_60, %c1_61] : memref<16x72xf32, #tpu.memory_space<vmem>>, vector<1x49xf32>
    %c1_62 = arith.constant 1 : index
    %c196_63 = arith.constant 196 : index
    %53 = vector.load %arg14[%c1_62, %c196_63] : memref<9x784xf32, #tpu.memory_space<vmem>>, vector<1x49xf32>
    tpu.vector_store %arg14[%c1_62, %c196_63], %52 {strides = array<i32>} : memref<9x784xf32, #tpu.memory_space<vmem>>, vector<1x49xf32>,
    %c15_64 = arith.constant 15 : index
    %c1_65 = arith.constant 1 : index
    %54 = vector.load %arg12[%c15_64, %c1_65] : memref<16x72xf32, #tpu.memory_space<vmem>>, vector<1x49xf32>
    %c1_66 = arith.constant 1 : index
    %c245_67 = arith.constant 245 : index
    %55 = vector.load %arg14[%c1_66, %c245_67] : memref<9x784xf32, #tpu.memory_space<vmem>>, vector<1x49xf32>
    tpu.vector_store %arg14[%c1_66, %c245_67], %54 {strides = array<i32>} : memref<9x784xf32, #tpu.memory_space<vmem>>, vector<1x49xf32>,
    %c5_68 = arith.constant 5 : index
    %c8_69 = arith.constant 8 : index
    %56 = vector.load %arg12[%c5_68, %c8_69] : memref<16x72xf32, #tpu.memory_space<vmem>>, vector<1x49xf32>
    %c1_70 = arith.constant 1 : index
    %c294_71 = arith.constant 294 : index
    %57 = vector.load %arg14[%c1_70, %c294_71] : memref<9x784xf32, #tpu.memory_space<vmem>>, vector<1x49xf32>
    tpu.vector_store %arg14[%c1_70, %c294_71], %56 {strides = array<i32>} : memref<9x784xf32, #tpu.memory_space<vmem>>, vector<1x49xf32>,
    %c7_72 = arith.constant 7 : index
    %c8_73 = arith.constant 8 : index
    %58 = vector.load %arg12[%c7_72, %c8_73] : memref<16x72xf32, #tpu.memory_space<vmem>>, vector<1x49xf32>
    %c1_74 = arith.constant 1 : index
    %c343_75 = arith.constant 343 : index
    %59 = vector.load %arg14[%c1_74, %c343_75] : memref<9x784xf32, #tpu.memory_space<vmem>>, vector<1x49xf32>
    tpu.vector_store %arg14[%c1_74, %c343_75], %58 {strides = array<i32>} : memref<9x784xf32, #tpu.memory_space<vmem>>, vector<1x49xf32>,
    %c0_76 = arith.constant 0 : index
    %c8_77 = arith.constant 8 : index
    %60 = vector.load %arg12[%c0_76, %c8_77] : memref<16x72xf32, #tpu.memory_space<vmem>>, vector<1x49xf32>
    %c1_78 = arith.constant 1 : index
    %c392_79 = arith.constant 392 : index
    %61 = vector.load %arg14[%c1_78, %c392_79] : memref<9x784xf32, #tpu.memory_space<vmem>>, vector<1x49xf32>
    tpu.vector_store %arg14[%c1_78, %c392_79], %60 {strides = array<i32>} : memref<9x784xf32, #tpu.memory_space<vmem>>, vector<1x49xf32>,
    %c2_80 = arith.constant 2 : index
    %c8_81 = arith.constant 8 : index
    %62 = vector.load %arg12[%c2_80, %c8_81] : memref<16x72xf32, #tpu.memory_space<vmem>>, vector<1x49xf32>
    %c1_82 = arith.constant 1 : index
    %c441_83 = arith.constant 441 : index
    %63 = vector.load %arg14[%c1_82, %c441_83] : memref<9x784xf32, #tpu.memory_space<vmem>>, vector<1x49xf32>
    tpu.vector_store %arg14[%c1_82, %c441_83], %62 {strides = array<i32>} : memref<9x784xf32, #tpu.memory_space<vmem>>, vector<1x49xf32>,
    %c8_84 = arith.constant 8 : index
    %c8_85 = arith.constant 8 : index
    %64 = vector.load %arg12[%c8_84, %c8_85] : memref<16x72xf32, #tpu.memory_space<vmem>>, vector<1x49xf32>
    %c1_86 = arith.constant 1 : index
    %c490_87 = arith.constant 490 : index
    %65 = vector.load %arg14[%c1_86, %c490_87] : memref<9x784xf32, #tpu.memory_space<vmem>>, vector<1x49xf32>
    tpu.vector_store %arg14[%c1_86, %c490_87], %64 {strides = array<i32>} : memref<9x784xf32, #tpu.memory_space<vmem>>, vector<1x49xf32>,
    %c10_88 = arith.constant 10 : index
    %c8_89 = arith.constant 8 : index
    %66 = vector.load %arg12[%c10_88, %c8_89] : memref<16x72xf32, #tpu.memory_space<vmem>>, vector<1x49xf32>
    %c1_90 = arith.constant 1 : index
    %c539_91 = arith.constant 539 : index
    %67 = vector.load %arg14[%c1_90, %c539_91] : memref<9x784xf32, #tpu.memory_space<vmem>>, vector<1x49xf32>
    tpu.vector_store %arg14[%c1_90, %c539_91], %66 {strides = array<i32>} : memref<9x784xf32, #tpu.memory_space<vmem>>, vector<1x49xf32>,
    %c1_92 = arith.constant 1 : index
    %c8_93 = arith.constant 8 : index
    %68 = vector.load %arg12[%c1_92, %c8_93] : memref<16x72xf32, #tpu.memory_space<vmem>>, vector<1x49xf32>
    %c1_94 = arith.constant 1 : index
    %c588_95 = arith.constant 588 : index
    %69 = vector.load %arg14[%c1_94, %c588_95] : memref<9x784xf32, #tpu.memory_space<vmem>>, vector<1x49xf32>
    tpu.vector_store %arg14[%c1_94, %c588_95], %68 {strides = array<i32>} : memref<9x784xf32, #tpu.memory_space<vmem>>, vector<1x49xf32>,
    %c3_96 = arith.constant 3 : index
    %c8_97 = arith.constant 8 : index
    %70 = vector.load %arg12[%c3_96, %c8_97] : memref<16x72xf32, #tpu.memory_space<vmem>>, vector<1x49xf32>
    %c1_98 = arith.constant 1 : index
    %c637_99 = arith.constant 637 : index
    %71 = vector.load %arg14[%c1_98, %c637_99] : memref<9x784xf32, #tpu.memory_space<vmem>>, vector<1x49xf32>
    tpu.vector_store %arg14[%c1_98, %c637_99], %70 {strides = array<i32>} : memref<9x784xf32, #tpu.memory_space<vmem>>, vector<1x49xf32>,
    %c9_100 = arith.constant 9 : index
    %c8_101 = arith.constant 8 : index
    %72 = vector.load %arg12[%c9_100, %c8_101] : memref<16x72xf32, #tpu.memory_space<vmem>>, vector<1x49xf32>
    %c1_102 = arith.constant 1 : index
    %c686_103 = arith.constant 686 : index
    %73 = vector.load %arg14[%c1_102, %c686_103] : memref<9x784xf32, #tpu.memory_space<vmem>>, vector<1x49xf32>
    tpu.vector_store %arg14[%c1_102, %c686_103], %72 {strides = array<i32>} : memref<9x784xf32, #tpu.memory_space<vmem>>, vector<1x49xf32>,
    %c11_104 = arith.constant 11 : index
    %c8_105 = arith.constant 8 : index
    %74 = vector.load %arg12[%c11_104, %c8_105] : memref<16x72xf32, #tpu.memory_space<vmem>>, vector<1x49xf32>
    %c1_106 = arith.constant 1 : index
    %c735_107 = arith.constant 735 : index
    %75 = vector.load %arg14[%c1_106, %c735_107] : memref<9x784xf32, #tpu.memory_space<vmem>>, vector<1x49xf32>
    tpu.vector_store %arg14[%c1_106, %c735_107], %74 {strides = array<i32>} : memref<9x784xf32, #tpu.memory_space<vmem>>, vector<1x49xf32>,
    %c13_108 = arith.constant 13 : index
    %c1_109 = arith.constant 1 : index
    %76 = vector.load %arg12[%c13_108, %c1_109] : memref<16x72xf32, #tpu.memory_space<vmem>>, vector<1x49xf32>
    %c2_110 = arith.constant 2 : index
    %c0_111 = arith.constant 0 : index
    %77 = vector.load %arg14[%c2_110, %c0_111] : memref<9x784xf32, #tpu.memory_space<vmem>>, vector<1x49xf32>
    tpu.vector_store %arg14[%c2_110, %c0_111], %76 {strides = array<i32>} : memref<9x784xf32, #tpu.memory_space<vmem>>, vector<1x49xf32>,
    %c15_112 = arith.constant 15 : index
    %c1_113 = arith.constant 1 : index
    %78 = vector.load %arg12[%c15_112, %c1_113] : memref<16x72xf32, #tpu.memory_space<vmem>>, vector<1x49xf32>
    %c2_114 = arith.constant 2 : index
    %c49_115 = arith.constant 49 : index
    %79 = vector.load %arg14[%c2_114, %c49_115] : memref<9x784xf32, #tpu.memory_space<vmem>>, vector<1x49xf32>
    tpu.vector_store %arg14[%c2_114, %c49_115], %78 {strides = array<i32>} : memref<9x784xf32, #tpu.memory_space<vmem>>, vector<1x49xf32>,
    %c5_116 = arith.constant 5 : index
    %c8_117 = arith.constant 8 : index
    %80 = vector.load %arg12[%c5_116, %c8_117] : memref<16x72xf32, #tpu.memory_space<vmem>>, vector<1x49xf32>
    %c2_118 = arith.constant 2 : index
    %c98_119 = arith.constant 98 : index
    %81 = vector.load %arg14[%c2_118, %c98_119] : memref<9x784xf32, #tpu.memory_space<vmem>>, vector<1x49xf32>
    tpu.vector_store %arg14[%c2_118, %c98_119], %80 {strides = array<i32>} : memref<9x784xf32, #tpu.memory_space<vmem>>, vector<1x49xf32>,
    %c7_120 = arith.constant 7 : index
    %c8_121 = arith.constant 8 : index
    %82 = vector.load %arg12[%c7_120, %c8_121] : memref<16x72xf32, #tpu.memory_space<vmem>>, vector<1x49xf32>
    %c2_122 = arith.constant 2 : index
    %c147_123 = arith.constant 147 : index
    %83 = vector.load %arg14[%c2_122, %c147_123] : memref<9x784xf32, #tpu.memory_space<vmem>>, vector<1x49xf32>
    tpu.vector_store %arg14[%c2_122, %c147_123], %82 {strides = array<i32>} : memref<9x784xf32, #tpu.memory_space<vmem>>, vector<1x49xf32>,
    %c14_124 = arith.constant 14 : index
    %c1_125 = arith.constant 1 : index
    %84 = vector.load %arg12[%c14_124, %c1_125] : memref<16x72xf32, #tpu.memory_space<vmem>>, vector<1x49xf32>
    %c2_126 = arith.constant 2 : index
    %c196_127 = arith.constant 196 : index
    %85 = vector.load %arg14[%c2_126, %c196_127] : memref<9x784xf32, #tpu.memory_space<vmem>>, vector<1x49xf32>
    tpu.vector_store %arg14[%c2_126, %c196_127], %84 {strides = array<i32>} : memref<9x784xf32, #tpu.memory_space<vmem>>, vector<1x49xf32>,
    %c12_128 = arith.constant 12 : index
    %c2_129 = arith.constant 2 : index
    %86 = vector.load %arg12[%c12_128, %c2_129] : memref<16x72xf32, #tpu.memory_space<vmem>>, vector<1x49xf32>
    %87 = arith.mulf %86, %1 : vector<1x49xf32>
    %c2_130 = arith.constant 2 : index
    %c245_131 = arith.constant 245 : index
    %88 = vector.load %arg14[%c2_130, %c245_131] : memref<9x784xf32, #tpu.memory_space<vmem>>, vector<1x49xf32>
    tpu.vector_store %arg14[%c2_130, %c245_131], %87 {strides = array<i32>} : memref<9x784xf32, #tpu.memory_space<vmem>>, vector<1x49xf32>,
    %c6_132 = arith.constant 6 : index
    %c8_133 = arith.constant 8 : index
    %89 = vector.load %arg12[%c6_132, %c8_133] : memref<16x72xf32, #tpu.memory_space<vmem>>, vector<1x49xf32>
    %c2_134 = arith.constant 2 : index
    %c294_135 = arith.constant 294 : index
    %90 = vector.load %arg14[%c2_134, %c294_135] : memref<9x784xf32, #tpu.memory_space<vmem>>, vector<1x49xf32>
    tpu.vector_store %arg14[%c2_134, %c294_135], %89 {strides = array<i32>} : memref<9x784xf32, #tpu.memory_space<vmem>>, vector<1x49xf32>,
    %c4_136 = arith.constant 4 : index
    %c9_137 = arith.constant 9 : index
    %91 = vector.load %arg12[%c4_136, %c9_137] : memref<16x72xf32, #tpu.memory_space<vmem>>, vector<1x49xf32>
    %92 = arith.mulf %91, %1 : vector<1x49xf32>
    %c2_138 = arith.constant 2 : index
    %c343_139 = arith.constant 343 : index
    %93 = vector.load %arg14[%c2_138, %c343_139] : memref<9x784xf32, #tpu.memory_space<vmem>>, vector<1x49xf32>
    tpu.vector_store %arg14[%c2_138, %c343_139], %92 {strides = array<i32>} : memref<9x784xf32, #tpu.memory_space<vmem>>, vector<1x49xf32>,
    %c1_140 = arith.constant 1 : index
    %c8_141 = arith.constant 8 : index
    %94 = vector.load %arg12[%c1_140, %c8_141] : memref<16x72xf32, #tpu.memory_space<vmem>>, vector<1x49xf32>
    %c2_142 = arith.constant 2 : index
    %c392_143 = arith.constant 392 : index
    %95 = vector.load %arg14[%c2_142, %c392_143] : memref<9x784xf32, #tpu.memory_space<vmem>>, vector<1x49xf32>
    tpu.vector_store %arg14[%c2_142, %c392_143], %94 {strides = array<i32>} : memref<9x784xf32, #tpu.memory_space<vmem>>, vector<1x49xf32>,
    %c3_144 = arith.constant 3 : index
    %c8_145 = arith.constant 8 : index
    %96 = vector.load %arg12[%c3_144, %c8_145] : memref<16x72xf32, #tpu.memory_space<vmem>>, vector<1x49xf32>
    %c2_146 = arith.constant 2 : index
    %c441_147 = arith.constant 441 : index
    %97 = vector.load %arg14[%c2_146, %c441_147] : memref<9x784xf32, #tpu.memory_space<vmem>>, vector<1x49xf32>
    tpu.vector_store %arg14[%c2_146, %c441_147], %96 {strides = array<i32>} : memref<9x784xf32, #tpu.memory_space<vmem>>, vector<1x49xf32>,
    %c9_148 = arith.constant 9 : index
    %c8_149 = arith.constant 8 : index
    %98 = vector.load %arg12[%c9_148, %c8_149] : memref<16x72xf32, #tpu.memory_space<vmem>>, vector<1x49xf32>
    %c2_150 = arith.constant 2 : index
    %c490_151 = arith.constant 490 : index
    %99 = vector.load %arg14[%c2_150, %c490_151] : memref<9x784xf32, #tpu.memory_space<vmem>>, vector<1x49xf32>
    tpu.vector_store %arg14[%c2_150, %c490_151], %98 {strides = array<i32>} : memref<9x784xf32, #tpu.memory_space<vmem>>, vector<1x49xf32>,
    %c11_152 = arith.constant 11 : index
    %c8_153 = arith.constant 8 : index
    %100 = vector.load %arg12[%c11_152, %c8_153] : memref<16x72xf32, #tpu.memory_space<vmem>>, vector<1x49xf32>
    %c2_154 = arith.constant 2 : index
    %c539_155 = arith.constant 539 : index
    %101 = vector.load %arg14[%c2_154, %c539_155] : memref<9x784xf32, #tpu.memory_space<vmem>>, vector<1x49xf32>
    tpu.vector_store %arg14[%c2_154, %c539_155], %100 {strides = array<i32>} : memref<9x784xf32, #tpu.memory_space<vmem>>, vector<1x49xf32>,
    %c2_156 = arith.constant 2 : index
    %c8_157 = arith.constant 8 : index
    %102 = vector.load %arg12[%c2_156, %c8_157] : memref<16x72xf32, #tpu.memory_space<vmem>>, vector<1x49xf32>
    %c2_158 = arith.constant 2 : index
    %c588_159 = arith.constant 588 : index
    %103 = vector.load %arg14[%c2_158, %c588_159] : memref<9x784xf32, #tpu.memory_space<vmem>>, vector<1x49xf32>
    tpu.vector_store %arg14[%c2_158, %c588_159], %102 {strides = array<i32>} : memref<9x784xf32, #tpu.memory_space<vmem>>, vector<1x49xf32>,
    %c0_160 = arith.constant 0 : index
    %c9_161 = arith.constant 9 : index
    %104 = vector.load %arg12[%c0_160, %c9_161] : memref<16x72xf32, #tpu.memory_space<vmem>>, vector<1x49xf32>
    %105 = arith.mulf %104, %1 : vector<1x49xf32>
    %c2_162 = arith.constant 2 : index
    %c637_163 = arith.constant 637 : index
    %106 = vector.load %arg14[%c2_162, %c637_163] : memref<9x784xf32, #tpu.memory_space<vmem>>, vector<1x49xf32>
    tpu.vector_store %arg14[%c2_162, %c637_163], %105 {strides = array<i32>} : memref<9x784xf32, #tpu.memory_space<vmem>>, vector<1x49xf32>,
    %c10_164 = arith.constant 10 : index
    %c8_165 = arith.constant 8 : index
    %107 = vector.load %arg12[%c10_164, %c8_165] : memref<16x72xf32, #tpu.memory_space<vmem>>, vector<1x49xf32>
    %c2_166 = arith.constant 2 : index
    %c686_167 = arith.constant 686 : index
    %108 = vector.load %arg14[%c2_166, %c686_167] : memref<9x784xf32, #tpu.memory_space<vmem>>, vector<1x49xf32>
    tpu.vector_store %arg14[%c2_166, %c686_167], %107 {strides = array<i32>} : memref<9x784xf32, #tpu.memory_space<vmem>>, vector<1x49xf32>,
    %c8_168 = arith.constant 8 : index
    %c9_169 = arith.constant 9 : index
    %109 = vector.load %arg12[%c8_168, %c9_169] : memref<16x72xf32, #tpu.memory_space<vmem>>, vector<1x49xf32>
    %110 = arith.mulf %109, %1 : vector<1x49xf32>
    %c2_170 = arith.constant 2 : index
    %c735_171 = arith.constant 735 : index
    %111 = vector.load %arg14[%c2_170, %c735_171] : memref<9x784xf32, #tpu.memory_space<vmem>>, vector<1x49xf32>
    tpu.vector_store %arg14[%c2_170, %c735_171], %110 {strides = array<i32>} : memref<9x784xf32, #tpu.memory_space<vmem>>, vector<1x49xf32>,
    %c3_172 = arith.constant 3 : index
    %c7_173 = arith.constant 7 : index
    %112 = vector.load %arg12[%c3_172, %c7_173] : memref<16x72xf32, #tpu.memory_space<vmem>>, vector<1x49xf32>
    %113 = arith.mulf %112, %0 : vector<1x49xf32>
    %c3_174 = arith.constant 3 : index
    %c0_175 = arith.constant 0 : index
    %114 = vector.load %arg14[%c3_174, %c0_175] : memref<9x784xf32, #tpu.memory_space<vmem>>, vector<1x49xf32>
    tpu.vector_store %arg14[%c3_174, %c0_175], %113 {strides = array<i32>} : memref<9x784xf32, #tpu.memory_space<vmem>>, vector<1x49xf32>,
    %c1_176 = arith.constant 1 : index
    %c8_177 = arith.constant 8 : index
    %115 = vector.load %arg12[%c1_176, %c8_177] : memref<16x72xf32, #tpu.memory_space<vmem>>, vector<1x49xf32>
    %c3_178 = arith.constant 3 : index
    %c49_179 = arith.constant 49 : index
    %116 = vector.load %arg14[%c3_178, %c49_179] : memref<9x784xf32, #tpu.memory_space<vmem>>, vector<1x49xf32>
    tpu.vector_store %arg14[%c3_178, %c49_179], %115 {strides = array<i32>} : memref<9x784xf32, #tpu.memory_space<vmem>>, vector<1x49xf32>,
    %c11_180 = arith.constant 11 : index
    %c7_181 = arith.constant 7 : index
    %117 = vector.load %arg12[%c11_180, %c7_181] : memref<16x72xf32, #tpu.memory_space<vmem>>, vector<1x49xf32>
    %118 = arith.mulf %117, %0 : vector<1x49xf32>
    %c3_182 = arith.constant 3 : index
    %c98_183 = arith.constant 98 : index
    %119 = vector.load %arg14[%c3_182, %c98_183] : memref<9x784xf32, #tpu.memory_space<vmem>>, vector<1x49xf32>
    tpu.vector_store %arg14[%c3_182, %c98_183], %118 {strides = array<i32>} : memref<9x784xf32, #tpu.memory_space<vmem>>, vector<1x49xf32>,
    %c9_184 = arith.constant 9 : index
    %c8_185 = arith.constant 8 : index
    %120 = vector.load %arg12[%c9_184, %c8_185] : memref<16x72xf32, #tpu.memory_space<vmem>>, vector<1x49xf32>
    %c3_186 = arith.constant 3 : index
    %c147_187 = arith.constant 147 : index
    %121 = vector.load %arg14[%c3_186, %c147_187] : memref<9x784xf32, #tpu.memory_space<vmem>>, vector<1x49xf32>
    tpu.vector_store %arg14[%c3_186, %c147_187], %120 {strides = array<i32>} : memref<9x784xf32, #tpu.memory_space<vmem>>, vector<1x49xf32>,
    %c0_188 = arith.constant 0 : index
    %c8_189 = arith.constant 8 : index
    %122 = vector.load %arg12[%c0_188, %c8_189] : memref<16x72xf32, #tpu.memory_space<vmem>>, vector<1x49xf32>
    %c3_190 = arith.constant 3 : index
    %c196_191 = arith.constant 196 : index
    %123 = vector.load %arg14[%c3_190, %c196_191] : memref<9x784xf32, #tpu.memory_space<vmem>>, vector<1x49xf32>
    tpu.vector_store %arg14[%c3_190, %c196_191], %122 {strides = array<i32>} : memref<9x784xf32, #tpu.memory_space<vmem>>, vector<1x49xf32>,
    %c2_192 = arith.constant 2 : index
    %c8_193 = arith.constant 8 : index
    %124 = vector.load %arg12[%c2_192, %c8_193] : memref<16x72xf32, #tpu.memory_space<vmem>>, vector<1x49xf32>
    %c3_194 = arith.constant 3 : index
    %c245_195 = arith.constant 245 : index
    %125 = vector.load %arg14[%c3_194, %c245_195] : memref<9x784xf32, #tpu.memory_space<vmem>>, vector<1x49xf32>
    tpu.vector_store %arg14[%c3_194, %c245_195], %124 {strides = array<i32>} : memref<9x784xf32, #tpu.memory_space<vmem>>, vector<1x49xf32>,
    %c8_196 = arith.constant 8 : index
    %c8_197 = arith.constant 8 : index
    %126 = vector.load %arg12[%c8_196, %c8_197] : memref<16x72xf32, #tpu.memory_space<vmem>>, vector<1x49xf32>
    %c3_198 = arith.constant 3 : index
    %c294_199 = arith.constant 294 : index
    %127 = vector.load %arg14[%c3_198, %c294_199] : memref<9x784xf32, #tpu.memory_space<vmem>>, vector<1x49xf32>
    tpu.vector_store %arg14[%c3_198, %c294_199], %126 {strides = array<i32>} : memref<9x784xf32, #tpu.memory_space<vmem>>, vector<1x49xf32>,
    %c10_200 = arith.constant 10 : index
    %c8_201 = arith.constant 8 : index
    %128 = vector.load %arg12[%c10_200, %c8_201] : memref<16x72xf32, #tpu.memory_space<vmem>>, vector<1x49xf32>
    %c3_202 = arith.constant 3 : index
    %c343_203 = arith.constant 343 : index
    %129 = vector.load %arg14[%c3_202, %c343_203] : memref<9x784xf32, #tpu.memory_space<vmem>>, vector<1x49xf32>
    tpu.vector_store %arg14[%c3_202, %c343_203], %128 {strides = array<i32>} : memref<9x784xf32, #tpu.memory_space<vmem>>, vector<1x49xf32>,
    %c7_204 = arith.constant 7 : index
    %c7_205 = arith.constant 7 : index
    %130 = vector.load %arg12[%c7_204, %c7_205] : memref<16x72xf32, #tpu.memory_space<vmem>>, vector<1x49xf32>
    %131 = arith.mulf %130, %0 : vector<1x49xf32>
    %c3_206 = arith.constant 3 : index
    %c392_207 = arith.constant 392 : index
    %132 = vector.load %arg14[%c3_206, %c392_207] : memref<9x784xf32, #tpu.memory_space<vmem>>, vector<1x49xf32>
    tpu.vector_store %arg14[%c3_206, %c392_207], %131 {strides = array<i32>} : memref<9x784xf32, #tpu.memory_space<vmem>>, vector<1x49xf32>,
    %c5_208 = arith.constant 5 : index
    %c8_209 = arith.constant 8 : index
    %133 = vector.load %arg12[%c5_208, %c8_209] : memref<16x72xf32, #tpu.memory_space<vmem>>, vector<1x49xf32>
    %c3_210 = arith.constant 3 : index
    %c441_211 = arith.constant 441 : index
    %134 = vector.load %arg14[%c3_210, %c441_211] : memref<9x784xf32, #tpu.memory_space<vmem>>, vector<1x49xf32>
    tpu.vector_store %arg14[%c3_210, %c441_211], %133 {strides = array<i32>} : memref<9x784xf32, #tpu.memory_space<vmem>>, vector<1x49xf32>,
    %c15_212 = arith.constant 15 : index
    %c7_213 = arith.constant 7 : index
    %135 = vector.load %arg12[%c15_212, %c7_213] : memref<16x72xf32, #tpu.memory_space<vmem>>, vector<1x49xf32>
    %136 = arith.mulf %135, %0 : vector<1x49xf32>
    %c3_214 = arith.constant 3 : index
    %c490_215 = arith.constant 490 : index
    %137 = vector.load %arg14[%c3_214, %c490_215] : memref<9x784xf32, #tpu.memory_space<vmem>>, vector<1x49xf32>
    tpu.vector_store %arg14[%c3_214, %c490_215], %136 {strides = array<i32>} : memref<9x784xf32, #tpu.memory_space<vmem>>, vector<1x49xf32>,
    %c13_216 = arith.constant 13 : index
    %c8_217 = arith.constant 8 : index
    %138 = vector.load %arg12[%c13_216, %c8_217] : memref<16x72xf32, #tpu.memory_space<vmem>>, vector<1x49xf32>
    %c3_218 = arith.constant 3 : index
    %c539_219 = arith.constant 539 : index
    %139 = vector.load %arg14[%c3_218, %c539_219] : memref<9x784xf32, #tpu.memory_space<vmem>>, vector<1x49xf32>
    tpu.vector_store %arg14[%c3_218, %c539_219], %138 {strides = array<i32>} : memref<9x784xf32, #tpu.memory_space<vmem>>, vector<1x49xf32>,
    %c4_220 = arith.constant 4 : index
    %c8_221 = arith.constant 8 : index
    %140 = vector.load %arg12[%c4_220, %c8_221] : memref<16x72xf32, #tpu.memory_space<vmem>>, vector<1x49xf32>
    %c3_222 = arith.constant 3 : index
    %c588_223 = arith.constant 588 : index
    %141 = vector.load %arg14[%c3_222, %c588_223] : memref<9x784xf32, #tpu.memory_space<vmem>>, vector<1x49xf32>
    tpu.vector_store %arg14[%c3_222, %c588_223], %140 {strides = array<i32>} : memref<9x784xf32, #tpu.memory_space<vmem>>, vector<1x49xf32>,
    %c6_224 = arith.constant 6 : index
    %c8_225 = arith.constant 8 : index
    %142 = vector.load %arg12[%c6_224, %c8_225] : memref<16x72xf32, #tpu.memory_space<vmem>>, vector<1x49xf32>
    %c3_226 = arith.constant 3 : index
    %c637_227 = arith.constant 637 : index
    %143 = vector.load %arg14[%c3_226, %c637_227] : memref<9x784xf32, #tpu.memory_space<vmem>>, vector<1x49xf32>
    tpu.vector_store %arg14[%c3_226, %c637_227], %142 {strides = array<i32>} : memref<9x784xf32, #tpu.memory_space<vmem>>, vector<1x49xf32>,
    %c12_228 = arith.constant 12 : index
    %c8_229 = arith.constant 8 : index
    %144 = vector.load %arg12[%c12_228, %c8_229] : memref<16x72xf32, #tpu.memory_space<vmem>>, vector<1x49xf32>
    %c3_230 = arith.constant 3 : index
    %c686_231 = arith.constant 686 : index
    %145 = vector.load %arg14[%c3_230, %c686_231] : memref<9x784xf32, #tpu.memory_space<vmem>>, vector<1x49xf32>
    tpu.vector_store %arg14[%c3_230, %c686_231], %144 {strides = array<i32>} : memref<9x784xf32, #tpu.memory_space<vmem>>, vector<1x49xf32>,
    %c14_232 = arith.constant 14 : index
    %c8_233 = arith.constant 8 : index
    %146 = vector.load %arg12[%c14_232, %c8_233] : memref<16x72xf32, #tpu.memory_space<vmem>>, vector<1x49xf32>
    %c3_234 = arith.constant 3 : index
    %c735_235 = arith.constant 735 : index
    %147 = vector.load %arg14[%c3_234, %c735_235] : memref<9x784xf32, #tpu.memory_space<vmem>>, vector<1x49xf32>
    tpu.vector_store %arg14[%c3_234, %c735_235], %146 {strides = array<i32>} : memref<9x784xf32, #tpu.memory_space<vmem>>, vector<1x49xf32>,
    %c0_236 = arith.constant 0 : index
    %c8_237 = arith.constant 8 : index
    %148 = vector.load %arg12[%c0_236, %c8_237] : memref<16x72xf32, #tpu.memory_space<vmem>>, vector<1x49xf32>
    %c4_238 = arith.constant 4 : index
    %c0_239 = arith.constant 0 : index
    %149 = vector.load %arg14[%c4_238, %c0_239] : memref<9x784xf32, #tpu.memory_space<vmem>>, vector<1x49xf32>
    tpu.vector_store %arg14[%c4_238, %c0_239], %148 {strides = array<i32>} : memref<9x784xf32, #tpu.memory_space<vmem>>, vector<1x49xf32>,
    %c2_240 = arith.constant 2 : index
    %c8_241 = arith.constant 8 : index
    %150 = vector.load %arg12[%c2_240, %c8_241] : memref<16x72xf32, #tpu.memory_space<vmem>>, vector<1x49xf32>
    %c4_242 = arith.constant 4 : index
    %c49_243 = arith.constant 49 : index
    %151 = vector.load %arg14[%c4_242, %c49_243] : memref<9x784xf32, #tpu.memory_space<vmem>>, vector<1x49xf32>
    tpu.vector_store %arg14[%c4_242, %c49_243], %150 {strides = array<i32>} : memref<9x784xf32, #tpu.memory_space<vmem>>, vector<1x49xf32>,
    %c8_244 = arith.constant 8 : index
    %c8_245 = arith.constant 8 : index
    %152 = vector.load %arg12[%c8_244, %c8_245] : memref<16x72xf32, #tpu.memory_space<vmem>>, vector<1x49xf32>
    %c4_246 = arith.constant 4 : index
    %c98_247 = arith.constant 98 : index
    %153 = vector.load %arg14[%c4_246, %c98_247] : memref<9x784xf32, #tpu.memory_space<vmem>>, vector<1x49xf32>
    tpu.vector_store %arg14[%c4_246, %c98_247], %152 {strides = array<i32>} : memref<9x784xf32, #tpu.memory_space<vmem>>, vector<1x49xf32>,
    %c10_248 = arith.constant 10 : index
    %c8_249 = arith.constant 8 : index
    %154 = vector.load %arg12[%c10_248, %c8_249] : memref<16x72xf32, #tpu.memory_space<vmem>>, vector<1x49xf32>
    %c4_250 = arith.constant 4 : index
    %c147_251 = arith.constant 147 : index
    %155 = vector.load %arg14[%c4_250, %c147_251] : memref<9x784xf32, #tpu.memory_space<vmem>>, vector<1x49xf32>
    tpu.vector_store %arg14[%c4_250, %c147_251], %154 {strides = array<i32>} : memref<9x784xf32, #tpu.memory_space<vmem>>, vector<1x49xf32>,
    %c1_252 = arith.constant 1 : index
    %c8_253 = arith.constant 8 : index
    %156 = vector.load %arg12[%c1_252, %c8_253] : memref<16x72xf32, #tpu.memory_space<vmem>>, vector<1x49xf32>
    %c4_254 = arith.constant 4 : index
    %c196_255 = arith.constant 196 : index
    %157 = vector.load %arg14[%c4_254, %c196_255] : memref<9x784xf32, #tpu.memory_space<vmem>>, vector<1x49xf32>
    tpu.vector_store %arg14[%c4_254, %c196_255], %156 {strides = array<i32>} : memref<9x784xf32, #tpu.memory_space<vmem>>, vector<1x49xf32>,
    %c3_256 = arith.constant 3 : index
    %c8_257 = arith.constant 8 : index
    %158 = vector.load %arg12[%c3_256, %c8_257] : memref<16x72xf32, #tpu.memory_space<vmem>>, vector<1x49xf32>
    %c4_258 = arith.constant 4 : index
    %c245_259 = arith.constant 245 : index
    %159 = vector.load %arg14[%c4_258, %c245_259] : memref<9x784xf32, #tpu.memory_space<vmem>>, vector<1x49xf32>
    tpu.vector_store %arg14[%c4_258, %c245_259], %158 {strides = array<i32>} : memref<9x784xf32, #tpu.memory_space<vmem>>, vector<1x49xf32>,
    %c9_260 = arith.constant 9 : index
    %c8_261 = arith.constant 8 : index
    %160 = vector.load %arg12[%c9_260, %c8_261] : memref<16x72xf32, #tpu.memory_space<vmem>>, vector<1x49xf32>
    %c4_262 = arith.constant 4 : index
    %c294_263 = arith.constant 294 : index
    %161 = vector.load %arg14[%c4_262, %c294_263] : memref<9x784xf32, #tpu.memory_space<vmem>>, vector<1x49xf32>
    tpu.vector_store %arg14[%c4_262, %c294_263], %160 {strides = array<i32>} : memref<9x784xf32, #tpu.memory_space<vmem>>, vector<1x49xf32>,
    %c11_264 = arith.constant 11 : index
    %c8_265 = arith.constant 8 : index
    %162 = vector.load %arg12[%c11_264, %c8_265] : memref<16x72xf32, #tpu.memory_space<vmem>>, vector<1x49xf32>
    %c4_266 = arith.constant 4 : index
    %c343_267 = arith.constant 343 : index
    %163 = vector.load %arg14[%c4_266, %c343_267] : memref<9x784xf32, #tpu.memory_space<vmem>>, vector<1x49xf32>
    tpu.vector_store %arg14[%c4_266, %c343_267], %162 {strides = array<i32>} : memref<9x784xf32, #tpu.memory_space<vmem>>, vector<1x49xf32>,
    %c4_268 = arith.constant 4 : index
    %c8_269 = arith.constant 8 : index
    %164 = vector.load %arg12[%c4_268, %c8_269] : memref<16x72xf32, #tpu.memory_space<vmem>>, vector<1x49xf32>
    %c4_270 = arith.constant 4 : index
    %c392_271 = arith.constant 392 : index
    %165 = vector.load %arg14[%c4_270, %c392_271] : memref<9x784xf32, #tpu.memory_space<vmem>>, vector<1x49xf32>
    tpu.vector_store %arg14[%c4_270, %c392_271], %164 {strides = array<i32>} : memref<9x784xf32, #tpu.memory_space<vmem>>, vector<1x49xf32>,
    %c6_272 = arith.constant 6 : index
    %c8_273 = arith.constant 8 : index
    %166 = vector.load %arg12[%c6_272, %c8_273] : memref<16x72xf32, #tpu.memory_space<vmem>>, vector<1x49xf32>
    %c4_274 = arith.constant 4 : index
    %c441_275 = arith.constant 441 : index
    %167 = vector.load %arg14[%c4_274, %c441_275] : memref<9x784xf32, #tpu.memory_space<vmem>>, vector<1x49xf32>
    tpu.vector_store %arg14[%c4_274, %c441_275], %166 {strides = array<i32>} : memref<9x784xf32, #tpu.memory_space<vmem>>, vector<1x49xf32>,
    %c12_276 = arith.constant 12 : index
    %c8_277 = arith.constant 8 : index
    %168 = vector.load %arg12[%c12_276, %c8_277] : memref<16x72xf32, #tpu.memory_space<vmem>>, vector<1x49xf32>
    %c4_278 = arith.constant 4 : index
    %c490_279 = arith.constant 490 : index
    %169 = vector.load %arg14[%c4_278, %c490_279] : memref<9x784xf32, #tpu.memory_space<vmem>>, vector<1x49xf32>
    tpu.vector_store %arg14[%c4_278, %c490_279], %168 {strides = array<i32>} : memref<9x784xf32, #tpu.memory_space<vmem>>, vector<1x49xf32>,
    %c14_280 = arith.constant 14 : index
    %c8_281 = arith.constant 8 : index
    %170 = vector.load %arg12[%c14_280, %c8_281] : memref<16x72xf32, #tpu.memory_space<vmem>>, vector<1x49xf32>
    %c4_282 = arith.constant 4 : index
    %c539_283 = arith.constant 539 : index
    %171 = vector.load %arg14[%c4_282, %c539_283] : memref<9x784xf32, #tpu.memory_space<vmem>>, vector<1x49xf32>
    tpu.vector_store %arg14[%c4_282, %c539_283], %170 {strides = array<i32>} : memref<9x784xf32, #tpu.memory_space<vmem>>, vector<1x49xf32>,
    %c5_284 = arith.constant 5 : index
    %c8_285 = arith.constant 8 : index
    %172 = vector.load %arg12[%c5_284, %c8_285] : memref<16x72xf32, #tpu.memory_space<vmem>>, vector<1x49xf32>
    %c4_286 = arith.constant 4 : index
    %c588_287 = arith.constant 588 : index
    %173 = vector.load %arg14[%c4_286, %c588_287] : memref<9x784xf32, #tpu.memory_space<vmem>>, vector<1x49xf32>
    tpu.vector_store %arg14[%c4_286, %c588_287], %172 {strides = array<i32>} : memref<9x784xf32, #tpu.memory_space<vmem>>, vector<1x49xf32>,
    %c7_288 = arith.constant 7 : index
    %c8_289 = arith.constant 8 : index
    %174 = vector.load %arg12[%c7_288, %c8_289] : memref<16x72xf32, #tpu.memory_space<vmem>>, vector<1x49xf32>
    %c4_290 = arith.constant 4 : index
    %c637_291 = arith.constant 637 : index
    %175 = vector.load %arg14[%c4_290, %c637_291] : memref<9x784xf32, #tpu.memory_space<vmem>>, vector<1x49xf32>
    tpu.vector_store %arg14[%c4_290, %c637_291], %174 {strides = array<i32>} : memref<9x784xf32, #tpu.memory_space<vmem>>, vector<1x49xf32>,
    %c13_292 = arith.constant 13 : index
    %c8_293 = arith.constant 8 : index
    %176 = vector.load %arg12[%c13_292, %c8_293] : memref<16x72xf32, #tpu.memory_space<vmem>>, vector<1x49xf32>
    %c4_294 = arith.constant 4 : index
    %c686_295 = arith.constant 686 : index
    %177 = vector.load %arg14[%c4_294, %c686_295] : memref<9x784xf32, #tpu.memory_space<vmem>>, vector<1x49xf32>
    tpu.vector_store %arg14[%c4_294, %c686_295], %176 {strides = array<i32>} : memref<9x784xf32, #tpu.memory_space<vmem>>, vector<1x49xf32>,
    %c15_296 = arith.constant 15 : index
    %c8_297 = arith.constant 8 : index
    %178 = vector.load %arg12[%c15_296, %c8_297] : memref<16x72xf32, #tpu.memory_space<vmem>>, vector<1x49xf32>
    %c4_298 = arith.constant 4 : index
    %c735_299 = arith.constant 735 : index
    %179 = vector.load %arg14[%c4_298, %c735_299] : memref<9x784xf32, #tpu.memory_space<vmem>>, vector<1x49xf32>
    tpu.vector_store %arg14[%c4_298, %c735_299], %178 {strides = array<i32>} : memref<9x784xf32, #tpu.memory_space<vmem>>, vector<1x49xf32>,
    %c1_300 = arith.constant 1 : index
    %c8_301 = arith.constant 8 : index
    %180 = vector.load %arg12[%c1_300, %c8_301] : memref<16x72xf32, #tpu.memory_space<vmem>>, vector<1x49xf32>
    %c5_302 = arith.constant 5 : index
    %c0_303 = arith.constant 0 : index
    %181 = vector.load %arg14[%c5_302, %c0_303] : memref<9x784xf32, #tpu.memory_space<vmem>>, vector<1x49xf32>
    tpu.vector_store %arg14[%c5_302, %c0_303], %180 {strides = array<i32>} : memref<9x784xf32, #tpu.memory_space<vmem>>, vector<1x49xf32>,
    %c3_304 = arith.constant 3 : index
    %c8_305 = arith.constant 8 : index
    %182 = vector.load %arg12[%c3_304, %c8_305] : memref<16x72xf32, #tpu.memory_space<vmem>>, vector<1x49xf32>
    %c5_306 = arith.constant 5 : index
    %c49_307 = arith.constant 49 : index
    %183 = vector.load %arg14[%c5_306, %c49_307] : memref<9x784xf32, #tpu.memory_space<vmem>>, vector<1x49xf32>
    tpu.vector_store %arg14[%c5_306, %c49_307], %182 {strides = array<i32>} : memref<9x784xf32, #tpu.memory_space<vmem>>, vector<1x49xf32>,
    %c9_308 = arith.constant 9 : index
    %c8_309 = arith.constant 8 : index
    %184 = vector.load %arg12[%c9_308, %c8_309] : memref<16x72xf32, #tpu.memory_space<vmem>>, vector<1x49xf32>
    %c5_310 = arith.constant 5 : index
    %c98_311 = arith.constant 98 : index
    %185 = vector.load %arg14[%c5_310, %c98_311] : memref<9x784xf32, #tpu.memory_space<vmem>>, vector<1x49xf32>
    tpu.vector_store %arg14[%c5_310, %c98_311], %184 {strides = array<i32>} : memref<9x784xf32, #tpu.memory_space<vmem>>, vector<1x49xf32>,
    %c11_312 = arith.constant 11 : index
    %c8_313 = arith.constant 8 : index
    %186 = vector.load %arg12[%c11_312, %c8_313] : memref<16x72xf32, #tpu.memory_space<vmem>>, vector<1x49xf32>
    %c5_314 = arith.constant 5 : index
    %c147_315 = arith.constant 147 : index
    %187 = vector.load %arg14[%c5_314, %c147_315] : memref<9x784xf32, #tpu.memory_space<vmem>>, vector<1x49xf32>
    tpu.vector_store %arg14[%c5_314, %c147_315], %186 {strides = array<i32>} : memref<9x784xf32, #tpu.memory_space<vmem>>, vector<1x49xf32>,
    %c2_316 = arith.constant 2 : index
    %c8_317 = arith.constant 8 : index
    %188 = vector.load %arg12[%c2_316, %c8_317] : memref<16x72xf32, #tpu.memory_space<vmem>>, vector<1x49xf32>
    %c5_318 = arith.constant 5 : index
    %c196_319 = arith.constant 196 : index
    %189 = vector.load %arg14[%c5_318, %c196_319] : memref<9x784xf32, #tpu.memory_space<vmem>>, vector<1x49xf32>
    tpu.vector_store %arg14[%c5_318, %c196_319], %188 {strides = array<i32>} : memref<9x784xf32, #tpu.memory_space<vmem>>, vector<1x49xf32>,
    %c0_320 = arith.constant 0 : index
    %c9_321 = arith.constant 9 : index
    %190 = vector.load %arg12[%c0_320, %c9_321] : memref<16x72xf32, #tpu.memory_space<vmem>>, vector<1x49xf32>
    %191 = arith.mulf %190, %1 : vector<1x49xf32>
    %c5_322 = arith.constant 5 : index
    %c245_323 = arith.constant 245 : index
    %192 = vector.load %arg14[%c5_322, %c245_323] : memref<9x784xf32, #tpu.memory_space<vmem>>, vector<1x49xf32>
    tpu.vector_store %arg14[%c5_322, %c245_323], %191 {strides = array<i32>} : memref<9x784xf32, #tpu.memory_space<vmem>>, vector<1x49xf32>,
    %c10_324 = arith.constant 10 : index
    %c8_325 = arith.constant 8 : index
    %193 = vector.load %arg12[%c10_324, %c8_325] : memref<16x72xf32, #tpu.memory_space<vmem>>, vector<1x49xf32>
    %c5_326 = arith.constant 5 : index
    %c294_327 = arith.constant 294 : index
    %194 = vector.load %arg14[%c5_326, %c294_327] : memref<9x784xf32, #tpu.memory_space<vmem>>, vector<1x49xf32>
    tpu.vector_store %arg14[%c5_326, %c294_327], %193 {strides = array<i32>} : memref<9x784xf32, #tpu.memory_space<vmem>>, vector<1x49xf32>,
    %c8_328 = arith.constant 8 : index
    %c9_329 = arith.constant 9 : index
    %195 = vector.load %arg12[%c8_328, %c9_329] : memref<16x72xf32, #tpu.memory_space<vmem>>, vector<1x49xf32>
    %196 = arith.mulf %195, %1 : vector<1x49xf32>
    %c5_330 = arith.constant 5 : index
    %c343_331 = arith.constant 343 : index
    %197 = vector.load %arg14[%c5_330, %c343_331] : memref<9x784xf32, #tpu.memory_space<vmem>>, vector<1x49xf32>
    tpu.vector_store %arg14[%c5_330, %c343_331], %196 {strides = array<i32>} : memref<9x784xf32, #tpu.memory_space<vmem>>, vector<1x49xf32>,
    %c5_332 = arith.constant 5 : index
    %c8_333 = arith.constant 8 : index
    %198 = vector.load %arg12[%c5_332, %c8_333] : memref<16x72xf32, #tpu.memory_space<vmem>>, vector<1x49xf32>
    %c5_334 = arith.constant 5 : index
    %c392_335 = arith.constant 392 : index
    %199 = vector.load %arg14[%c5_334, %c392_335] : memref<9x784xf32, #tpu.memory_space<vmem>>, vector<1x49xf32>
    tpu.vector_store %arg14[%c5_334, %c392_335], %198 {strides = array<i32>} : memref<9x784xf32, #tpu.memory_space<vmem>>, vector<1x49xf32>,
    %c7_336 = arith.constant 7 : index
    %c8_337 = arith.constant 8 : index
    %200 = vector.load %arg12[%c7_336, %c8_337] : memref<16x72xf32, #tpu.memory_space<vmem>>, vector<1x49xf32>
    %c5_338 = arith.constant 5 : index
    %c441_339 = arith.constant 441 : index
    %201 = vector.load %arg14[%c5_338, %c441_339] : memref<9x784xf32, #tpu.memory_space<vmem>>, vector<1x49xf32>
    tpu.vector_store %arg14[%c5_338, %c441_339], %200 {strides = array<i32>} : memref<9x784xf32, #tpu.memory_space<vmem>>, vector<1x49xf32>,
    %c13_340 = arith.constant 13 : index
    %c8_341 = arith.constant 8 : index
    %202 = vector.load %arg12[%c13_340, %c8_341] : memref<16x72xf32, #tpu.memory_space<vmem>>, vector<1x49xf32>
    %c5_342 = arith.constant 5 : index
    %c490_343 = arith.constant 490 : index
    %203 = vector.load %arg14[%c5_342, %c490_343] : memref<9x784xf32, #tpu.memory_space<vmem>>, vector<1x49xf32>
    tpu.vector_store %arg14[%c5_342, %c490_343], %202 {strides = array<i32>} : memref<9x784xf32, #tpu.memory_space<vmem>>, vector<1x49xf32>,
    %c15_344 = arith.constant 15 : index
    %c8_345 = arith.constant 8 : index
    %204 = vector.load %arg12[%c15_344, %c8_345] : memref<16x72xf32, #tpu.memory_space<vmem>>, vector<1x49xf32>
    %c5_346 = arith.constant 5 : index
    %c539_347 = arith.constant 539 : index
    %205 = vector.load %arg14[%c5_346, %c539_347] : memref<9x784xf32, #tpu.memory_space<vmem>>, vector<1x49xf32>
    tpu.vector_store %arg14[%c5_346, %c539_347], %204 {strides = array<i32>} : memref<9x784xf32, #tpu.memory_space<vmem>>, vector<1x49xf32>,
    %c6_348 = arith.constant 6 : index
    %c8_349 = arith.constant 8 : index
    %206 = vector.load %arg12[%c6_348, %c8_349] : memref<16x72xf32, #tpu.memory_space<vmem>>, vector<1x49xf32>
    %c5_350 = arith.constant 5 : index
    %c588_351 = arith.constant 588 : index
    %207 = vector.load %arg14[%c5_350, %c588_351] : memref<9x784xf32, #tpu.memory_space<vmem>>, vector<1x49xf32>
    tpu.vector_store %arg14[%c5_350, %c588_351], %206 {strides = array<i32>} : memref<9x784xf32, #tpu.memory_space<vmem>>, vector<1x49xf32>,
    %c4_352 = arith.constant 4 : index
    %c9_353 = arith.constant 9 : index
    %208 = vector.load %arg12[%c4_352, %c9_353] : memref<16x72xf32, #tpu.memory_space<vmem>>, vector<1x49xf32>
    %209 = arith.mulf %208, %1 : vector<1x49xf32>
    %c5_354 = arith.constant 5 : index
    %c637_355 = arith.constant 637 : index
    %210 = vector.load %arg14[%c5_354, %c637_355] : memref<9x784xf32, #tpu.memory_space<vmem>>, vector<1x49xf32>
    tpu.vector_store %arg14[%c5_354, %c637_355], %209 {strides = array<i32>} : memref<9x784xf32, #tpu.memory_space<vmem>>, vector<1x49xf32>,
    %c14_356 = arith.constant 14 : index
    %c8_357 = arith.constant 8 : index
    %211 = vector.load %arg12[%c14_356, %c8_357] : memref<16x72xf32, #tpu.memory_space<vmem>>, vector<1x49xf32>
    %c5_358 = arith.constant 5 : index
    %c686_359 = arith.constant 686 : index
    %212 = vector.load %arg14[%c5_358, %c686_359] : memref<9x784xf32, #tpu.memory_space<vmem>>, vector<1x49xf32>
    tpu.vector_store %arg14[%c5_358, %c686_359], %211 {strides = array<i32>} : memref<9x784xf32, #tpu.memory_space<vmem>>, vector<1x49xf32>,
    %c12_360 = arith.constant 12 : index
    %c9_361 = arith.constant 9 : index
    %213 = vector.load %arg12[%c12_360, %c9_361] : memref<16x72xf32, #tpu.memory_space<vmem>>, vector<1x49xf32>
    %214 = arith.mulf %213, %1 : vector<1x49xf32>
    %c5_362 = arith.constant 5 : index
    %c735_363 = arith.constant 735 : index
    %215 = vector.load %arg14[%c5_362, %c735_363] : memref<9x784xf32, #tpu.memory_space<vmem>>, vector<1x49xf32>
    tpu.vector_store %arg14[%c5_362, %c735_363], %214 {strides = array<i32>} : memref<9x784xf32, #tpu.memory_space<vmem>>, vector<1x49xf32>,
    %c7_364 = arith.constant 7 : index
    %c7_365 = arith.constant 7 : index
    %216 = vector.load %arg12[%c7_364, %c7_365] : memref<16x72xf32, #tpu.memory_space<vmem>>, vector<1x49xf32>
    %217 = arith.mulf %216, %0 : vector<1x49xf32>
    %c6_366 = arith.constant 6 : index
    %c0_367 = arith.constant 0 : index
    %218 = vector.load %arg14[%c6_366, %c0_367] : memref<9x784xf32, #tpu.memory_space<vmem>>, vector<1x49xf32>
    tpu.vector_store %arg14[%c6_366, %c0_367], %217 {strides = array<i32>} : memref<9x784xf32, #tpu.memory_space<vmem>>, vector<1x49xf32>,
    %c5_368 = arith.constant 5 : index
    %c8_369 = arith.constant 8 : index
    %219 = vector.load %arg12[%c5_368, %c8_369] : memref<16x72xf32, #tpu.memory_space<vmem>>, vector<1x49xf32>
    %c6_370 = arith.constant 6 : index
    %c49_371 = arith.constant 49 : index
    %220 = vector.load %arg14[%c6_370, %c49_371] : memref<9x784xf32, #tpu.memory_space<vmem>>, vector<1x49xf32>
    tpu.vector_store %arg14[%c6_370, %c49_371], %219 {strides = array<i32>} : memref<9x784xf32, #tpu.memory_space<vmem>>, vector<1x49xf32>,
    %c15_372 = arith.constant 15 : index
    %c7_373 = arith.constant 7 : index
    %221 = vector.load %arg12[%c15_372, %c7_373] : memref<16x72xf32, #tpu.memory_space<vmem>>, vector<1x49xf32>
    %222 = arith.mulf %221, %0 : vector<1x49xf32>
    %c6_374 = arith.constant 6 : index
    %c98_375 = arith.constant 98 : index
    %223 = vector.load %arg14[%c6_374, %c98_375] : memref<9x784xf32, #tpu.memory_space<vmem>>, vector<1x49xf32>
    tpu.vector_store %arg14[%c6_374, %c98_375], %222 {strides = array<i32>} : memref<9x784xf32, #tpu.memory_space<vmem>>, vector<1x49xf32>,
    %c13_376 = arith.constant 13 : index
    %c8_377 = arith.constant 8 : index
    %224 = vector.load %arg12[%c13_376, %c8_377] : memref<16x72xf32, #tpu.memory_space<vmem>>, vector<1x49xf32>
    %c6_378 = arith.constant 6 : index
    %c147_379 = arith.constant 147 : index
    %225 = vector.load %arg14[%c6_378, %c147_379] : memref<9x784xf32, #tpu.memory_space<vmem>>, vector<1x49xf32>
    tpu.vector_store %arg14[%c6_378, %c147_379], %224 {strides = array<i32>} : memref<9x784xf32, #tpu.memory_space<vmem>>, vector<1x49xf32>,
    %c4_380 = arith.constant 4 : index
    %c8_381 = arith.constant 8 : index
    %226 = vector.load %arg12[%c4_380, %c8_381] : memref<16x72xf32, #tpu.memory_space<vmem>>, vector<1x49xf32>
    %c6_382 = arith.constant 6 : index
    %c196_383 = arith.constant 196 : index
    %227 = vector.load %arg14[%c6_382, %c196_383] : memref<9x784xf32, #tpu.memory_space<vmem>>, vector<1x49xf32>
    tpu.vector_store %arg14[%c6_382, %c196_383], %226 {strides = array<i32>} : memref<9x784xf32, #tpu.memory_space<vmem>>, vector<1x49xf32>,
    %c6_384 = arith.constant 6 : index
    %c8_385 = arith.constant 8 : index
    %228 = vector.load %arg12[%c6_384, %c8_385] : memref<16x72xf32, #tpu.memory_space<vmem>>, vector<1x49xf32>
    %c6_386 = arith.constant 6 : index
    %c245_387 = arith.constant 245 : index
    %229 = vector.load %arg14[%c6_386, %c245_387] : memref<9x784xf32, #tpu.memory_space<vmem>>, vector<1x49xf32>
    tpu.vector_store %arg14[%c6_386, %c245_387], %228 {strides = array<i32>} : memref<9x784xf32, #tpu.memory_space<vmem>>, vector<1x49xf32>,
    %c12_388 = arith.constant 12 : index
    %c8_389 = arith.constant 8 : index
    %230 = vector.load %arg12[%c12_388, %c8_389] : memref<16x72xf32, #tpu.memory_space<vmem>>, vector<1x49xf32>
    %c6_390 = arith.constant 6 : index
    %c294_391 = arith.constant 294 : index
    %231 = vector.load %arg14[%c6_390, %c294_391] : memref<9x784xf32, #tpu.memory_space<vmem>>, vector<1x49xf32>
    tpu.vector_store %arg14[%c6_390, %c294_391], %230 {strides = array<i32>} : memref<9x784xf32, #tpu.memory_space<vmem>>, vector<1x49xf32>,
    %c14_392 = arith.constant 14 : index
    %c8_393 = arith.constant 8 : index
    %232 = vector.load %arg12[%c14_392, %c8_393] : memref<16x72xf32, #tpu.memory_space<vmem>>, vector<1x49xf32>
    %c6_394 = arith.constant 6 : index
    %c343_395 = arith.constant 343 : index
    %233 = vector.load %arg14[%c6_394, %c343_395] : memref<9x784xf32, #tpu.memory_space<vmem>>, vector<1x49xf32>
    tpu.vector_store %arg14[%c6_394, %c343_395], %232 {strides = array<i32>} : memref<9x784xf32, #tpu.memory_space<vmem>>, vector<1x49xf32>,
    %c11_396 = arith.constant 11 : index
    %c7_397 = arith.constant 7 : index
    %234 = vector.load %arg12[%c11_396, %c7_397] : memref<16x72xf32, #tpu.memory_space<vmem>>, vector<1x49xf32>
    %235 = arith.mulf %234, %0 : vector<1x49xf32>
    %c6_398 = arith.constant 6 : index
    %c392_399 = arith.constant 392 : index
    %236 = vector.load %arg14[%c6_398, %c392_399] : memref<9x784xf32, #tpu.memory_space<vmem>>, vector<1x49xf32>
    tpu.vector_store %arg14[%c6_398, %c392_399], %235 {strides = array<i32>} : memref<9x784xf32, #tpu.memory_space<vmem>>, vector<1x49xf32>,
    %c9_400 = arith.constant 9 : index
    %c8_401 = arith.constant 8 : index
    %237 = vector.load %arg12[%c9_400, %c8_401] : memref<16x72xf32, #tpu.memory_space<vmem>>, vector<1x49xf32>
    %c6_402 = arith.constant 6 : index
    %c441_403 = arith.constant 441 : index
    %238 = vector.load %arg14[%c6_402, %c441_403] : memref<9x784xf32, #tpu.memory_space<vmem>>, vector<1x49xf32>
    tpu.vector_store %arg14[%c6_402, %c441_403], %237 {strides = array<i32>} : memref<9x784xf32, #tpu.memory_space<vmem>>, vector<1x49xf32>,
    %c3_404 = arith.constant 3 : index
    %c14_405 = arith.constant 14 : index
    %239 = vector.load %arg12[%c3_404, %c14_405] : memref<16x72xf32, #tpu.memory_space<vmem>>, vector<1x49xf32>
    %240 = arith.mulf %239, %0 : vector<1x49xf32>
    %c6_406 = arith.constant 6 : index
    %c490_407 = arith.constant 490 : index
    %241 = vector.load %arg14[%c6_406, %c490_407] : memref<9x784xf32, #tpu.memory_space<vmem>>, vector<1x49xf32>
    tpu.vector_store %arg14[%c6_406, %c490_407], %240 {strides = array<i32>} : memref<9x784xf32, #tpu.memory_space<vmem>>, vector<1x49xf32>,
    %c1_408 = arith.constant 1 : index
    %c15_409 = arith.constant 15 : index
    %242 = vector.load %arg12[%c1_408, %c15_409] : memref<16x72xf32, #tpu.memory_space<vmem>>, vector<1x49xf32>
    %c6_410 = arith.constant 6 : index
    %c539_411 = arith.constant 539 : index
    %243 = vector.load %arg14[%c6_410, %c539_411] : memref<9x784xf32, #tpu.memory_space<vmem>>, vector<1x49xf32>
    tpu.vector_store %arg14[%c6_410, %c539_411], %242 {strides = array<i32>} : memref<9x784xf32, #tpu.memory_space<vmem>>, vector<1x49xf32>,
    %c8_412 = arith.constant 8 : index
    %c8_413 = arith.constant 8 : index
    %244 = vector.load %arg12[%c8_412, %c8_413] : memref<16x72xf32, #tpu.memory_space<vmem>>, vector<1x49xf32>
    %c6_414 = arith.constant 6 : index
    %c588_415 = arith.constant 588 : index
    %245 = vector.load %arg14[%c6_414, %c588_415] : memref<9x784xf32, #tpu.memory_space<vmem>>, vector<1x49xf32>
    tpu.vector_store %arg14[%c6_414, %c588_415], %244 {strides = array<i32>} : memref<9x784xf32, #tpu.memory_space<vmem>>, vector<1x49xf32>,
    %c10_416 = arith.constant 10 : index
    %c8_417 = arith.constant 8 : index
    %246 = vector.load %arg12[%c10_416, %c8_417] : memref<16x72xf32, #tpu.memory_space<vmem>>, vector<1x49xf32>
    %c6_418 = arith.constant 6 : index
    %c637_419 = arith.constant 637 : index
    %247 = vector.load %arg14[%c6_418, %c637_419] : memref<9x784xf32, #tpu.memory_space<vmem>>, vector<1x49xf32>
    tpu.vector_store %arg14[%c6_418, %c637_419], %246 {strides = array<i32>} : memref<9x784xf32, #tpu.memory_space<vmem>>, vector<1x49xf32>,
    %c0_420 = arith.constant 0 : index
    %c15_421 = arith.constant 15 : index
    %248 = vector.load %arg12[%c0_420, %c15_421] : memref<16x72xf32, #tpu.memory_space<vmem>>, vector<1x49xf32>
    %c6_422 = arith.constant 6 : index
    %c686_423 = arith.constant 686 : index
    %249 = vector.load %arg14[%c6_422, %c686_423] : memref<9x784xf32, #tpu.memory_space<vmem>>, vector<1x49xf32>
    tpu.vector_store %arg14[%c6_422, %c686_423], %248 {strides = array<i32>} : memref<9x784xf32, #tpu.memory_space<vmem>>, vector<1x49xf32>,
    %c2_424 = arith.constant 2 : index
    %c15_425 = arith.constant 15 : index
    %250 = vector.load %arg12[%c2_424, %c15_425] : memref<16x72xf32, #tpu.memory_space<vmem>>, vector<1x49xf32>
    %c6_426 = arith.constant 6 : index
    %c735_427 = arith.constant 735 : index
    %251 = vector.load %arg14[%c6_426, %c735_427] : memref<9x784xf32, #tpu.memory_space<vmem>>, vector<1x49xf32>
    tpu.vector_store %arg14[%c6_426, %c735_427], %250 {strides = array<i32>} : memref<9x784xf32, #tpu.memory_space<vmem>>, vector<1x49xf32>,
    %c4_428 = arith.constant 4 : index
    %c8_429 = arith.constant 8 : index
    %252 = vector.load %arg12[%c4_428, %c8_429] : memref<16x72xf32, #tpu.memory_space<vmem>>, vector<1x49xf32>
    %c7_430 = arith.constant 7 : index
    %c0_431 = arith.constant 0 : index
    %253 = vector.load %arg14[%c7_430, %c0_431] : memref<9x784xf32, #tpu.memory_space<vmem>>, vector<1x49xf32>
    tpu.vector_store %arg14[%c7_430, %c0_431], %252 {strides = array<i32>} : memref<9x784xf32, #tpu.memory_space<vmem>>, vector<1x49xf32>,
    %c6_432 = arith.constant 6 : index
    %c8_433 = arith.constant 8 : index
    %254 = vector.load %arg12[%c6_432, %c8_433] : memref<16x72xf32, #tpu.memory_space<vmem>>, vector<1x49xf32>
    %c7_434 = arith.constant 7 : index
    %c49_435 = arith.constant 49 : index
    %255 = vector.load %arg14[%c7_434, %c49_435] : memref<9x784xf32, #tpu.memory_space<vmem>>, vector<1x49xf32>
    tpu.vector_store %arg14[%c7_434, %c49_435], %254 {strides = array<i32>} : memref<9x784xf32, #tpu.memory_space<vmem>>, vector<1x49xf32>,
    %c12_436 = arith.constant 12 : index
    %c8_437 = arith.constant 8 : index
    %256 = vector.load %arg12[%c12_436, %c8_437] : memref<16x72xf32, #tpu.memory_space<vmem>>, vector<1x49xf32>
    %c7_438 = arith.constant 7 : index
    %c98_439 = arith.constant 98 : index
    %257 = vector.load %arg14[%c7_438, %c98_439] : memref<9x784xf32, #tpu.memory_space<vmem>>, vector<1x49xf32>
    tpu.vector_store %arg14[%c7_438, %c98_439], %256 {strides = array<i32>} : memref<9x784xf32, #tpu.memory_space<vmem>>, vector<1x49xf32>,
    %c14_440 = arith.constant 14 : index
    %c8_441 = arith.constant 8 : index
    %258 = vector.load %arg12[%c14_440, %c8_441] : memref<16x72xf32, #tpu.memory_space<vmem>>, vector<1x49xf32>
    %c7_442 = arith.constant 7 : index
    %c147_443 = arith.constant 147 : index
    %259 = vector.load %arg14[%c7_442, %c147_443] : memref<9x784xf32, #tpu.memory_space<vmem>>, vector<1x49xf32>
    tpu.vector_store %arg14[%c7_442, %c147_443], %258 {strides = array<i32>} : memref<9x784xf32, #tpu.memory_space<vmem>>, vector<1x49xf32>,
    %c5_444 = arith.constant 5 : index
    %c8_445 = arith.constant 8 : index
    %260 = vector.load %arg12[%c5_444, %c8_445] : memref<16x72xf32, #tpu.memory_space<vmem>>, vector<1x49xf32>
    %c7_446 = arith.constant 7 : index
    %c196_447 = arith.constant 196 : index
    %261 = vector.load %arg14[%c7_446, %c196_447] : memref<9x784xf32, #tpu.memory_space<vmem>>, vector<1x49xf32>
    tpu.vector_store %arg14[%c7_446, %c196_447], %260 {strides = array<i32>} : memref<9x784xf32, #tpu.memory_space<vmem>>, vector<1x49xf32>,
    %c7_448 = arith.constant 7 : index
    %c8_449 = arith.constant 8 : index
    %262 = vector.load %arg12[%c7_448, %c8_449] : memref<16x72xf32, #tpu.memory_space<vmem>>, vector<1x49xf32>
    %c7_450 = arith.constant 7 : index
    %c245_451 = arith.constant 245 : index
    %263 = vector.load %arg14[%c7_450, %c245_451] : memref<9x784xf32, #tpu.memory_space<vmem>>, vector<1x49xf32>
    tpu.vector_store %arg14[%c7_450, %c245_451], %262 {strides = array<i32>} : memref<9x784xf32, #tpu.memory_space<vmem>>, vector<1x49xf32>,
    %c13_452 = arith.constant 13 : index
    %c8_453 = arith.constant 8 : index
    %264 = vector.load %arg12[%c13_452, %c8_453] : memref<16x72xf32, #tpu.memory_space<vmem>>, vector<1x49xf32>
    %c7_454 = arith.constant 7 : index
    %c294_455 = arith.constant 294 : index
    %265 = vector.load %arg14[%c7_454, %c294_455] : memref<9x784xf32, #tpu.memory_space<vmem>>, vector<1x49xf32>
    tpu.vector_store %arg14[%c7_454, %c294_455], %264 {strides = array<i32>} : memref<9x784xf32, #tpu.memory_space<vmem>>, vector<1x49xf32>,
    %c15_456 = arith.constant 15 : index
    %c8_457 = arith.constant 8 : index
    %266 = vector.load %arg12[%c15_456, %c8_457] : memref<16x72xf32, #tpu.memory_space<vmem>>, vector<1x49xf32>
    %c7_458 = arith.constant 7 : index
    %c343_459 = arith.constant 343 : index
    %267 = vector.load %arg14[%c7_458, %c343_459] : memref<9x784xf32, #tpu.memory_space<vmem>>, vector<1x49xf32>
    tpu.vector_store %arg14[%c7_458, %c343_459], %266 {strides = array<i32>} : memref<9x784xf32, #tpu.memory_space<vmem>>, vector<1x49xf32>,
    %c8_460 = arith.constant 8 : index
    %c8_461 = arith.constant 8 : index
    %268 = vector.load %arg12[%c8_460, %c8_461] : memref<16x72xf32, #tpu.memory_space<vmem>>, vector<1x49xf32>
    %c7_462 = arith.constant 7 : index
    %c392_463 = arith.constant 392 : index
    %269 = vector.load %arg14[%c7_462, %c392_463] : memref<9x784xf32, #tpu.memory_space<vmem>>, vector<1x49xf32>
    tpu.vector_store %arg14[%c7_462, %c392_463], %268 {strides = array<i32>} : memref<9x784xf32, #tpu.memory_space<vmem>>, vector<1x49xf32>,
    %c10_464 = arith.constant 10 : index
    %c8_465 = arith.constant 8 : index
    %270 = vector.load %arg12[%c10_464, %c8_465] : memref<16x72xf32, #tpu.memory_space<vmem>>, vector<1x49xf32>
    %c7_466 = arith.constant 7 : index
    %c441_467 = arith.constant 441 : index
    %271 = vector.load %arg14[%c7_466, %c441_467] : memref<9x784xf32, #tpu.memory_space<vmem>>, vector<1x49xf32>
    tpu.vector_store %arg14[%c7_466, %c441_467], %270 {strides = array<i32>} : memref<9x784xf32, #tpu.memory_space<vmem>>, vector<1x49xf32>,
    %c0_468 = arith.constant 0 : index
    %c15_469 = arith.constant 15 : index
    %272 = vector.load %arg12[%c0_468, %c15_469] : memref<16x72xf32, #tpu.memory_space<vmem>>, vector<1x49xf32>
    %c7_470 = arith.constant 7 : index
    %c490_471 = arith.constant 490 : index
    %273 = vector.load %arg14[%c7_470, %c490_471] : memref<9x784xf32, #tpu.memory_space<vmem>>, vector<1x49xf32>
    tpu.vector_store %arg14[%c7_470, %c490_471], %272 {strides = array<i32>} : memref<9x784xf32, #tpu.memory_space<vmem>>, vector<1x49xf32>,
    %c2_472 = arith.constant 2 : index
    %c15_473 = arith.constant 15 : index
    %274 = vector.load %arg12[%c2_472, %c15_473] : memref<16x72xf32, #tpu.memory_space<vmem>>, vector<1x49xf32>
    %c7_474 = arith.constant 7 : index
    %c539_475 = arith.constant 539 : index
    %275 = vector.load %arg14[%c7_474, %c539_475] : memref<9x784xf32, #tpu.memory_space<vmem>>, vector<1x49xf32>
    tpu.vector_store %arg14[%c7_474, %c539_475], %274 {strides = array<i32>} : memref<9x784xf32, #tpu.memory_space<vmem>>, vector<1x49xf32>,
    %c9_476 = arith.constant 9 : index
    %c8_477 = arith.constant 8 : index
    %276 = vector.load %arg12[%c9_476, %c8_477] : memref<16x72xf32, #tpu.memory_space<vmem>>, vector<1x49xf32>
    %c7_478 = arith.constant 7 : index
    %c588_479 = arith.constant 588 : index
    %277 = vector.load %arg14[%c7_478, %c588_479] : memref<9x784xf32, #tpu.memory_space<vmem>>, vector<1x49xf32>
    tpu.vector_store %arg14[%c7_478, %c588_479], %276 {strides = array<i32>} : memref<9x784xf32, #tpu.memory_space<vmem>>, vector<1x49xf32>,
    %c11_480 = arith.constant 11 : index
    %c8_481 = arith.constant 8 : index
    %278 = vector.load %arg12[%c11_480, %c8_481] : memref<16x72xf32, #tpu.memory_space<vmem>>, vector<1x49xf32>
    %c7_482 = arith.constant 7 : index
    %c637_483 = arith.constant 637 : index
    %279 = vector.load %arg14[%c7_482, %c637_483] : memref<9x784xf32, #tpu.memory_space<vmem>>, vector<1x49xf32>
    tpu.vector_store %arg14[%c7_482, %c637_483], %278 {strides = array<i32>} : memref<9x784xf32, #tpu.memory_space<vmem>>, vector<1x49xf32>,
    %c1_484 = arith.constant 1 : index
    %c15_485 = arith.constant 15 : index
    %280 = vector.load %arg12[%c1_484, %c15_485] : memref<16x72xf32, #tpu.memory_space<vmem>>, vector<1x49xf32>
    %c7_486 = arith.constant 7 : index
    %c686_487 = arith.constant 686 : index
    %281 = vector.load %arg14[%c7_486, %c686_487] : memref<9x784xf32, #tpu.memory_space<vmem>>, vector<1x49xf32>
    tpu.vector_store %arg14[%c7_486, %c686_487], %280 {strides = array<i32>} : memref<9x784xf32, #tpu.memory_space<vmem>>, vector<1x49xf32>,
    %c3_488 = arith.constant 3 : index
    %c15_489 = arith.constant 15 : index
    %282 = vector.load %arg12[%c3_488, %c15_489] : memref<16x72xf32, #tpu.memory_space<vmem>>, vector<1x49xf32>
    %c7_490 = arith.constant 7 : index
    %c735_491 = arith.constant 735 : index
    %283 = vector.load %arg14[%c7_490, %c735_491] : memref<9x784xf32, #tpu.memory_space<vmem>>, vector<1x49xf32>
    tpu.vector_store %arg14[%c7_490, %c735_491], %282 {strides = array<i32>} : memref<9x784xf32, #tpu.memory_space<vmem>>, vector<1x49xf32>,
    %c5_492 = arith.constant 5 : index
    %c8_493 = arith.constant 8 : index
    %284 = vector.load %arg12[%c5_492, %c8_493] : memref<16x72xf32, #tpu.memory_space<vmem>>, vector<1x49xf32>
    %c8_494 = arith.constant 8 : index
    %c0_495 = arith.constant 0 : index
    %285 = vector.load %arg14[%c8_494, %c0_495] : memref<9x784xf32, #tpu.memory_space<vmem>>, vector<1x49xf32>
    tpu.vector_store %arg14[%c8_494, %c0_495], %284 {strides = array<i32>} : memref<9x784xf32, #tpu.memory_space<vmem>>, vector<1x49xf32>,
    %c7_496 = arith.constant 7 : index
    %c8_497 = arith.constant 8 : index
    %286 = vector.load %arg12[%c7_496, %c8_497] : memref<16x72xf32, #tpu.memory_space<vmem>>, vector<1x49xf32>
    %c8_498 = arith.constant 8 : index
    %c49_499 = arith.constant 49 : index
    %287 = vector.load %arg14[%c8_498, %c49_499] : memref<9x784xf32, #tpu.memory_space<vmem>>, vector<1x49xf32>
    tpu.vector_store %arg14[%c8_498, %c49_499], %286 {strides = array<i32>} : memref<9x784xf32, #tpu.memory_space<vmem>>, vector<1x49xf32>,
    %c13_500 = arith.constant 13 : index
    %c8_501 = arith.constant 8 : index
    %288 = vector.load %arg12[%c13_500, %c8_501] : memref<16x72xf32, #tpu.memory_space<vmem>>, vector<1x49xf32>
    %c8_502 = arith.constant 8 : index
    %c98_503 = arith.constant 98 : index
    %289 = vector.load %arg14[%c8_502, %c98_503] : memref<9x784xf32, #tpu.memory_space<vmem>>, vector<1x49xf32>
    tpu.vector_store %arg14[%c8_502, %c98_503], %288 {strides = array<i32>} : memref<9x784xf32, #tpu.memory_space<vmem>>, vector<1x49xf32>,
    %c15_504 = arith.constant 15 : index
    %c8_505 = arith.constant 8 : index
    %290 = vector.load %arg12[%c15_504, %c8_505] : memref<16x72xf32, #tpu.memory_space<vmem>>, vector<1x49xf32>
    %c8_506 = arith.constant 8 : index
    %c147_507 = arith.constant 147 : index
    %291 = vector.load %arg14[%c8_506, %c147_507] : memref<9x784xf32, #tpu.memory_space<vmem>>, vector<1x49xf32>
    tpu.vector_store %arg14[%c8_506, %c147_507], %290 {strides = array<i32>} : memref<9x784xf32, #tpu.memory_space<vmem>>, vector<1x49xf32>,
    %c6_508 = arith.constant 6 : index
    %c8_509 = arith.constant 8 : index
    %292 = vector.load %arg12[%c6_508, %c8_509] : memref<16x72xf32, #tpu.memory_space<vmem>>, vector<1x49xf32>
    %c8_510 = arith.constant 8 : index
    %c196_511 = arith.constant 196 : index
    %293 = vector.load %arg14[%c8_510, %c196_511] : memref<9x784xf32, #tpu.memory_space<vmem>>, vector<1x49xf32>
    tpu.vector_store %arg14[%c8_510, %c196_511], %292 {strides = array<i32>} : memref<9x784xf32, #tpu.memory_space<vmem>>, vector<1x49xf32>,
    %c4_512 = arith.constant 4 : index
    %c9_513 = arith.constant 9 : index
    %294 = vector.load %arg12[%c4_512, %c9_513] : memref<16x72xf32, #tpu.memory_space<vmem>>, vector<1x49xf32>
    %295 = arith.mulf %294, %1 : vector<1x49xf32>
    %c8_514 = arith.constant 8 : index
    %c245_515 = arith.constant 245 : index
    %296 = vector.load %arg14[%c8_514, %c245_515] : memref<9x784xf32, #tpu.memory_space<vmem>>, vector<1x49xf32>
    tpu.vector_store %arg14[%c8_514, %c245_515], %295 {strides = array<i32>} : memref<9x784xf32, #tpu.memory_space<vmem>>, vector<1x49xf32>,
    %c14_516 = arith.constant 14 : index
    %c8_517 = arith.constant 8 : index
    %297 = vector.load %arg12[%c14_516, %c8_517] : memref<16x72xf32, #tpu.memory_space<vmem>>, vector<1x49xf32>
    %c8_518 = arith.constant 8 : index
    %c294_519 = arith.constant 294 : index
    %298 = vector.load %arg14[%c8_518, %c294_519] : memref<9x784xf32, #tpu.memory_space<vmem>>, vector<1x49xf32>
    tpu.vector_store %arg14[%c8_518, %c294_519], %297 {strides = array<i32>} : memref<9x784xf32, #tpu.memory_space<vmem>>, vector<1x49xf32>,
    %c12_520 = arith.constant 12 : index
    %c9_521 = arith.constant 9 : index
    %299 = vector.load %arg12[%c12_520, %c9_521] : memref<16x72xf32, #tpu.memory_space<vmem>>, vector<1x49xf32>
    %300 = arith.mulf %299, %1 : vector<1x49xf32>
    %c8_522 = arith.constant 8 : index
    %c343_523 = arith.constant 343 : index
    %301 = vector.load %arg14[%c8_522, %c343_523] : memref<9x784xf32, #tpu.memory_space<vmem>>, vector<1x49xf32>
    tpu.vector_store %arg14[%c8_522, %c343_523], %300 {strides = array<i32>} : memref<9x784xf32, #tpu.memory_space<vmem>>, vector<1x49xf32>,
    %c9_524 = arith.constant 9 : index
    %c8_525 = arith.constant 8 : index
    %302 = vector.load %arg12[%c9_524, %c8_525] : memref<16x72xf32, #tpu.memory_space<vmem>>, vector<1x49xf32>
    %c8_526 = arith.constant 8 : index
    %c392_527 = arith.constant 392 : index
    %303 = vector.load %arg14[%c8_526, %c392_527] : memref<9x784xf32, #tpu.memory_space<vmem>>, vector<1x49xf32>
    tpu.vector_store %arg14[%c8_526, %c392_527], %302 {strides = array<i32>} : memref<9x784xf32, #tpu.memory_space<vmem>>, vector<1x49xf32>,
    %c11_528 = arith.constant 11 : index
    %c8_529 = arith.constant 8 : index
    %304 = vector.load %arg12[%c11_528, %c8_529] : memref<16x72xf32, #tpu.memory_space<vmem>>, vector<1x49xf32>
    %c8_530 = arith.constant 8 : index
    %c441_531 = arith.constant 441 : index
    %305 = vector.load %arg14[%c8_530, %c441_531] : memref<9x784xf32, #tpu.memory_space<vmem>>, vector<1x49xf32>
    tpu.vector_store %arg14[%c8_530, %c441_531], %304 {strides = array<i32>} : memref<9x784xf32, #tpu.memory_space<vmem>>, vector<1x49xf32>,
    %c1_532 = arith.constant 1 : index
    %c15_533 = arith.constant 15 : index
    %306 = vector.load %arg12[%c1_532, %c15_533] : memref<16x72xf32, #tpu.memory_space<vmem>>, vector<1x49xf32>
    %c8_534 = arith.constant 8 : index
    %c490_535 = arith.constant 490 : index
    %307 = vector.load %arg14[%c8_534, %c490_535] : memref<9x784xf32, #tpu.memory_space<vmem>>, vector<1x49xf32>
    tpu.vector_store %arg14[%c8_534, %c490_535], %306 {strides = array<i32>} : memref<9x784xf32, #tpu.memory_space<vmem>>, vector<1x49xf32>,
    %c3_536 = arith.constant 3 : index
    %c15_537 = arith.constant 15 : index
    %308 = vector.load %arg12[%c3_536, %c15_537] : memref<16x72xf32, #tpu.memory_space<vmem>>, vector<1x49xf32>
    %c8_538 = arith.constant 8 : index
    %c539_539 = arith.constant 539 : index
    %309 = vector.load %arg14[%c8_538, %c539_539] : memref<9x784xf32, #tpu.memory_space<vmem>>, vector<1x49xf32>
    tpu.vector_store %arg14[%c8_538, %c539_539], %308 {strides = array<i32>} : memref<9x784xf32, #tpu.memory_space<vmem>>, vector<1x49xf32>,
    %c10_540 = arith.constant 10 : index
    %c8_541 = arith.constant 8 : index
    %310 = vector.load %arg12[%c10_540, %c8_541] : memref<16x72xf32, #tpu.memory_space<vmem>>, vector<1x49xf32>
    %c8_542 = arith.constant 8 : index
    %c588_543 = arith.constant 588 : index
    %311 = vector.load %arg14[%c8_542, %c588_543] : memref<9x784xf32, #tpu.memory_space<vmem>>, vector<1x49xf32>
    tpu.vector_store %arg14[%c8_542, %c588_543], %310 {strides = array<i32>} : memref<9x784xf32, #tpu.memory_space<vmem>>, vector<1x49xf32>,
    %c8_544 = arith.constant 8 : index
    %c9_545 = arith.constant 9 : index
    %312 = vector.load %arg12[%c8_544, %c9_545] : memref<16x72xf32, #tpu.memory_space<vmem>>, vector<1x49xf32>
    %313 = arith.mulf %312, %1 : vector<1x49xf32>
    %c8_546 = arith.constant 8 : index
    %c637_547 = arith.constant 637 : index
    %314 = vector.load %arg14[%c8_546, %c637_547] : memref<9x784xf32, #tpu.memory_space<vmem>>, vector<1x49xf32>
    tpu.vector_store %arg14[%c8_546, %c637_547], %313 {strides = array<i32>} : memref<9x784xf32, #tpu.memory_space<vmem>>, vector<1x49xf32>,
    %c2_548 = arith.constant 2 : index
    %c15_549 = arith.constant 15 : index
    %315 = vector.load %arg12[%c2_548, %c15_549] : memref<16x72xf32, #tpu.memory_space<vmem>>, vector<1x49xf32>
    %c8_550 = arith.constant 8 : index
    %c686_551 = arith.constant 686 : index
    %316 = vector.load %arg14[%c8_550, %c686_551] : memref<9x784xf32, #tpu.memory_space<vmem>>, vector<1x49xf32>
    tpu.vector_store %arg14[%c8_550, %c686_551], %315 {strides = array<i32>} : memref<9x784xf32, #tpu.memory_space<vmem>>, vector<1x49xf32>,
    %c0_552 = arith.constant 0 : index
    %c16 = arith.constant 16 : index
    %317 = vector.load %arg12[%c0_552, %c16] : memref<16x72xf32, #tpu.memory_space<vmem>>, vector<1x49xf32>
    %318 = arith.mulf %317, %1 : vector<1x49xf32>
    %c8_553 = arith.constant 8 : index
    %c735_554 = arith.constant 735 : index
    %319 = vector.load %arg14[%c8_553, %c735_554] : memref<9x784xf32, #tpu.memory_space<vmem>>, vector<1x49xf32>
    tpu.vector_store %arg14[%c8_553, %c735_554], %318 {strides = array<i32>} : memref<9x784xf32, #tpu.memory_space<vmem>>, vector<1x49xf32>,
    %c0_555 = arith.constant 0 : index
    %c0_556 = arith.constant 0 : index
    %320 = vector.load %arg3[%c0_555, %c0_556] : memref<16x9xbf16, #tpu.memory_space<vmem>>, vector<16x9xbf16>
    %c0_557 = arith.constant 0 : index
    %c0_558 = arith.constant 0 : index
    %321 = vector.load %arg14[%c0_557, %c0_558] : memref<9x784xf32, #tpu.memory_space<vmem>>, vector<9x784xf32>
    %322 = arith.truncf %321 : vector<9x784xf32> to vector<9x784xbf16>
    %cst_559 = arith.constant dense<0.000000e+00> : vector<16x784xf32>
    %323 = tpu.matmul %320, %322, %cst_559 {dimension_numbers = #tpu.dot_dimension_numbers<[1], [0], [0], [1], [0, 0, 1, 1], [], []>} : vector<16x9xbf16>, vector<9x784xbf16>, vector<16x784xf32> -> vector<16x784xf32>
    %324 = vector.extract_strided_slice %323 {offsets = [0, 0], sizes = [16, 196], strides = [1, 1]} : vector<16x784xf32> to vector<16x196xf32>
    %325 = vector.extract_strided_slice %323 {offsets = [0, 196], sizes = [16, 196], strides = [1, 1]} : vector<16x784xf32> to vector<16x196xf32>
    %326 = arith.maximumf %324, %325 : vector<16x196xf32>
    %327 = vector.extract_strided_slice %323 {offsets = [0, 392], sizes = [16, 196], strides = [1, 1]} : vector<16x784xf32> to vector<16x196xf32>
    %328 = vector.extract_strided_slice %323 {offsets = [0, 588], sizes = [16, 196], strides = [1, 1]} : vector<16x784xf32> to vector<16x196xf32>
    %329 = arith.maximumf %327, %328 : vector<16x196xf32>
    %330 = arith.maximumf %326, %329 : vector<16x196xf32>
    %c0_560 = arith.constant 0 : index
    %c0_561 = arith.constant 0 : index
    %331 = vector.load %arg4[%c0_560, %c0_561] : memref<16x1xf32, #tpu.memory_space<vmem>>, vector<16x1xf32>
    %332 = vector.broadcast %331 : vector<16x1xf32> to vector<16x196xf32>
    %333 = arith.addf %330, %332 : vector<16x196xf32>
    %cst_562 = arith.constant 0.000000e+00 : f32
    %334 = vector.broadcast %cst_562 : f32 to vector<16x196xf32>
    %335 = arith.maximumf %333, %334 : vector<16x196xf32>
    %cst_563 = arith.constant 0.000000e+00 : f32
    %336 = vector.broadcast %cst_563 : f32 to vector<64x72xf32>
    %c0_564 = arith.constant 0 : index
    %c0_565 = arith.constant 0 : index
    %337 = vector.load %arg13[%c0_564, %c0_565] : memref<64x72xf32, #tpu.memory_space<vmem>>, vector<64x72xf32>
    tpu.vector_store %arg13[%c0_564, %c0_565], %336 {strides = array<i32>} : memref<64x72xf32, #tpu.memory_space<vmem>>, vector<64x72xf32>,
    %338 = vector.extract_strided_slice %335 {offsets = [0, 0], sizes = [16, 49], strides = [1, 1]} : vector<16x196xf32> to vector<16x49xf32>
    %c0_566 = arith.constant 0 : index
    %c8_567 = arith.constant 8 : index
    %339 = vector.load %arg13[%c0_566, %c8_567] : memref<64x72xf32, #tpu.memory_space<vmem>>, vector<16x49xf32>
    tpu.vector_store %arg13[%c0_566, %c8_567], %338 {strides = array<i32>} : memref<64x72xf32, #tpu.memory_space<vmem>>, vector<16x49xf32>,
    %340 = vector.extract_strided_slice %335 {offsets = [0, 49], sizes = [16, 49], strides = [1, 1]} : vector<16x196xf32> to vector<16x49xf32>
    %c16_568 = arith.constant 16 : index
    %c8_569 = arith.constant 8 : index
    %341 = vector.load %arg13[%c16_568, %c8_569] : memref<64x72xf32, #tpu.memory_space<vmem>>, vector<16x49xf32>
    tpu.vector_store %arg13[%c16_568, %c8_569], %340 {strides = array<i32>} : memref<64x72xf32, #tpu.memory_space<vmem>>, vector<16x49xf32>,
    %342 = vector.extract_strided_slice %335 {offsets = [0, 98], sizes = [16, 49], strides = [1, 1]} : vector<16x196xf32> to vector<16x49xf32>
    %c32 = arith.constant 32 : index
    %c8_570 = arith.constant 8 : index
    %343 = vector.load %arg13[%c32, %c8_570] : memref<64x72xf32, #tpu.memory_space<vmem>>, vector<16x49xf32>
    tpu.vector_store %arg13[%c32, %c8_570], %342 {strides = array<i32>} : memref<64x72xf32, #tpu.memory_space<vmem>>, vector<16x49xf32>,
    %344 = vector.extract_strided_slice %335 {offsets = [0, 147], sizes = [16, 49], strides = [1, 1]} : vector<16x196xf32> to vector<16x49xf32>
    %c48 = arith.constant 48 : index
    %c8_571 = arith.constant 8 : index
    %345 = vector.load %arg13[%c48, %c8_571] : memref<64x72xf32, #tpu.memory_space<vmem>>, vector<16x49xf32>
    tpu.vector_store %arg13[%c48, %c8_571], %344 {strides = array<i32>} : memref<64x72xf32, #tpu.memory_space<vmem>>, vector<16x49xf32>,
    %c48_572 = arith.constant 48 : index
    %c0_573 = arith.constant 0 : index
    %346 = vector.load %arg13[%c48_572, %c0_573] : memref<64x72xf32, #tpu.memory_space<vmem>>, vector<16x49xf32>
    %347 = vector.broadcast %0 : vector<1x49xf32> to vector<16x49xf32>
    %348 = arith.mulf %346, %347 : vector<16x49xf32>
    %c0_574 = arith.constant 0 : index
    %c0_575 = arith.constant 0 : index
    %349 = vector.load %arg15[%c0_574, %c0_575] : memref<144x196xf32, #tpu.memory_space<vmem>>, vector<16x49xf32>
    tpu.vector_store %arg15[%c0_574, %c0_575], %348 {strides = array<i32>} : memref<144x196xf32, #tpu.memory_space<vmem>>, vector<16x49xf32>,
    %c32_576 = arith.constant 32 : index
    %c1_577 = arith.constant 1 : index
    %350 = vector.load %arg13[%c32_576, %c1_577] : memref<64x72xf32, #tpu.memory_space<vmem>>, vector<16x49xf32>
    %c0_578 = arith.constant 0 : index
    %c49_579 = arith.constant 49 : index
    %351 = vector.load %arg15[%c0_578, %c49_579] : memref<144x196xf32, #tpu.memory_space<vmem>>, vector<16x49xf32>
    tpu.vector_store %arg15[%c0_578, %c49_579], %350 {strides = array<i32>} : memref<144x196xf32, #tpu.memory_space<vmem>>, vector<16x49xf32>,
    %c16_580 = arith.constant 16 : index
    %c7_581 = arith.constant 7 : index
    %352 = vector.load %arg13[%c16_580, %c7_581] : memref<64x72xf32, #tpu.memory_space<vmem>>, vector<16x49xf32>
    %353 = vector.broadcast %0 : vector<1x49xf32> to vector<16x49xf32>
    %354 = arith.mulf %352, %353 : vector<16x49xf32>
    %c0_582 = arith.constant 0 : index
    %c98_583 = arith.constant 98 : index
    %355 = vector.load %arg15[%c0_582, %c98_583] : memref<144x196xf32, #tpu.memory_space<vmem>>, vector<16x49xf32>
    tpu.vector_store %arg15[%c0_582, %c98_583], %354 {strides = array<i32>} : memref<144x196xf32, #tpu.memory_space<vmem>>, vector<16x49xf32>,
    %c0_584 = arith.constant 0 : index
    %c8_585 = arith.constant 8 : index
    %356 = vector.load %arg13[%c0_584, %c8_585] : memref<64x72xf32, #tpu.memory_space<vmem>>, vector<16x49xf32>
    %c0_586 = arith.constant 0 : index
    %c147_587 = arith.constant 147 : index
    %357 = vector.load %arg15[%c0_586, %c147_587] : memref<144x196xf32, #tpu.memory_space<vmem>>, vector<16x49xf32>
    tpu.vector_store %arg15[%c0_586, %c147_587], %356 {strides = array<i32>} : memref<144x196xf32, #tpu.memory_space<vmem>>, vector<16x49xf32>,
    %c32_588 = arith.constant 32 : index
    %c1_589 = arith.constant 1 : index
    %358 = vector.load %arg13[%c32_588, %c1_589] : memref<64x72xf32, #tpu.memory_space<vmem>>, vector<16x49xf32>
    %c16_590 = arith.constant 16 : index
    %c0_591 = arith.constant 0 : index
    %359 = vector.load %arg15[%c16_590, %c0_591] : memref<144x196xf32, #tpu.memory_space<vmem>>, vector<16x49xf32>
    tpu.vector_store %arg15[%c16_590, %c0_591], %358 {strides = array<i32>} : memref<144x196xf32, #tpu.memory_space<vmem>>, vector<16x49xf32>,
    %c48_592 = arith.constant 48 : index
    %c1_593 = arith.constant 1 : index
    %360 = vector.load %arg13[%c48_592, %c1_593] : memref<64x72xf32, #tpu.memory_space<vmem>>, vector<16x49xf32>
    %c16_594 = arith.constant 16 : index
    %c49_595 = arith.constant 49 : index
    %361 = vector.load %arg15[%c16_594, %c49_595] : memref<144x196xf32, #tpu.memory_space<vmem>>, vector<16x49xf32>
    tpu.vector_store %arg15[%c16_594, %c49_595], %360 {strides = array<i32>} : memref<144x196xf32, #tpu.memory_space<vmem>>, vector<16x49xf32>,
    %c0_596 = arith.constant 0 : index
    %c8_597 = arith.constant 8 : index
    %362 = vector.load %arg13[%c0_596, %c8_597] : memref<64x72xf32, #tpu.memory_space<vmem>>, vector<16x49xf32>
    %c16_598 = arith.constant 16 : index
    %c98_599 = arith.constant 98 : index
    %363 = vector.load %arg15[%c16_598, %c98_599] : memref<144x196xf32, #tpu.memory_space<vmem>>, vector<16x49xf32>
    tpu.vector_store %arg15[%c16_598, %c98_599], %362 {strides = array<i32>} : memref<144x196xf32, #tpu.memory_space<vmem>>, vector<16x49xf32>,
    %c16_600 = arith.constant 16 : index
    %c8_601 = arith.constant 8 : index
    %364 = vector.load %arg13[%c16_600, %c8_601] : memref<64x72xf32, #tpu.memory_space<vmem>>, vector<16x49xf32>
    %c16_602 = arith.constant 16 : index
    %c147_603 = arith.constant 147 : index
    %365 = vector.load %arg15[%c16_602, %c147_603] : memref<144x196xf32, #tpu.memory_space<vmem>>, vector<16x49xf32>
    tpu.vector_store %arg15[%c16_602, %c147_603], %364 {strides = array<i32>} : memref<144x196xf32, #tpu.memory_space<vmem>>, vector<16x49xf32>,
    %c48_604 = arith.constant 48 : index
    %c1_605 = arith.constant 1 : index
    %366 = vector.load %arg13[%c48_604, %c1_605] : memref<64x72xf32, #tpu.memory_space<vmem>>, vector<16x49xf32>
    %c32_606 = arith.constant 32 : index
    %c0_607 = arith.constant 0 : index
    %367 = vector.load %arg15[%c32_606, %c0_607] : memref<144x196xf32, #tpu.memory_space<vmem>>, vector<16x49xf32>
    tpu.vector_store %arg15[%c32_606, %c0_607], %366 {strides = array<i32>} : memref<144x196xf32, #tpu.memory_space<vmem>>, vector<16x49xf32>,
    %c32_608 = arith.constant 32 : index
    %c2_609 = arith.constant 2 : index
    %368 = vector.load %arg13[%c32_608, %c2_609] : memref<64x72xf32, #tpu.memory_space<vmem>>, vector<16x49xf32>
    %369 = vector.broadcast %1 : vector<1x49xf32> to vector<16x49xf32>
    %370 = arith.mulf %368, %369 : vector<16x49xf32>
    %c32_610 = arith.constant 32 : index
    %c49_611 = arith.constant 49 : index
    %371 = vector.load %arg15[%c32_610, %c49_611] : memref<144x196xf32, #tpu.memory_space<vmem>>, vector<16x49xf32>
    tpu.vector_store %arg15[%c32_610, %c49_611], %370 {strides = array<i32>} : memref<144x196xf32, #tpu.memory_space<vmem>>, vector<16x49xf32>,
    %c16_612 = arith.constant 16 : index
    %c8_613 = arith.constant 8 : index
    %372 = vector.load %arg13[%c16_612, %c8_613] : memref<64x72xf32, #tpu.memory_space<vmem>>, vector<16x49xf32>
    %c32_614 = arith.constant 32 : index
    %c98_615 = arith.constant 98 : index
    %373 = vector.load %arg15[%c32_614, %c98_615] : memref<144x196xf32, #tpu.memory_space<vmem>>, vector<16x49xf32>
    tpu.vector_store %arg15[%c32_614, %c98_615], %372 {strides = array<i32>} : memref<144x196xf32, #tpu.memory_space<vmem>>, vector<16x49xf32>,
    %c0_616 = arith.constant 0 : index
    %c9_617 = arith.constant 9 : index
    %374 = vector.load %arg13[%c0_616, %c9_617] : memref<64x72xf32, #tpu.memory_space<vmem>>, vector<16x49xf32>
    %375 = vector.broadcast %1 : vector<1x49xf32> to vector<16x49xf32>
    %376 = arith.mulf %374, %375 : vector<16x49xf32>
    %c32_618 = arith.constant 32 : index
    %c147_619 = arith.constant 147 : index
    %377 = vector.load %arg15[%c32_618, %c147_619] : memref<144x196xf32, #tpu.memory_space<vmem>>, vector<16x49xf32>
    tpu.vector_store %arg15[%c32_618, %c147_619], %376 {strides = array<i32>} : memref<144x196xf32, #tpu.memory_space<vmem>>, vector<16x49xf32>,
    %c16_620 = arith.constant 16 : index
    %c7_621 = arith.constant 7 : index
    %378 = vector.load %arg13[%c16_620, %c7_621] : memref<64x72xf32, #tpu.memory_space<vmem>>, vector<16x49xf32>
    %379 = vector.broadcast %0 : vector<1x49xf32> to vector<16x49xf32>
    %380 = arith.mulf %378, %379 : vector<16x49xf32>
    %c48_622 = arith.constant 48 : index
    %c0_623 = arith.constant 0 : index
    %381 = vector.load %arg15[%c48_622, %c0_623] : memref<144x196xf32, #tpu.memory_space<vmem>>, vector<16x49xf32>
    tpu.vector_store %arg15[%c48_622, %c0_623], %380 {strides = array<i32>} : memref<144x196xf32, #tpu.memory_space<vmem>>, vector<16x49xf32>,
    %c0_624 = arith.constant 0 : index
    %c8_625 = arith.constant 8 : index
    %382 = vector.load %arg13[%c0_624, %c8_625] : memref<64x72xf32, #tpu.memory_space<vmem>>, vector<16x49xf32>
    %c48_626 = arith.constant 48 : index
    %c49_627 = arith.constant 49 : index
    %383 = vector.load %arg15[%c48_626, %c49_627] : memref<144x196xf32, #tpu.memory_space<vmem>>, vector<16x49xf32>
    tpu.vector_store %arg15[%c48_626, %c49_627], %382 {strides = array<i32>} : memref<144x196xf32, #tpu.memory_space<vmem>>, vector<16x49xf32>,
    %c48_628 = arith.constant 48 : index
    %c7_629 = arith.constant 7 : index
    %384 = vector.load %arg13[%c48_628, %c7_629] : memref<64x72xf32, #tpu.memory_space<vmem>>, vector<16x49xf32>
    %385 = vector.broadcast %0 : vector<1x49xf32> to vector<16x49xf32>
    %386 = arith.mulf %384, %385 : vector<16x49xf32>
    %c48_630 = arith.constant 48 : index
    %c98_631 = arith.constant 98 : index
    %387 = vector.load %arg15[%c48_630, %c98_631] : memref<144x196xf32, #tpu.memory_space<vmem>>, vector<16x49xf32>
    tpu.vector_store %arg15[%c48_630, %c98_631], %386 {strides = array<i32>} : memref<144x196xf32, #tpu.memory_space<vmem>>, vector<16x49xf32>,
    %c32_632 = arith.constant 32 : index
    %c8_633 = arith.constant 8 : index
    %388 = vector.load %arg13[%c32_632, %c8_633] : memref<64x72xf32, #tpu.memory_space<vmem>>, vector<16x49xf32>
    %c48_634 = arith.constant 48 : index
    %c147_635 = arith.constant 147 : index
    %389 = vector.load %arg15[%c48_634, %c147_635] : memref<144x196xf32, #tpu.memory_space<vmem>>, vector<16x49xf32>
    tpu.vector_store %arg15[%c48_634, %c147_635], %388 {strides = array<i32>} : memref<144x196xf32, #tpu.memory_space<vmem>>, vector<16x49xf32>,
    %c0_636 = arith.constant 0 : index
    %c8_637 = arith.constant 8 : index
    %390 = vector.load %arg13[%c0_636, %c8_637] : memref<64x72xf32, #tpu.memory_space<vmem>>, vector<16x49xf32>
    %c64 = arith.constant 64 : index
    %c0_638 = arith.constant 0 : index
    %391 = vector.load %arg15[%c64, %c0_638] : memref<144x196xf32, #tpu.memory_space<vmem>>, vector<16x49xf32>
    tpu.vector_store %arg15[%c64, %c0_638], %390 {strides = array<i32>} : memref<144x196xf32, #tpu.memory_space<vmem>>, vector<16x49xf32>,
    %c16_639 = arith.constant 16 : index
    %c8_640 = arith.constant 8 : index
    %392 = vector.load %arg13[%c16_639, %c8_640] : memref<64x72xf32, #tpu.memory_space<vmem>>, vector<16x49xf32>
    %c64_641 = arith.constant 64 : index
    %c49_642 = arith.constant 49 : index
    %393 = vector.load %arg15[%c64_641, %c49_642] : memref<144x196xf32, #tpu.memory_space<vmem>>, vector<16x49xf32>
    tpu.vector_store %arg15[%c64_641, %c49_642], %392 {strides = array<i32>} : memref<144x196xf32, #tpu.memory_space<vmem>>, vector<16x49xf32>,
    %c32_643 = arith.constant 32 : index
    %c8_644 = arith.constant 8 : index
    %394 = vector.load %arg13[%c32_643, %c8_644] : memref<64x72xf32, #tpu.memory_space<vmem>>, vector<16x49xf32>
    %c64_645 = arith.constant 64 : index
    %c98_646 = arith.constant 98 : index
    %395 = vector.load %arg15[%c64_645, %c98_646] : memref<144x196xf32, #tpu.memory_space<vmem>>, vector<16x49xf32>
    tpu.vector_store %arg15[%c64_645, %c98_646], %394 {strides = array<i32>} : memref<144x196xf32, #tpu.memory_space<vmem>>, vector<16x49xf32>,
    %c48_647 = arith.constant 48 : index
    %c8_648 = arith.constant 8 : index
    %396 = vector.load %arg13[%c48_647, %c8_648] : memref<64x72xf32, #tpu.memory_space<vmem>>, vector<16x49xf32>
    %c64_649 = arith.constant 64 : index
    %c147_650 = arith.constant 147 : index
    %397 = vector.load %arg15[%c64_649, %c147_650] : memref<144x196xf32, #tpu.memory_space<vmem>>, vector<16x49xf32>
    tpu.vector_store %arg15[%c64_649, %c147_650], %396 {strides = array<i32>} : memref<144x196xf32, #tpu.memory_space<vmem>>, vector<16x49xf32>,
    %c16_651 = arith.constant 16 : index
    %c8_652 = arith.constant 8 : index
    %398 = vector.load %arg13[%c16_651, %c8_652] : memref<64x72xf32, #tpu.memory_space<vmem>>, vector<16x49xf32>
    %c80 = arith.constant 80 : index
    %c0_653 = arith.constant 0 : index
    %399 = vector.load %arg15[%c80, %c0_653] : memref<144x196xf32, #tpu.memory_space<vmem>>, vector<16x49xf32>
    tpu.vector_store %arg15[%c80, %c0_653], %398 {strides = array<i32>} : memref<144x196xf32, #tpu.memory_space<vmem>>, vector<16x49xf32>,
    %c0_654 = arith.constant 0 : index
    %c9_655 = arith.constant 9 : index
    %400 = vector.load %arg13[%c0_654, %c9_655] : memref<64x72xf32, #tpu.memory_space<vmem>>, vector<16x49xf32>
    %401 = vector.broadcast %1 : vector<1x49xf32> to vector<16x49xf32>
    %402 = arith.mulf %400, %401 : vector<16x49xf32>
    %c80_656 = arith.constant 80 : index
    %c49_657 = arith.constant 49 : index
    %403 = vector.load %arg15[%c80_656, %c49_657] : memref<144x196xf32, #tpu.memory_space<vmem>>, vector<16x49xf32>
    tpu.vector_store %arg15[%c80_656, %c49_657], %402 {strides = array<i32>} : memref<144x196xf32, #tpu.memory_space<vmem>>, vector<16x49xf32>,
    %c48_658 = arith.constant 48 : index
    %c8_659 = arith.constant 8 : index
    %404 = vector.load %arg13[%c48_658, %c8_659] : memref<64x72xf32, #tpu.memory_space<vmem>>, vector<16x49xf32>
    %c80_660 = arith.constant 80 : index
    %c98_661 = arith.constant 98 : index
    %405 = vector.load %arg15[%c80_660, %c98_661] : memref<144x196xf32, #tpu.memory_space<vmem>>, vector<16x49xf32>
    tpu.vector_store %arg15[%c80_660, %c98_661], %404 {strides = array<i32>} : memref<144x196xf32, #tpu.memory_space<vmem>>, vector<16x49xf32>,
    %c32_662 = arith.constant 32 : index
    %c9_663 = arith.constant 9 : index
    %406 = vector.load %arg13[%c32_662, %c9_663] : memref<64x72xf32, #tpu.memory_space<vmem>>, vector<16x49xf32>
    %407 = vector.broadcast %1 : vector<1x49xf32> to vector<16x49xf32>
    %408 = arith.mulf %406, %407 : vector<16x49xf32>
    %c80_664 = arith.constant 80 : index
    %c147_665 = arith.constant 147 : index
    %409 = vector.load %arg15[%c80_664, %c147_665] : memref<144x196xf32, #tpu.memory_space<vmem>>, vector<16x49xf32>
    tpu.vector_store %arg15[%c80_664, %c147_665], %408 {strides = array<i32>} : memref<144x196xf32, #tpu.memory_space<vmem>>, vector<16x49xf32>,
    %c48_666 = arith.constant 48 : index
    %c7_667 = arith.constant 7 : index
    %410 = vector.load %arg13[%c48_666, %c7_667] : memref<64x72xf32, #tpu.memory_space<vmem>>, vector<16x49xf32>
    %411 = vector.broadcast %0 : vector<1x49xf32> to vector<16x49xf32>
    %412 = arith.mulf %410, %411 : vector<16x49xf32>
    %c96 = arith.constant 96 : index
    %c0_668 = arith.constant 0 : index
    %413 = vector.load %arg15[%c96, %c0_668] : memref<144x196xf32, #tpu.memory_space<vmem>>, vector<16x49xf32>
    tpu.vector_store %arg15[%c96, %c0_668], %412 {strides = array<i32>} : memref<144x196xf32, #tpu.memory_space<vmem>>, vector<16x49xf32>,
    %c32_669 = arith.constant 32 : index
    %c8_670 = arith.constant 8 : index
    %414 = vector.load %arg13[%c32_669, %c8_670] : memref<64x72xf32, #tpu.memory_space<vmem>>, vector<16x49xf32>
    %c96_671 = arith.constant 96 : index
    %c49_672 = arith.constant 49 : index
    %415 = vector.load %arg15[%c96_671, %c49_672] : memref<144x196xf32, #tpu.memory_space<vmem>>, vector<16x49xf32>
    tpu.vector_store %arg15[%c96_671, %c49_672], %414 {strides = array<i32>} : memref<144x196xf32, #tpu.memory_space<vmem>>, vector<16x49xf32>,
    %c16_673 = arith.constant 16 : index
    %c14_674 = arith.constant 14 : index
    %416 = vector.load %arg13[%c16_673, %c14_674] : memref<64x72xf32, #tpu.memory_space<vmem>>, vector<16x49xf32>
    %417 = vector.broadcast %0 : vector<1x49xf32> to vector<16x49xf32>
    %418 = arith.mulf %416, %417 : vector<16x49xf32>
    %c96_675 = arith.constant 96 : index
    %c98_676 = arith.constant 98 : index
    %419 = vector.load %arg15[%c96_675, %c98_676] : memref<144x196xf32, #tpu.memory_space<vmem>>, vector<16x49xf32>
    tpu.vector_store %arg15[%c96_675, %c98_676], %418 {strides = array<i32>} : memref<144x196xf32, #tpu.memory_space<vmem>>, vector<16x49xf32>,
    %c0_677 = arith.constant 0 : index
    %c15_678 = arith.constant 15 : index
    %420 = vector.load %arg13[%c0_677, %c15_678] : memref<64x72xf32, #tpu.memory_space<vmem>>, vector<16x49xf32>
    %c96_679 = arith.constant 96 : index
    %c147_680 = arith.constant 147 : index
    %421 = vector.load %arg15[%c96_679, %c147_680] : memref<144x196xf32, #tpu.memory_space<vmem>>, vector<16x49xf32>
    tpu.vector_store %arg15[%c96_679, %c147_680], %420 {strides = array<i32>} : memref<144x196xf32, #tpu.memory_space<vmem>>, vector<16x49xf32>,
    %c32_681 = arith.constant 32 : index
    %c8_682 = arith.constant 8 : index
    %422 = vector.load %arg13[%c32_681, %c8_682] : memref<64x72xf32, #tpu.memory_space<vmem>>, vector<16x49xf32>
    %c112 = arith.constant 112 : index
    %c0_683 = arith.constant 0 : index
    %423 = vector.load %arg15[%c112, %c0_683] : memref<144x196xf32, #tpu.memory_space<vmem>>, vector<16x49xf32>
    tpu.vector_store %arg15[%c112, %c0_683], %422 {strides = array<i32>} : memref<144x196xf32, #tpu.memory_space<vmem>>, vector<16x49xf32>,
    %c48_684 = arith.constant 48 : index
    %c8_685 = arith.constant 8 : index
    %424 = vector.load %arg13[%c48_684, %c8_685] : memref<64x72xf32, #tpu.memory_space<vmem>>, vector<16x49xf32>
    %c112_686 = arith.constant 112 : index
    %c49_687 = arith.constant 49 : index
    %425 = vector.load %arg15[%c112_686, %c49_687] : memref<144x196xf32, #tpu.memory_space<vmem>>, vector<16x49xf32>
    tpu.vector_store %arg15[%c112_686, %c49_687], %424 {strides = array<i32>} : memref<144x196xf32, #tpu.memory_space<vmem>>, vector<16x49xf32>,
    %c0_688 = arith.constant 0 : index
    %c15_689 = arith.constant 15 : index
    %426 = vector.load %arg13[%c0_688, %c15_689] : memref<64x72xf32, #tpu.memory_space<vmem>>, vector<16x49xf32>
    %c112_690 = arith.constant 112 : index
    %c98_691 = arith.constant 98 : index
    %427 = vector.load %arg15[%c112_690, %c98_691] : memref<144x196xf32, #tpu.memory_space<vmem>>, vector<16x49xf32>
    tpu.vector_store %arg15[%c112_690, %c98_691], %426 {strides = array<i32>} : memref<144x196xf32, #tpu.memory_space<vmem>>, vector<16x49xf32>,
    %c16_692 = arith.constant 16 : index
    %c15_693 = arith.constant 15 : index
    %428 = vector.load %arg13[%c16_692, %c15_693] : memref<64x72xf32, #tpu.memory_space<vmem>>, vector<16x49xf32>
    %c112_694 = arith.constant 112 : index
    %c147_695 = arith.constant 147 : index
    %429 = vector.load %arg15[%c112_694, %c147_695] : memref<144x196xf32, #tpu.memory_space<vmem>>, vector<16x49xf32>
    tpu.vector_store %arg15[%c112_694, %c147_695], %428 {strides = array<i32>} : memref<144x196xf32, #tpu.memory_space<vmem>>, vector<16x49xf32>,
    %c48_696 = arith.constant 48 : index
    %c8_697 = arith.constant 8 : index
    %430 = vector.load %arg13[%c48_696, %c8_697] : memref<64x72xf32, #tpu.memory_space<vmem>>, vector<16x49xf32>
    %c128 = arith.constant 128 : index
    %c0_698 = arith.constant 0 : index
    %431 = vector.load %arg15[%c128, %c0_698] : memref<144x196xf32, #tpu.memory_space<vmem>>, vector<16x49xf32>
    tpu.vector_store %arg15[%c128, %c0_698], %430 {strides = array<i32>} : memref<144x196xf32, #tpu.memory_space<vmem>>, vector<16x49xf32>,
    %c32_699 = arith.constant 32 : index
    %c9_700 = arith.constant 9 : index
    %432 = vector.load %arg13[%c32_699, %c9_700] : memref<64x72xf32, #tpu.memory_space<vmem>>, vector<16x49xf32>
    %433 = vector.broadcast %1 : vector<1x49xf32> to vector<16x49xf32>
    %434 = arith.mulf %432, %433 : vector<16x49xf32>
    %c128_701 = arith.constant 128 : index
    %c49_702 = arith.constant 49 : index
    %435 = vector.load %arg15[%c128_701, %c49_702] : memref<144x196xf32, #tpu.memory_space<vmem>>, vector<16x49xf32>
    tpu.vector_store %arg15[%c128_701, %c49_702], %434 {strides = array<i32>} : memref<144x196xf32, #tpu.memory_space<vmem>>, vector<16x49xf32>,
    %c16_703 = arith.constant 16 : index
    %c15_704 = arith.constant 15 : index
    %436 = vector.load %arg13[%c16_703, %c15_704] : memref<64x72xf32, #tpu.memory_space<vmem>>, vector<16x49xf32>
    %c128_705 = arith.constant 128 : index
    %c98_706 = arith.constant 98 : index
    %437 = vector.load %arg15[%c128_705, %c98_706] : memref<144x196xf32, #tpu.memory_space<vmem>>, vector<16x49xf32>
    tpu.vector_store %arg15[%c128_705, %c98_706], %436 {strides = array<i32>} : memref<144x196xf32, #tpu.memory_space<vmem>>, vector<16x49xf32>,
    %c0_707 = arith.constant 0 : index
    %c16_708 = arith.constant 16 : index
    %438 = vector.load %arg13[%c0_707, %c16_708] : memref<64x72xf32, #tpu.memory_space<vmem>>, vector<16x49xf32>
    %439 = vector.broadcast %1 : vector<1x49xf32> to vector<16x49xf32>
    %440 = arith.mulf %438, %439 : vector<16x49xf32>
    %c128_709 = arith.constant 128 : index
    %c147_710 = arith.constant 147 : index
    %441 = vector.load %arg15[%c128_709, %c147_710] : memref<144x196xf32, #tpu.memory_space<vmem>>, vector<16x49xf32>
    tpu.vector_store %arg15[%c128_709, %c147_710], %440 {strides = array<i32>} : memref<144x196xf32, #tpu.memory_space<vmem>>, vector<16x49xf32>,
    %c0_711 = arith.constant 0 : index
    %c0_712 = arith.constant 0 : index
    %442 = vector.load %arg5[%c0_711, %c0_712] : memref<32x144xbf16, #tpu.memory_space<vmem>>, vector<32x144xbf16>
    %c0_713 = arith.constant 0 : index
    %c0_714 = arith.constant 0 : index
    %443 = vector.load %arg15[%c0_713, %c0_714] : memref<144x196xf32, #tpu.memory_space<vmem>>, vector<144x196xf32>
    %444 = arith.truncf %443 : vector<144x196xf32> to vector<144x196xbf16>
    %cst_715 = arith.constant dense<0.000000e+00> : vector<32x196xf32>
    %445 = tpu.matmul %442, %444, %cst_715 {dimension_numbers = #tpu.dot_dimension_numbers<[1], [0], [0], [1], [0, 0, 1, 1], [], []>} : vector<32x144xbf16>, vector<144x196xbf16>, vector<32x196xf32> -> vector<32x196xf32>
    %446 = vector.extract_strided_slice %445 {offsets = [0, 0], sizes = [32, 49], strides = [1, 1]} : vector<32x196xf32> to vector<32x49xf32>
    %447 = vector.extract_strided_slice %445 {offsets = [0, 49], sizes = [32, 49], strides = [1, 1]} : vector<32x196xf32> to vector<32x49xf32>
    %448 = arith.maximumf %446, %447 : vector<32x49xf32>
    %449 = vector.extract_strided_slice %445 {offsets = [0, 98], sizes = [32, 49], strides = [1, 1]} : vector<32x196xf32> to vector<32x49xf32>
    %450 = vector.extract_strided_slice %445 {offsets = [0, 147], sizes = [32, 49], strides = [1, 1]} : vector<32x196xf32> to vector<32x49xf32>
    %451 = arith.maximumf %449, %450 : vector<32x49xf32>
    %452 = arith.maximumf %448, %451 : vector<32x49xf32>
    %c0_716 = arith.constant 0 : index
    %c0_717 = arith.constant 0 : index
    %453 = vector.load %arg6[%c0_716, %c0_717] : memref<32x1xf32, #tpu.memory_space<vmem>>, vector<32x1xf32>
    %454 = vector.broadcast %453 : vector<32x1xf32> to vector<32x49xf32>
    %455 = arith.addf %452, %454 : vector<32x49xf32>
    %cst_718 = arith.constant 0.000000e+00 : f32
    %456 = vector.broadcast %cst_718 : f32 to vector<32x49xf32>
    %457 = arith.maximumf %455, %456 : vector<32x49xf32>
    %cst_719 = arith.constant 0.000000e+00 : f32
    %458 = vector.broadcast %cst_719 : f32 to vector<8x1568xf32>
    %c0_720 = arith.constant 0 : index
    %c0_721 = arith.constant 0 : index
    %459 = vector.load %arg16[%c0_720, %c0_721] : memref<8x1568xf32, #tpu.memory_space<vmem>>, vector<8x1568xf32>
    tpu.vector_store %arg16[%c0_720, %c0_721], %458 {strides = array<i32>} : memref<8x1568xf32, #tpu.memory_space<vmem>>, vector<8x1568xf32>,
    %460 = vector.extract_strided_slice %457 {offsets = [0, 0], sizes = [1, 49], strides = [1, 1]} : vector<32x49xf32> to vector<1x49xf32>
    %c0_722 = arith.constant 0 : index
    %c0_723 = arith.constant 0 : index
    %461 = vector.load %arg16[%c0_722, %c0_723] : memref<8x1568xf32, #tpu.memory_space<vmem>>, vector<1x49xf32>
    tpu.vector_store %arg16[%c0_722, %c0_723], %460 {strides = array<i32>} : memref<8x1568xf32, #tpu.memory_space<vmem>>, vector<1x49xf32>,
    %462 = vector.extract_strided_slice %457 {offsets = [1, 0], sizes = [1, 49], strides = [1, 1]} : vector<32x49xf32> to vector<1x49xf32>
    %c0_724 = arith.constant 0 : index
    %c49_725 = arith.constant 49 : index
    %463 = vector.load %arg16[%c0_724, %c49_725] : memref<8x1568xf32, #tpu.memory_space<vmem>>, vector<1x49xf32>
    tpu.vector_store %arg16[%c0_724, %c49_725], %462 {strides = array<i32>} : memref<8x1568xf32, #tpu.memory_space<vmem>>, vector<1x49xf32>,
    %464 = vector.extract_strided_slice %457 {offsets = [2, 0], sizes = [1, 49], strides = [1, 1]} : vector<32x49xf32> to vector<1x49xf32>
    %c0_726 = arith.constant 0 : index
    %c98_727 = arith.constant 98 : index
    %465 = vector.load %arg16[%c0_726, %c98_727] : memref<8x1568xf32, #tpu.memory_space<vmem>>, vector<1x49xf32>
    tpu.vector_store %arg16[%c0_726, %c98_727], %464 {strides = array<i32>} : memref<8x1568xf32, #tpu.memory_space<vmem>>, vector<1x49xf32>,
    %466 = vector.extract_strided_slice %457 {offsets = [3, 0], sizes = [1, 49], strides = [1, 1]} : vector<32x49xf32> to vector<1x49xf32>
    %c0_728 = arith.constant 0 : index
    %c147_729 = arith.constant 147 : index
    %467 = vector.load %arg16[%c0_728, %c147_729] : memref<8x1568xf32, #tpu.memory_space<vmem>>, vector<1x49xf32>
    tpu.vector_store %arg16[%c0_728, %c147_729], %466 {strides = array<i32>} : memref<8x1568xf32, #tpu.memory_space<vmem>>, vector<1x49xf32>,
    %468 = vector.extract_strided_slice %457 {offsets = [4, 0], sizes = [1, 49], strides = [1, 1]} : vector<32x49xf32> to vector<1x49xf32>
    %c0_730 = arith.constant 0 : index
    %c196_731 = arith.constant 196 : index
    %469 = vector.load %arg16[%c0_730, %c196_731] : memref<8x1568xf32, #tpu.memory_space<vmem>>, vector<1x49xf32>
    tpu.vector_store %arg16[%c0_730, %c196_731], %468 {strides = array<i32>} : memref<8x1568xf32, #tpu.memory_space<vmem>>, vector<1x49xf32>,
    %470 = vector.extract_strided_slice %457 {offsets = [5, 0], sizes = [1, 49], strides = [1, 1]} : vector<32x49xf32> to vector<1x49xf32>
    %c0_732 = arith.constant 0 : index
    %c245_733 = arith.constant 245 : index
    %471 = vector.load %arg16[%c0_732, %c245_733] : memref<8x1568xf32, #tpu.memory_space<vmem>>, vector<1x49xf32>
    tpu.vector_store %arg16[%c0_732, %c245_733], %470 {strides = array<i32>} : memref<8x1568xf32, #tpu.memory_space<vmem>>, vector<1x49xf32>,
    %472 = vector.extract_strided_slice %457 {offsets = [6, 0], sizes = [1, 49], strides = [1, 1]} : vector<32x49xf32> to vector<1x49xf32>
    %c0_734 = arith.constant 0 : index
    %c294_735 = arith.constant 294 : index
    %473 = vector.load %arg16[%c0_734, %c294_735] : memref<8x1568xf32, #tpu.memory_space<vmem>>, vector<1x49xf32>
    tpu.vector_store %arg16[%c0_734, %c294_735], %472 {strides = array<i32>} : memref<8x1568xf32, #tpu.memory_space<vmem>>, vector<1x49xf32>,
    %474 = vector.extract_strided_slice %457 {offsets = [7, 0], sizes = [1, 49], strides = [1, 1]} : vector<32x49xf32> to vector<1x49xf32>
    %c0_736 = arith.constant 0 : index
    %c343_737 = arith.constant 343 : index
    %475 = vector.load %arg16[%c0_736, %c343_737] : memref<8x1568xf32, #tpu.memory_space<vmem>>, vector<1x49xf32>
    tpu.vector_store %arg16[%c0_736, %c343_737], %474 {strides = array<i32>} : memref<8x1568xf32, #tpu.memory_space<vmem>>, vector<1x49xf32>,
    %476 = vector.extract_strided_slice %457 {offsets = [8, 0], sizes = [1, 49], strides = [1, 1]} : vector<32x49xf32> to vector<1x49xf32>
    %c0_738 = arith.constant 0 : index
    %c392_739 = arith.constant 392 : index
    %477 = vector.load %arg16[%c0_738, %c392_739] : memref<8x1568xf32, #tpu.memory_space<vmem>>, vector<1x49xf32>
    tpu.vector_store %arg16[%c0_738, %c392_739], %476 {strides = array<i32>} : memref<8x1568xf32, #tpu.memory_space<vmem>>, vector<1x49xf32>,
    %478 = vector.extract_strided_slice %457 {offsets = [9, 0], sizes = [1, 49], strides = [1, 1]} : vector<32x49xf32> to vector<1x49xf32>
    %c0_740 = arith.constant 0 : index
    %c441_741 = arith.constant 441 : index
    %479 = vector.load %arg16[%c0_740, %c441_741] : memref<8x1568xf32, #tpu.memory_space<vmem>>, vector<1x49xf32>
    tpu.vector_store %arg16[%c0_740, %c441_741], %478 {strides = array<i32>} : memref<8x1568xf32, #tpu.memory_space<vmem>>, vector<1x49xf32>,
    %480 = vector.extract_strided_slice %457 {offsets = [10, 0], sizes = [1, 49], strides = [1, 1]} : vector<32x49xf32> to vector<1x49xf32>
    %c0_742 = arith.constant 0 : index
    %c490_743 = arith.constant 490 : index
    %481 = vector.load %arg16[%c0_742, %c490_743] : memref<8x1568xf32, #tpu.memory_space<vmem>>, vector<1x49xf32>
    tpu.vector_store %arg16[%c0_742, %c490_743], %480 {strides = array<i32>} : memref<8x1568xf32, #tpu.memory_space<vmem>>, vector<1x49xf32>,
    %482 = vector.extract_strided_slice %457 {offsets = [11, 0], sizes = [1, 49], strides = [1, 1]} : vector<32x49xf32> to vector<1x49xf32>
    %c0_744 = arith.constant 0 : index
    %c539_745 = arith.constant 539 : index
    %483 = vector.load %arg16[%c0_744, %c539_745] : memref<8x1568xf32, #tpu.memory_space<vmem>>, vector<1x49xf32>
    tpu.vector_store %arg16[%c0_744, %c539_745], %482 {strides = array<i32>} : memref<8x1568xf32, #tpu.memory_space<vmem>>, vector<1x49xf32>,
    %484 = vector.extract_strided_slice %457 {offsets = [12, 0], sizes = [1, 49], strides = [1, 1]} : vector<32x49xf32> to vector<1x49xf32>
    %c0_746 = arith.constant 0 : index
    %c588_747 = arith.constant 588 : index
    %485 = vector.load %arg16[%c0_746, %c588_747] : memref<8x1568xf32, #tpu.memory_space<vmem>>, vector<1x49xf32>
    tpu.vector_store %arg16[%c0_746, %c588_747], %484 {strides = array<i32>} : memref<8x1568xf32, #tpu.memory_space<vmem>>, vector<1x49xf32>,
    %486 = vector.extract_strided_slice %457 {offsets = [13, 0], sizes = [1, 49], strides = [1, 1]} : vector<32x49xf32> to vector<1x49xf32>
    %c0_748 = arith.constant 0 : index
    %c637_749 = arith.constant 637 : index
    %487 = vector.load %arg16[%c0_748, %c637_749] : memref<8x1568xf32, #tpu.memory_space<vmem>>, vector<1x49xf32>
    tpu.vector_store %arg16[%c0_748, %c637_749], %486 {strides = array<i32>} : memref<8x1568xf32, #tpu.memory_space<vmem>>, vector<1x49xf32>,
    %488 = vector.extract_strided_slice %457 {offsets = [14, 0], sizes = [1, 49], strides = [1, 1]} : vector<32x49xf32> to vector<1x49xf32>
    %c0_750 = arith.constant 0 : index
    %c686_751 = arith.constant 686 : index
    %489 = vector.load %arg16[%c0_750, %c686_751] : memref<8x1568xf32, #tpu.memory_space<vmem>>, vector<1x49xf32>
    tpu.vector_store %arg16[%c0_750, %c686_751], %488 {strides = array<i32>} : memref<8x1568xf32, #tpu.memory_space<vmem>>, vector<1x49xf32>,
    %490 = vector.extract_strided_slice %457 {offsets = [15, 0], sizes = [1, 49], strides = [1, 1]} : vector<32x49xf32> to vector<1x49xf32>
    %c0_752 = arith.constant 0 : index
    %c735_753 = arith.constant 735 : index
    %491 = vector.load %arg16[%c0_752, %c735_753] : memref<8x1568xf32, #tpu.memory_space<vmem>>, vector<1x49xf32>
    tpu.vector_store %arg16[%c0_752, %c735_753], %490 {strides = array<i32>} : memref<8x1568xf32, #tpu.memory_space<vmem>>, vector<1x49xf32>,
    %492 = vector.extract_strided_slice %457 {offsets = [16, 0], sizes = [1, 49], strides = [1, 1]} : vector<32x49xf32> to vector<1x49xf32>
    %c0_754 = arith.constant 0 : index
    %c784 = arith.constant 784 : index
    %493 = vector.load %arg16[%c0_754, %c784] : memref<8x1568xf32, #tpu.memory_space<vmem>>, vector<1x49xf32>
    tpu.vector_store %arg16[%c0_754, %c784], %492 {strides = array<i32>} : memref<8x1568xf32, #tpu.memory_space<vmem>>, vector<1x49xf32>,
    %494 = vector.extract_strided_slice %457 {offsets = [17, 0], sizes = [1, 49], strides = [1, 1]} : vector<32x49xf32> to vector<1x49xf32>
    %c0_755 = arith.constant 0 : index
    %c833 = arith.constant 833 : index
    %495 = vector.load %arg16[%c0_755, %c833] : memref<8x1568xf32, #tpu.memory_space<vmem>>, vector<1x49xf32>
    tpu.vector_store %arg16[%c0_755, %c833], %494 {strides = array<i32>} : memref<8x1568xf32, #tpu.memory_space<vmem>>, vector<1x49xf32>,
    %496 = vector.extract_strided_slice %457 {offsets = [18, 0], sizes = [1, 49], strides = [1, 1]} : vector<32x49xf32> to vector<1x49xf32>
    %c0_756 = arith.constant 0 : index
    %c882 = arith.constant 882 : index
    %497 = vector.load %arg16[%c0_756, %c882] : memref<8x1568xf32, #tpu.memory_space<vmem>>, vector<1x49xf32>
    tpu.vector_store %arg16[%c0_756, %c882], %496 {strides = array<i32>} : memref<8x1568xf32, #tpu.memory_space<vmem>>, vector<1x49xf32>,
    %498 = vector.extract_strided_slice %457 {offsets = [19, 0], sizes = [1, 49], strides = [1, 1]} : vector<32x49xf32> to vector<1x49xf32>
    %c0_757 = arith.constant 0 : index
    %c931 = arith.constant 931 : index
    %499 = vector.load %arg16[%c0_757, %c931] : memref<8x1568xf32, #tpu.memory_space<vmem>>, vector<1x49xf32>
    tpu.vector_store %arg16[%c0_757, %c931], %498 {strides = array<i32>} : memref<8x1568xf32, #tpu.memory_space<vmem>>, vector<1x49xf32>,
    %500 = vector.extract_strided_slice %457 {offsets = [20, 0], sizes = [1, 49], strides = [1, 1]} : vector<32x49xf32> to vector<1x49xf32>
    %c0_758 = arith.constant 0 : index
    %c980 = arith.constant 980 : index
    %501 = vector.load %arg16[%c0_758, %c980] : memref<8x1568xf32, #tpu.memory_space<vmem>>, vector<1x49xf32>
    tpu.vector_store %arg16[%c0_758, %c980], %500 {strides = array<i32>} : memref<8x1568xf32, #tpu.memory_space<vmem>>, vector<1x49xf32>,
    %502 = vector.extract_strided_slice %457 {offsets = [21, 0], sizes = [1, 49], strides = [1, 1]} : vector<32x49xf32> to vector<1x49xf32>
    %c0_759 = arith.constant 0 : index
    %c1029 = arith.constant 1029 : index
    %503 = vector.load %arg16[%c0_759, %c1029] : memref<8x1568xf32, #tpu.memory_space<vmem>>, vector<1x49xf32>
    tpu.vector_store %arg16[%c0_759, %c1029], %502 {strides = array<i32>} : memref<8x1568xf32, #tpu.memory_space<vmem>>, vector<1x49xf32>,
    %504 = vector.extract_strided_slice %457 {offsets = [22, 0], sizes = [1, 49], strides = [1, 1]} : vector<32x49xf32> to vector<1x49xf32>
    %c0_760 = arith.constant 0 : index
    %c1078 = arith.constant 1078 : index
    %505 = vector.load %arg16[%c0_760, %c1078] : memref<8x1568xf32, #tpu.memory_space<vmem>>, vector<1x49xf32>
    tpu.vector_store %arg16[%c0_760, %c1078], %504 {strides = array<i32>} : memref<8x1568xf32, #tpu.memory_space<vmem>>, vector<1x49xf32>,
    %506 = vector.extract_strided_slice %457 {offsets = [23, 0], sizes = [1, 49], strides = [1, 1]} : vector<32x49xf32> to vector<1x49xf32>
    %c0_761 = arith.constant 0 : index
    %c1127 = arith.constant 1127 : index
    %507 = vector.load %arg16[%c0_761, %c1127] : memref<8x1568xf32, #tpu.memory_space<vmem>>, vector<1x49xf32>
    tpu.vector_store %arg16[%c0_761, %c1127], %506 {strides = array<i32>} : memref<8x1568xf32, #tpu.memory_space<vmem>>, vector<1x49xf32>,
    %508 = vector.extract_strided_slice %457 {offsets = [24, 0], sizes = [1, 49], strides = [1, 1]} : vector<32x49xf32> to vector<1x49xf32>
    %c0_762 = arith.constant 0 : index
    %c1176 = arith.constant 1176 : index
    %509 = vector.load %arg16[%c0_762, %c1176] : memref<8x1568xf32, #tpu.memory_space<vmem>>, vector<1x49xf32>
    tpu.vector_store %arg16[%c0_762, %c1176], %508 {strides = array<i32>} : memref<8x1568xf32, #tpu.memory_space<vmem>>, vector<1x49xf32>,
    %510 = vector.extract_strided_slice %457 {offsets = [25, 0], sizes = [1, 49], strides = [1, 1]} : vector<32x49xf32> to vector<1x49xf32>
    %c0_763 = arith.constant 0 : index
    %c1225 = arith.constant 1225 : index
    %511 = vector.load %arg16[%c0_763, %c1225] : memref<8x1568xf32, #tpu.memory_space<vmem>>, vector<1x49xf32>
    tpu.vector_store %arg16[%c0_763, %c1225], %510 {strides = array<i32>} : memref<8x1568xf32, #tpu.memory_space<vmem>>, vector<1x49xf32>,
    %512 = vector.extract_strided_slice %457 {offsets = [26, 0], sizes = [1, 49], strides = [1, 1]} : vector<32x49xf32> to vector<1x49xf32>
    %c0_764 = arith.constant 0 : index
    %c1274 = arith.constant 1274 : index
    %513 = vector.load %arg16[%c0_764, %c1274] : memref<8x1568xf32, #tpu.memory_space<vmem>>, vector<1x49xf32>
    tpu.vector_store %arg16[%c0_764, %c1274], %512 {strides = array<i32>} : memref<8x1568xf32, #tpu.memory_space<vmem>>, vector<1x49xf32>,
    %514 = vector.extract_strided_slice %457 {offsets = [27, 0], sizes = [1, 49], strides = [1, 1]} : vector<32x49xf32> to vector<1x49xf32>
    %c0_765 = arith.constant 0 : index
    %c1323 = arith.constant 1323 : index
    %515 = vector.load %arg16[%c0_765, %c1323] : memref<8x1568xf32, #tpu.memory_space<vmem>>, vector<1x49xf32>
    tpu.vector_store %arg16[%c0_765, %c1323], %514 {strides = array<i32>} : memref<8x1568xf32, #tpu.memory_space<vmem>>, vector<1x49xf32>,
    %516 = vector.extract_strided_slice %457 {offsets = [28, 0], sizes = [1, 49], strides = [1, 1]} : vector<32x49xf32> to vector<1x49xf32>
    %c0_766 = arith.constant 0 : index
    %c1372 = arith.constant 1372 : index
    %517 = vector.load %arg16[%c0_766, %c1372] : memref<8x1568xf32, #tpu.memory_space<vmem>>, vector<1x49xf32>
    tpu.vector_store %arg16[%c0_766, %c1372], %516 {strides = array<i32>} : memref<8x1568xf32, #tpu.memory_space<vmem>>, vector<1x49xf32>,
    %518 = vector.extract_strided_slice %457 {offsets = [29, 0], sizes = [1, 49], strides = [1, 1]} : vector<32x49xf32> to vector<1x49xf32>
    %c0_767 = arith.constant 0 : index
    %c1421 = arith.constant 1421 : index
    %519 = vector.load %arg16[%c0_767, %c1421] : memref<8x1568xf32, #tpu.memory_space<vmem>>, vector<1x49xf32>
    tpu.vector_store %arg16[%c0_767, %c1421], %518 {strides = array<i32>} : memref<8x1568xf32, #tpu.memory_space<vmem>>, vector<1x49xf32>,
    %520 = vector.extract_strided_slice %457 {offsets = [30, 0], sizes = [1, 49], strides = [1, 1]} : vector<32x49xf32> to vector<1x49xf32>
    %c0_768 = arith.constant 0 : index
    %c1470 = arith.constant 1470 : index
    %521 = vector.load %arg16[%c0_768, %c1470] : memref<8x1568xf32, #tpu.memory_space<vmem>>, vector<1x49xf32>
    tpu.vector_store %arg16[%c0_768, %c1470], %520 {strides = array<i32>} : memref<8x1568xf32, #tpu.memory_space<vmem>>, vector<1x49xf32>,
    %522 = vector.extract_strided_slice %457 {offsets = [31, 0], sizes = [1, 49], strides = [1, 1]} : vector<32x49xf32> to vector<1x49xf32>
    %c0_769 = arith.constant 0 : index
    %c1519 = arith.constant 1519 : index
    %523 = vector.load %arg16[%c0_769, %c1519] : memref<8x1568xf32, #tpu.memory_space<vmem>>, vector<1x49xf32>
    tpu.vector_store %arg16[%c0_769, %c1519], %522 {strides = array<i32>} : memref<8x1568xf32, #tpu.memory_space<vmem>>, vector<1x49xf32>,
    %c0_770 = arith.constant 0 : index
    %c0_771 = arith.constant 0 : index
    %524 = vector.load %arg16[%c0_770, %c0_771] : memref<8x1568xf32, #tpu.memory_space<vmem>>, vector<8x1568xf32>
    %525 = arith.truncf %524 : vector<8x1568xf32> to vector<8x1568xbf16>
    %c0_772 = arith.constant 0 : index
    %c0_773 = arith.constant 0 : index
    %526 = vector.load %arg7[%c0_772, %c0_773] : memref<1568x32xbf16, #tpu.memory_space<vmem>>, vector<1568x32xbf16>
    %cst_774 = arith.constant dense<0.000000e+00> : vector<8x32xf32>
    %527 = tpu.matmul %525, %526, %cst_774 {dimension_numbers = #tpu.dot_dimension_numbers<[1], [0], [0], [1], [0, 0, 1, 1], [], []>} : vector<8x1568xbf16>, vector<1568x32xbf16>, vector<8x32xf32> -> vector<8x32xf32>
    %c0_775 = arith.constant 0 : index
    %c0_776 = arith.constant 0 : index
    %528 = vector.load %arg8[%c0_775, %c0_776] : memref<1x32xf32, #tpu.memory_space<vmem>>, vector<1x32xf32>
    %529 = vector.broadcast %528 : vector<1x32xf32> to vector<8x32xf32>
    %530 = arith.addf %527, %529 : vector<8x32xf32>
    %cst_777 = arith.constant 0.000000e+00 : f32
    %531 = vector.broadcast %cst_777 : f32 to vector<8x32xf32>
    %532 = arith.maximumf %530, %531 : vector<8x32xf32>
    %c0_778 = arith.constant 0 : index
    %c0_779 = arith.constant 0 : index
    %533 = vector.load %arg9[%c0_778, %c0_779] : memref<32x10xf32, #tpu.memory_space<vmem>>, vector<32x10xf32>
    %cst_780 = arith.constant dense<0.000000e+00> : vector<8x10xf32>
    %534 = tpu.matmul %532, %533, %cst_780 {dimension_numbers = #tpu.dot_dimension_numbers<[1], [0], [0], [1], [0, 0, 1, 1], [], []>} : vector<8x32xf32>, vector<32x10xf32>, vector<8x10xf32> -> vector<8x10xf32>
    %c0_781 = arith.constant 0 : index
    %c0_782 = arith.constant 0 : index
    %535 = vector.load %arg10[%c0_781, %c0_782] : memref<1x10xf32, #tpu.memory_space<vmem>>, vector<1x10xf32>
    %536 = vector.broadcast %535 : vector<1x10xf32> to vector<8x10xf32>
    %537 = arith.addf %534, %536 : vector<8x10xf32>
    %538 = vector.extract_strided_slice %537 {offsets = [0, 0], sizes = [1, 10], strides = [1, 1]} : vector<8x10xf32> to vector<1x10xf32>
    %c0_783 = arith.constant 0 : index
    %c0_784 = arith.constant 0 : index
    %c0_785 = arith.constant 0 : index
    %539 = vector.load %arg11[%c0_783, %c0_784, %c0_785] : memref<1x1x10xf32, #tpu.memory_space<vmem>>, vector<1x1x10xf32>
    %540 = vector.shape_cast %539 : vector<1x1x10xf32> to vector<1x10xf32>
    %541 = vector.shape_cast %538 : vector<1x10xf32> to vector<1x1x10xf32>
    tpu.vector_store %arg11[%c0_783, %c0_784, %c0_785], %541 {strides = array<i32>} : memref<1x1x10xf32, #tpu.memory_space<vmem>>, vector<1x1x10xf32>,
    return
  }
  func.func @transform_0(%arg0: i32) -> (i32, i32, i32) {
    %c0_i32 = arith.constant 0 : i32
    %c0_i32_0 = arith.constant 0 : i32
    %c0_i32_1 = arith.constant 0 : i32
    return %arg0, %c0_i32, %c0_i32_0 : i32, i32, i32
  }
  func.func @transform_1(%arg0: i32) -> (i32, i32) {
    %c0_i32 = arith.constant 0 : i32
    %c0_i32_0 = arith.constant 0 : i32
    %c0_i32_1 = arith.constant 0 : i32
    return %c0_i32, %c0_i32_0 : i32, i32
  }
  func.func @transform_2(%arg0: i32) -> (i32, i32) {
    %c0_i32 = arith.constant 0 : i32
    %c0_i32_0 = arith.constant 0 : i32
    %c0_i32_1 = arith.constant 0 : i32
    return %c0_i32, %c0_i32_0 : i32, i32
  }
  func.func @transform_3(%arg0: i32) -> (i32, i32) {
    %c0_i32 = arith.constant 0 : i32
    %c0_i32_0 = arith.constant 0 : i32
    %c0_i32_1 = arith.constant 0 : i32
    return %c0_i32, %c0_i32_0 : i32, i32
  }
  func.func @transform_4(%arg0: i32) -> (i32, i32) {
    %c0_i32 = arith.constant 0 : i32
    %c0_i32_0 = arith.constant 0 : i32
    %c0_i32_1 = arith.constant 0 : i32
    return %c0_i32, %c0_i32_0 : i32, i32
  }
  func.func @transform_5(%arg0: i32) -> (i32, i32) {
    %c0_i32 = arith.constant 0 : i32
    %c0_i32_0 = arith.constant 0 : i32
    %c0_i32_1 = arith.constant 0 : i32
    return %c0_i32, %c0_i32_0 : i32, i32
  }
  func.func @transform_6(%arg0: i32) -> (i32, i32) {
    %c0_i32 = arith.constant 0 : i32
    %c0_i32_0 = arith.constant 0 : i32
    %c0_i32_1 = arith.constant 0 : i32
    return %c0_i32, %c0_i32_0 : i32, i32
  }
  func.func @transform_7(%arg0: i32) -> (i32, i32) {
    %c0_i32 = arith.constant 0 : i32
    %c0_i32_0 = arith.constant 0 : i32
    %c0_i32_1 = arith.constant 0 : i32
    return %c0_i32, %c0_i32_0 : i32, i32
  }
  func.func @transform_8(%arg0: i32) -> (i32, i32) {
    %c0_i32 = arith.constant 0 : i32
    %c0_i32_0 = arith.constant 0 : i32
    %c0_i32_1 = arith.constant 0 : i32
    return %c0_i32, %c0_i32_0 : i32, i32
  }
  func.func @transform_9(%arg0: i32) -> (i32, i32) {
    %c0_i32 = arith.constant 0 : i32
    %c0_i32_0 = arith.constant 0 : i32
    %c0_i32_1 = arith.constant 0 : i32
    return %c0_i32, %c0_i32_0 : i32, i32
  }
  func.func @transform_10(%arg0: i32) -> (i32, i32, i32) {
    %c0_i32 = arith.constant 0 : i32
    %c0_i32_0 = arith.constant 0 : i32
    %c0_i32_1 = arith.constant 0 : i32
    return %arg0, %c0_i32, %c0_i32_0 : i32, i32, i32
  }
}

</mosaic_0001>

<llo_original>
// kernel: cnn_forward.1
$region0: #{cnn_forward.1}
  #allocation0 [shape = 'u32[]', space=smem, size = 0x4, offset = 0x4, fixed_abs, tag = 'smem constant byte address 0x4 - core index']
  #allocation1 [shape = 'u32[144,128]{1,0:T(1,128)}', space=vmem, size = 0x12000, scoped, tag = 'internal scratch']
  #allocation2 [shape = 'f32[16,72]{1,0:T(8,128)}', space=vmem, size = 0x2000, scoped, tag = 'scratch operand']
  #allocation3 [shape = 'f32[64,72]{1,0:T(8,128)}', space=vmem, size = 0x8000, scoped, tag = 'scratch operand']
  #allocation4 [shape = 'f32[9,784]{1,0:T(8,128)}', space=vmem, size = 0xe000, scoped, tag = 'scratch operand']
  #allocation5 [shape = 'f32[144,196]{1,0:T(8,128)}', space=vmem, size = 0x24000, scoped, tag = 'scratch operand']
  #allocation6 [shape = 'f32[8,1568]{1,0:T(8,128)}', space=vmem, size = 0xd000, scoped, tag = 'scratch operand']
  %s0 = inlined_call_operand.vmem [shape: bf16[2,16,49], index: 0, kind: input, shape index: {}]
  %s1 = inlined_call_operand.vmem [shape: f32[2,49], index: 1, kind: input, shape index: {}]
  %s2 = inlined_call_operand.vmem [shape: bf16[16,9], index: 2, kind: input, shape index: {}]
  %s3 = inlined_call_operand.vmem [shape: f32[16,1], index: 3, kind: input, shape index: {}]
  %s4 = inlined_call_operand.vmem [shape: bf16[32,144], index: 4, kind: input, shape index: {}]
  %s5 = inlined_call_operand.vmem [shape: f32[32,1], index: 5, kind: input, shape index: {}]
  %s6 = inlined_call_operand.vmem [shape: bf16[1568,32], index: 6, kind: input, shape index: {}]
  %s7 = inlined_call_operand.vmem [shape: f32[1,32], index: 7, kind: input, shape index: {}]
  %s8 = inlined_call_operand.vmem [shape: f32[32,10], index: 8, kind: input, shape index: {}]
  %s9 = inlined_call_operand.vmem [shape: f32[1,10], index: 9, kind: input, shape index: {}]
  %s10 = inlined_call_operand.hbm [shape: f32[2,1,10], index: 10, kind: output, shape index: {}]
  %s11 = sld [smem:[#allocation0]]
  $region73: #{cnn_forward.1} parent=0
    _
  %s13 = ssub.s32 1, %s11
  %s14 = scalar_select 0, %s13, %s11
  $region1: #{cnn_forward.1} parent=0
    #allocation7 [shape = 'u8[1024]{0}', space=vmem, size = 0x400, scoped, tag = 'output window, operand 0']
    #allocation8 [shape = 's32[2]{0}', space=sflag, size = 0x8, scoped, tag = 'scoped memory for cnn_forward.1']
    %15 = vsyncpa [#allocation8], 0
    %s16 = scalar_lea.sflag [#allocation8], 1
    %17 = vsyncpa %s16, 0
    loop: start=0, step=1, limit=4
    $region2: #{cnn_forward.1} parent=1 // loop_pre_header
      _
    $region3: #{cnn_forward.1} parent=1 // loop_header
      %s19 = sphi 0, %s23
      %p20 = scmp.ge.s32.totalorder %s19, 4
      %s29 = sphi 0, %s31
      %s32 = sphi 0, %s29
      %s33 = sphi 0, %s32
      %s49 = sphi 0, %s33
      %s53 = sphi 0, %s53
      %s55 = sphi 0, %s53
      %s56 = sphi 0, %s55
      %s70 = sphi 0, %s56
      %s74 = sphi 0, %s74
      %s76 = sphi 0, %s74
      %s77 = sphi 0, %s76
      %s91 = sphi 0, %s77
      %s95 = sphi 0, %s95
      %s97 = sphi 0, %s95
      %s98 = sphi 0, %s97
      %s112 = sphi 0, %s98
      %s116 = sphi 0, %s116
      %s118 = sphi 0, %s116
      %s119 = sphi 0, %s118
      %s133 = sphi 0, %s119
      %s137 = sphi 0, %s137
      %s139 = sphi 0, %s137
      %s140 = sphi 0, %s139
      %s154 = sphi 0, %s140
      %s158 = sphi 0, %s158
      %s160 = sphi 0, %s158
      %s161 = sphi 0, %s160
      %s175 = sphi 0, %s161
      %s179 = sphi 0, %s179
      %s181 = sphi 0, %s179
      %s182 = sphi 0, %s181
      %s196 = sphi 0, %s182
      %s200 = sphi 0, %s200
      %s202 = sphi 0, %s200
      %s203 = sphi 0, %s202
      %s217 = sphi 0, %s203
      %s221 = sphi 0, %s221
      %s223 = sphi 0, %s221
      %s224 = sphi 0, %s223
      %s238 = sphi 0, %s224
      %s244 = sphi 0, %s246
      %s247 = sphi 0, %s244
      %s248 = sphi 0, %s247
      %s264 = sphi 0, %s248
    $region4: #{cnn_forward.1} parent=1 // loop_header_branch
      %22 = sbr.rel (%p20) target = $region8
    $region5: #{cnn_forward.1} parent=1 // loop_body
      %s24 = ssub.s32 %s19, 1
      %s25 = ssub.s32 %s19, 2
      %s26 = sadd.s32 %s19, 1
      %s27 = ssub.s32 %s19, %s26
      %p28 = scmp.eq.s32.totalorder %s27, 0
      %s30 = sadd.s32 %s29, 1
      %s31 = scalar_select %p28, %s29, %s30
      %p34 = pneg %p28
      %p35 = scmp.eq.s32.totalorder %s19, 1
      %p36 = por %p34, %p35
      %p37 = scmp.ne.s32.totalorder %s29, %s32
      %p38 = scmp.eq.s32.totalorder %s19, 0
      %p39 = por %p37, %p38
      %p40 = scmp.ne.s32.totalorder %s29, %s32
      %p41 = scmp.eq.s32.totalorder %s24, 1
      %p42 = por %p40, %p41
      %p43 = scmp.ne.s32.totalorder %s32, %s33
      %p44 = scmp.eq.s32.totalorder %s24, 0
      %p45 = por %p43, %p44
      %p46 = scmp.ne.s32.totalorder %s32, %s33
      %p47 = scmp.eq.s32.totalorder %s25, 1
      %p48 = por %p46, %p47
      %p50 = scmp.ne.s32.totalorder %s33, %s49
      %p51 = scmp.eq.s32.totalorder %s25, 0
      %p52 = por %p50, %p51
      %s54 = sadd.s32 %s53, 1
      %p57 = scmp.eq.s32.totalorder %s19, 1
      %p58 = scmp.ne.s32.totalorder %s53, %s55
      %p59 = scmp.eq.s32.totalorder %s19, 0
      %p60 = por %p58, %p59
      %p61 = scmp.ne.s32.totalorder %s53, %s55
      %p62 = scmp.eq.s32.totalorder %s24, 1
      %p63 = por %p61, %p62
      %p64 = scmp.ne.s32.totalorder %s55, %s56
      %p65 = scmp.eq.s32.totalorder %s24, 0
      %p66 = por %p64, %p65
      %p67 = scmp.ne.s32.totalorder %s55, %s56
      %p68 = scmp.eq.s32.totalorder %s25, 1
      %p69 = por %p67, %p68
      %p71 = scmp.ne.s32.totalorder %s56, %s70
      %p72 = scmp.eq.s32.totalorder %s25, 0
      %p73 = por %p71, %p72
      %s75 = sadd.s32 %s74, 1
      %p78 = scmp.eq.s32.totalorder %s19, 1
      %p79 = scmp.ne.s32.totalorder %s74, %s76
      %p80 = scmp.eq.s32.totalorder %s19, 0
      %p81 = por %p79, %p80
      %p82 = scmp.ne.s32.totalorder %s74, %s76
      %p83 = scmp.eq.s32.totalorder %s24, 1
      %p84 = por %p82, %p83
      %p85 = scmp.ne.s32.totalorder %s76, %s77
      %p86 = scmp.eq.s32.totalorder %s24, 0
      %p87 = por %p85, %p86
      %p88 = scmp.ne.s32.totalorder %s76, %s77
      %p89 = scmp.eq.s32.totalorder %s25, 1
      %p90 = por %p88, %p89
      %p92 = scmp.ne.s32.totalorder %s77, %s91
      %p93 = scmp.eq.s32.totalorder %s25, 0
      %p94 = por %p92, %p93
      %s96 = sadd.s32 %s95, 1
      %p99 = scmp.eq.s32.totalorder %s19, 1
      %p100 = scmp.ne.s32.totalorder %s95, %s97
      %p101 = scmp.eq.s32.totalorder %s19, 0
      %p102 = por %p100, %p101
      %p103 = scmp.ne.s32.totalorder %s95, %s97
      %p104 = scmp.eq.s32.totalorder %s24, 1
      %p105 = por %p103, %p104
      %p106 = scmp.ne.s32.totalorder %s97, %s98
      %p107 = scmp.eq.s32.totalorder %s24, 0
      %p108 = por %p106, %p107
      %p109 = scmp.ne.s32.totalorder %s97, %s98
      %p110 = scmp.eq.s32.totalorder %s25, 1
      %p111 = por %p109, %p110
      %p113 = scmp.ne.s32.totalorder %s98, %s112
      %p114 = scmp.eq.s32.totalorder %s25, 0
      %p115 = por %p113, %p114
      %s117 = sadd.s32 %s116, 1
      %p120 = scmp.eq.s32.totalorder %s19, 1
      %p121 = scmp.ne.s32.totalorder %s116, %s118
      %p122 = scmp.eq.s32.totalorder %s19, 0
      %p123 = por %p121, %p122
      %p124 = scmp.ne.s32.totalorder %s116, %s118
      %p125 = scmp.eq.s32.totalorder %s24, 1
      %p126 = por %p124, %p125
      %p127 = scmp.ne.s32.totalorder %s118, %s119
      %p128 = scmp.eq.s32.totalorder %s24, 0
      %p129 = por %p127, %p128
      %p130 = scmp.ne.s32.totalorder %s118, %s119
      %p131 = scmp.eq.s32.totalorder %s25, 1
      %p132 = por %p130, %p131
      %p134 = scmp.ne.s32.totalorder %s119, %s133
      %p135 = scmp.eq.s32.totalorder %s25, 0
      %p136 = por %p134, %p135
      %s138 = sadd.s32 %s137, 1
      %p141 = scmp.eq.s32.totalorder %s19, 1
      %p142 = scmp.ne.s32.totalorder %s137, %s139
      %p143 = scmp.eq.s32.totalorder %s19, 0
      %p144 = por %p142, %p143
      %p145 = scmp.ne.s32.totalorder %s137, %s139
      %p146 = scmp.eq.s32.totalorder %s24, 1
      %p147 = por %p145, %p146
      %p148 = scmp.ne.s32.totalorder %s139, %s140
      %p149 = scmp.eq.s32.totalorder %s24, 0
      %p150 = por %p148, %p149
      %p151 = scmp.ne.s32.totalorder %s139, %s140
      %p152 = scmp.eq.s32.totalorder %s25, 1
      %p153 = por %p151, %p152
      %p155 = scmp.ne.s32.totalorder %s140, %s154
      %p156 = scmp.eq.s32.totalorder %s25, 0
      %p157 = por %p155, %p156
      %s159 = sadd.s32 %s158, 1
      %p162 = scmp.eq.s32.totalorder %s19, 1
      %p163 = scmp.ne.s32.totalorder %s158, %s160
      %p164 = scmp.eq.s32.totalorder %s19, 0
      %p165 = por %p163, %p164
      %p166 = scmp.ne.s32.totalorder %s158, %s160
      %p167 = scmp.eq.s32.totalorder %s24, 1
      %p168 = por %p166, %p167
      %p169 = scmp.ne.s32.totalorder %s160, %s161
      %p170 = scmp.eq.s32.totalorder %s24, 0
      %p171 = por %p169, %p170
      %p172 = scmp.ne.s32.totalorder %s160, %s161
      %p173 = scmp.eq.s32.totalorder %s25, 1
      %p174 = por %p172, %p173
      %p176 = scmp.ne.s32.totalorder %s161, %s175
      %p177 = scmp.eq.s32.totalorder %s25, 0
      %p178 = por %p176, %p177
      %s180 = sadd.s32 %s179, 1
      %p183 = scmp.eq.s32.totalorder %s19, 1
      %p184 = scmp.ne.s32.totalorder %s179, %s181
      %p185 = scmp.eq.s32.totalorder %s19, 0
      %p186 = por %p184, %p185
      %p187 = scmp.ne.s32.totalorder %s179, %s181
      %p188 = scmp.eq.s32.totalorder %s24, 1
      %p189 = por %p187, %p188
      %p190 = scmp.ne.s32.totalorder %s181, %s182
      %p191 = scmp.eq.s32.totalorder %s24, 0
      %p192 = por %p190, %p191
      %p193 = scmp.ne.s32.totalorder %s181, %s182
      %p194 = scmp.eq.s32.totalorder %s25, 1
      %p195 = por %p193, %p194
      %p197 = scmp.ne.s32.totalorder %s182, %s196
      %p198 = scmp.eq.s32.totalorder %s25, 0
      %p199 = por %p197, %p198
      %s201 = sadd.s32 %s200, 1
      %p204 = scmp.eq.s32.totalorder %s19, 1
      %p205 = scmp.ne.s32.totalorder %s200, %s202
      %p206 = scmp.eq.s32.totalorder %s19, 0
      %p207 = por %p205, %p206
      %p208 = scmp.ne.s32.totalorder %s200, %s202
      %p209 = scmp.eq.s32.totalorder %s24, 1
      %p210 = por %p208, %p209
      %p211 = scmp.ne.s32.totalorder %s202, %s203
      %p212 = scmp.eq.s32.totalorder %s24, 0
      %p213 = por %p211, %p212
      %p214 = scmp.ne.s32.totalorder %s202, %s203
      %p215 = scmp.eq.s32.totalorder %s25, 1
      %p216 = por %p214, %p215
      %p218 = scmp.ne.s32.totalorder %s203, %s217
      %p219 = scmp.eq.s32.totalorder %s25, 0
      %p220 = por %p218, %p219
      %s222 = sadd.s32 %s221, 1
      %p225 = scmp.eq.s32.totalorder %s19, 1
      %p226 = scmp.ne.s32.totalorder %s221, %s223
      %p227 = scmp.eq.s32.totalorder %s19, 0
      %p228 = por %p226, %p227
      %p229 = scmp.ne.s32.totalorder %s221, %s223
      %p230 = scmp.eq.s32.totalorder %s24, 1
      %p231 = por %p229, %p230
      %p232 = scmp.ne.s32.totalorder %s223, %s224
      %p233 = scmp.eq.s32.totalorder %s24, 0
      %p234 = por %p232, %p233
      %p235 = scmp.ne.s32.totalorder %s223, %s224
      %p236 = scmp.eq.s32.totalorder %s25, 1
      %p237 = por %p235, %p236
      %p239 = scmp.ne.s32.totalorder %s224, %s238
      %p240 = scmp.eq.s32.totalorder %s25, 0
      %p241 = por %p239, %p240
      %s242 = ssub.s32 %s19, %s26
      %p243 = scmp.eq.s32.totalorder %s242, 0
      %s245 = sadd.s32 %s244, 1
      %s246 = scalar_select %p243, %s244, %s245
      %p249 = pneg %p243
      %p250 = scmp.eq.s32.totalorder %s19, 1
      %p251 = por %p249, %p250
      %p252 = scmp.ne.s32.totalorder %s244, %s247
      %p253 = scmp.eq.s32.totalorder %s19, 0
      %p254 = por %p252, %p253
      %p255 = scmp.ne.s32.totalorder %s244, %s247
      %p256 = scmp.eq.s32.totalorder %s24, 1
      %p257 = por %p255, %p256
      %p258 = scmp.ne.s32.totalorder %s247, %s248
      %p259 = scmp.eq.s32.totalorder %s24, 0
      %p260 = por %p258, %p259
      %p261 = scmp.ne.s32.totalorder %s247, %s248
      %p262 = scmp.eq.s32.totalorder %s25, 1
      %p263 = por %p261, %p262
      %p265 = scmp.ne.s32.totalorder %s248, %s264
      %p266 = scmp.eq.s32.totalorder %s25, 0
      %p267 = por %p265, %p266
      %p268 = scmp.le.s32.totalorder 1, %s19
      %p269 = scmp.lt.s32.totalorder %s19, 3
      %p270 = pnand %p268, %p269
      %p271 = pneg %p270
      // Predicated region
      $region9: #{cnn_forward.1} parent=5 // pred_check
        _
      $region10: #{cnn_forward.1} parent=5 // pred_check_branch
        %273 = sbr.rel (%p270) target = $region12
      $region11: #{cnn_forward.1} parent=5 // pred_region
        %s274 = ssub.s32 %s19, 1
        // Predicated region
        $region13: #{cnn_forward.1} parent=11 // pred_check
          %p275 = pneg %p66
        $region14: #{cnn_forward.1} parent=11 // pred_check_branch
          %277 = sbr.rel (%p275) target = $region16
        $region15: #{cnn_forward.1} parent=11 // pred_region
          _
        $region16: #{cnn_forward.1} parent=11 // pred_fallthru
          _
        // Predicated region
        $region17: #{cnn_forward.1} parent=11 // pred_check
          %p278 = pneg %p87
        $region18: #{cnn_forward.1} parent=11 // pred_check_branch
          %280 = sbr.rel (%p278) target = $region20
        $region19: #{cnn_forward.1} parent=11 // pred_region
          _
        $region20: #{cnn_forward.1} parent=11 // pred_fallthru
          _
        // Predicated region
        $region21: #{cnn_forward.1} parent=11 // pred_check
          %p281 = pneg %p108
        $region22: #{cnn_forward.1} parent=11 // pred_check_branch
          %283 = sbr.rel (%p281) target = $region24
        $region23: #{cnn_forward.1} parent=11 // pred_region
          _
        $region24: #{cnn_forward.1} parent=11 // pred_fallthru
          _
        // Predicated region
        $region25: #{cnn_forward.1} parent=11 // pred_check
          %p284 = pneg %p129
        $region26: #{cnn_forward.1} parent=11 // pred_check_branch
          %286 = sbr.rel (%p284) target = $region28
        $region27: #{cnn_forward.1} parent=11 // pred_region
          _
        $region28: #{cnn_forward.1} parent=11 // pred_fallthru
          _
        // Predicated region
        $region29: #{cnn_forward.1} parent=11 // pred_check
          %p287 = pneg %p150
        $region30: #{cnn_forward.1} parent=11 // pred_check_branch
          %289 = sbr.rel (%p287) target = $region32
        $region31: #{cnn_forward.1} parent=11 // pred_region
          _
        $region32: #{cnn_forward.1} parent=11 // pred_fallthru
          _
        // Predicated region
        $region33: #{cnn_forward.1} parent=11 // pred_check
          %p290 = pneg %p171
        $region34: #{cnn_forward.1} parent=11 // pred_check_branch
          %292 = sbr.rel (%p290) target = $region36
        $region35: #{cnn_forward.1} parent=11 // pred_region
          _
        $region36: #{cnn_forward.1} parent=11 // pred_fallthru
          _
        // Predicated region
        $region37: #{cnn_forward.1} parent=11 // pred_check
          %p293 = pneg %p192
        $region38: #{cnn_forward.1} parent=11 // pred_check_branch
          %295 = sbr.rel (%p293) target = $region40
        $region39: #{cnn_forward.1} parent=11 // pred_region
          _
        $region40: #{cnn_forward.1} parent=11 // pred_fallthru
          _
        // Predicated region
        $region41: #{cnn_forward.1} parent=11 // pred_check
          %p296 = pneg %p213
        $region42: #{cnn_forward.1} parent=11 // pred_check_branch
          %298 = sbr.rel (%p296) target = $region44
        $region43: #{cnn_forward.1} parent=11 // pred_region
          _
        $region44: #{cnn_forward.1} parent=11 // pred_fallthru
          _
        // Predicated region
        $region45: #{cnn_forward.1} parent=11 // pred_check
          %p299 = pneg %p234
        $region46: #{cnn_forward.1} parent=11 // pred_check_branch
          %301 = sbr.rel (%p299) target = $region48
        $region47: #{cnn_forward.1} parent=11 // pred_region
          _
        $region48: #{cnn_forward.1} parent=11 // pred_fallthru
          _
      $region12: #{cnn_forward.1} parent=5 // pred_fallthru
        _
      %p302 = scmp.lt.s32.totalorder %s19, 2
      // Predicated region
      $region49: #{cnn_forward.1} parent=5 // pred_check
        %p303 = pneg %p302
      $region50: #{cnn_forward.1} parent=5 // pred_check_branch
        %305 = sbr.rel (%p303) target = $region52
      $region51: #{cnn_forward.1} parent=5 // pred_region
        // Predicated region
        $region53: #{cnn_forward.1} parent=51 // pred_check
          %p306 = pneg %p39
        $region54: #{cnn_forward.1} parent=51 // pred_check_branch
          %308 = sbr.rel (%p306) target = $region56
        $region55: #{cnn_forward.1} parent=51 // pred_region
          %p309 = scmp.lt.s32.totalorder %s19, 1
          %s310 = scalar_select %p309, %s19, 1
          %s311 = smul.addr %s310, 2
          %s312 = smul.addr %s311, 4
          %s313 = scalar_lea.vmem %s0, %s312
        $region56: #{cnn_forward.1} parent=51 // pred_fallthru
          _
      $region52: #{cnn_forward.1} parent=5 // pred_fallthru
        _
      %p314 = scmp.le.s32.totalorder 1, %s19
      %p315 = scmp.lt.s32.totalorder %s19, 3
      %p316 = pnand %p314, %p315
      %p317 = pneg %p316
      // Predicated region
      $region57: #{cnn_forward.1} parent=5 // pred_check
        _
      $region58: #{cnn_forward.1} parent=5 // pred_check_branch
        %319 = sbr.rel (%p316) target = $region60
      $region59: #{cnn_forward.1} parent=5 // pred_region
        %s320 = ssub.s32 %s19, 1
        %p321 = scmp.lt.s32.totalorder %s24, 1
        %s322 = scalar_select %p321, %s24, 1
        %s323 = smul.addr %s322, 2
        %s324 = smul.addr %s323, 4
        %s325 = scalar_lea.vmem %s0, %s324
        %p326 = pneg %p45
        %p327 = pneg %p42
        %p328 = pneg %p66
        %p329 = pneg %p63
        %p330 = pneg %p87
        %p331 = pneg %p84
        %p332 = pneg %p108
        %p333 = pneg %p105
        %p334 = pneg %p129
        %p335 = pneg %p126
        %p336 = pneg %p150
        %p337 = pneg %p147
        %p338 = pneg %p171
        %p339 = pneg %p168
        %p340 = pneg %p192
        %p341 = pneg %p189
        %p342 = pneg %p213
        %p343 = pneg %p210
        %p344 = pneg %p234
        %p345 = pneg %p231
        %p346 = pneg %p260
        %p347 = pneg %p257
        %s348 = sand.u32 %s247, 1
        %s349 = scalar_lea.sflag [#allocation8], %s348
        %s350 = sand.u32 %s247, 1
        %s351 = scalar_lea.vmem [#allocation7], %s350
        %p352 = scmp.lt.s32.totalorder %s24, 1
        %s353 = scalar_select %p352, %s24, 1
        %s354 = smul.addr %s353, 2
        %s355 = smul.addr %s354, 4
        %s356 = scalar_lea.vmem %s0, %s355
        %v358 = vld [vmem:[%s1] sm:$0x1]
        %v359 = vld [vmem:[%s1 + $0x1] sm:$0x1]
        %vm360 = vcmask 588800
        %361 = vst.msk [vmem:[#allocation2] sm:$0xff] %vm360, 0.0
        %362 = vst.msk [vmem:[#allocation2 + $0x8] sm:$0xff] %vm360, 0.0
        %v363 = vld [vmem:[%s356] sm:$0xf]
        %v364 = vld [vmem:[%s356 + $0x4] sm:$0xf]
        %v365 = vunpack.c.l.bf16 %v363
        %v366 = vunpack.c.l.bf16 %v364
        %369 = vrot.lane.b32.xlu0 %v365, 8
        %v370 = vpop.permute.xlu0 %369
        %371 = vrot.lane.b32.xlu0 %v366, 8
        %v372 = vpop.permute.xlu0 %371
        %vm375 = vcmask 465984
        %376 = vst.msk [vmem:[#allocation2] sm:$0xff] %vm375, %v370
        %377 = vst.msk [vmem:[#allocation2 + $0x8] sm:$0xff] %vm375, %v372
        %v378 = vld [vmem:[#allocation2 + $0xf] sm:$0x1]
        %v379 = vmul.f32 %v378, %v358
        %vm380 = vcmask 393216
        %381 = vst.msk [vmem:[#allocation4] sm:$0x1] %vm380, %v379
        %v382 = vld [vmem:[#allocation2 + $0xd] sm:$0x1]
        %384 = vrot.lane.b32.xlu0 %v382, 48
        %v385 = vpop.permute.xlu0 %384
        %vm387 = vcmask 795016
        %388 = vst.msk [vmem:[#allocation4] sm:$0x1] %vm387, %v385
        %v389 = vld [vmem:[#allocation2 + $0x7] sm:$0x1]
        %391 = vrot.lane.b32.xlu0 %v358, 7
        %v392 = vpop.permute.xlu0 %391
        %v394 = vmul.f32 %v389, %v392
        %396 = vrot.lane.b32.xlu0 %v394, 91
        %v397 = vpop.permute.xlu0 %396
        %vm399 = vcmask 1041168
        %400 = vst.msk [vmem:[#allocation4] sm:$0x1] %vm399, %v397
        %vm401 = vcmask 147456
        %402 = vst.msk [vmem:[#allocation4 + $0x8] sm:$0x1] %vm401, %v397
        %v403 = vld [vmem:[#allocation2 + $0x5] sm:$0x1]
        %405 = vrot.lane.b32.xlu0 %v403, 11
        %v406 = vpop.permute.xlu0 %405
        %vm408 = vcmask 549016
        %409 = vst.msk [vmem:[#allocation4 + $0x8] sm:$0x1] %vm408, %v406
        %v410 = vld [vmem:[#allocation2 + $0xc] sm:$0x1]
        %412 = vrot.lane.b32.xlu0 %v410, 67
        %v413 = vpop.permute.xlu0 %412
        %vm415 = vcmask 950816
        %416 = vst.msk [vmem:[#allocation4 + $0x8] sm:$0x1] %vm415, %v413
        %v417 = vld [vmem:[#allocation2 + $0xe] sm:$0x1]
        %419 = vrot.lane.b32.xlu0 %v417, 116
        %v420 = vpop.permute.xlu0 %419
        %vm422 = vcmask 1041320
        %423 = vst.msk [vmem:[#allocation4 + $0x8] sm:$0x1] %vm422, %v420
        %vm424 = vcmask 303104
        %425 = vst.msk [vmem:[#allocation4 + $0x10] sm:$0x1] %vm424, %v420
        %v426 = vld [vmem:[#allocation2 + $0x4] sm:$0x1]
        %428 = vrot.lane.b32.xlu0 %v426, 30
        %v429 = vpop.permute.xlu0 %428
        %vm431 = vcmask 704816
        %432 = vst.msk [vmem:[#allocation4 + $0x10] sm:$0x1] %vm431, %v429
        %v433 = vld [vmem:[#allocation2 + $0x6] sm:$0x1]
        %435 = vrot.lane.b32.xlu0 %v433, 79
        %v436 = vpop.permute.xlu0 %435
        %vm438 = vcmask 1041080
        %439 = vst.msk [vmem:[#allocation4 + $0x10] sm:$0x1] %vm438, %v436
        %vm440 = vcmask 57344
        %441 = vst.msk [vmem:[#allocation4 + $0x18] sm:$0x1] %vm440, %v436
        %v442 = vld [vmem:[#allocation2 + $0x3] sm:$0x1]
        %v443 = vmul.f32 %v442, %v392
        %445 = vrot.lane.b32.xlu0 %v443, 1
        %v446 = vpop.permute.xlu0 %445
        %vm448 = vcmask 458816
        %449 = vst.msk [vmem:[#allocation4 + $0x18] sm:$0x1] %vm448, %v446
        %v450 = vld [vmem:[#allocation2 + $0x1] sm:$0x1]
        %452 = vrot.lane.b32.xlu0 %v450, 49
        %v453 = vpop.permute.xlu0 %452
        %vm455 = vcmask 860616
        %456 = vst.msk [vmem:[#allocation4 + $0x18] sm:$0x1] %vm455, %v453
        %v457 = vld [vmem:[#allocation2 + $0xb] sm:$0x1]
        %v458 = vmul.f32 %v457, %v392
        %460 = vrot.lane.b32.xlu0 %v458, 99
        %v461 = vpop.permute.xlu0 %460
        %vm463 = vcmask 1041232
        %464 = vst.msk [vmem:[#allocation4 + $0x18] sm:$0x1] %vm463, %v461
        %vm465 = vcmask 212992
        %466 = vst.msk [vmem:[#allocation4 + $0x20] sm:$0x1] %vm465, %v461
        %v467 = vld [vmem:[#allocation2 + $0x9] sm:$0x1]
        %469 = vrot.lane.b32.xlu0 %v467, 19
        %v470 = vpop.permute.xlu0 %469
        %vm472 = vcmask 614616
        %473 = vst.msk [vmem:[#allocation4 + $0x20] sm:$0x1] %vm472, %v470
        %v474 = vld [vmem:[#allocation2] sm:$0x1]
        %476 = vrot.lane.b32.xlu0 %v474, 68
        %v477 = vpop.permute.xlu0 %476
        %vm479 = vcmask 1016416
        %480 = vst.msk [vmem:[#allocation4 + $0x20] sm:$0x1] %vm479, %v477
        %v481 = vld [vmem:[#allocation2 + $0x2] sm:$0x1]
        %483 = vrot.lane.b32.xlu0 %v481, 117
        %v484 = vpop.permute.xlu0 %483
        %vm486 = vcmask 1041384
        %487 = vst.msk [vmem:[#allocation4 + $0x20] sm:$0x1] %vm486, %v484
        %vm488 = vcmask 368640
        %489 = vst.msk [vmem:[#allocation4 + $0x28] sm:$0x1] %vm488, %v484
        %v490 = vld [vmem:[#allocation2 + $0x8] sm:$0x1]
        %492 = vrot.lane.b32.xlu0 %v490, 38
        %v493 = vpop.permute.xlu0 %492
        %vm495 = vcmask 770416
        %496 = vst.msk [vmem:[#allocation4 + $0x28] sm:$0x1] %vm495, %v493
        %v497 = vld [vmem:[#allocation2 + $0xa] sm:$0x1]
        %499 = vrot.lane.b32.xlu0 %v497, 87
        %v500 = vpop.permute.xlu0 %499
        %vm502 = vcmask 1041144
        %503 = vst.msk [vmem:[#allocation4 + $0x28] sm:$0x1] %vm502, %v500
        %vm504 = vcmask 122880
        %505 = vst.msk [vmem:[#allocation4 + $0x30] sm:$0x1] %vm504, %v500
        %v506 = vld [vmem:[#allocation2 + $0xc] sm:$0x1]
        %508 = vrot.lane.b32.xlu0 %v506, 127
        %v509 = vpop.permute.xlu0 %508
        %511 = vst.msk [vmem:[#allocation4 + $0x1] sm:$0x1] %vm380, %v509
        %v512 = vld [vmem:[#allocation2 + $0xe] sm:$0x1]
        %514 = vrot.lane.b32.xlu0 %v512, 48
        %v515 = vpop.permute.xlu0 %514
        %517 = vst.msk [vmem:[#allocation4 + $0x1] sm:$0x1] %vm387, %v515
        %v518 = vld [vmem:[#allocation2 + $0x4] sm:$0x1]
        %520 = vrot.lane.b32.xlu0 %v518, 90
        %v521 = vpop.permute.xlu0 %520
        %523 = vst.msk [vmem:[#allocation4 + $0x1] sm:$0x1] %vm399, %v521
        %524 = vst.msk [vmem:[#allocation4 + $0x9] sm:$0x1] %vm401, %v521
        %v525 = vld [vmem:[#allocation2 + $0x6] sm:$0x1]
        %527 = vrot.lane.b32.xlu0 %v525, 11
        %v528 = vpop.permute.xlu0 %527
        %530 = vst.msk [vmem:[#allocation4 + $0x9] sm:$0x1] %vm408, %v528
        %v531 = vld [vmem:[#allocation2 + $0xd] sm:$0x1]
        %533 = vrot.lane.b32.xlu0 %v531, 67
        %v534 = vpop.permute.xlu0 %533
        %536 = vst.msk [vmem:[#allocation4 + $0x9] sm:$0x1] %vm415, %v534
        %v537 = vld [vmem:[#allocation2 + $0xf] sm:$0x1]
        %539 = vrot.lane.b32.xlu0 %v537, 116
        %v540 = vpop.permute.xlu0 %539
        %542 = vst.msk [vmem:[#allocation4 + $0x9] sm:$0x1] %vm422, %v540
        %543 = vst.msk [vmem:[#allocation4 + $0x11] sm:$0x1] %vm424, %v540
        %v544 = vld [vmem:[#allocation2 + $0x5] sm:$0x1]
        %546 = vrot.lane.b32.xlu0 %v544, 30
        %v547 = vpop.permute.xlu0 %546
        %549 = vst.msk [vmem:[#allocation4 + $0x11] sm:$0x1] %vm431, %v547
        %v550 = vld [vmem:[#allocation2 + $0x7] sm:$0x1]
        %552 = vrot.lane.b32.xlu0 %v550, 79
        %v553 = vpop.permute.xlu0 %552
        %555 = vst.msk [vmem:[#allocation4 + $0x11] sm:$0x1] %vm438, %v553
        %556 = vst.msk [vmem:[#allocation4 + $0x19] sm:$0x1] %vm440, %v553
        %v557 = vld [vmem:[#allocation2] sm:$0x1]
        %558 = vst.msk [vmem:[#allocation4 + $0x19] sm:$0x1] %vm448, %v557
        %v559 = vld [vmem:[#allocation2 + $0x2] sm:$0x1]
        %561 = vrot.lane.b32.xlu0 %v559, 49
        %v562 = vpop.permute.xlu0 %561
        %564 = vst.msk [vmem:[#allocation4 + $0x19] sm:$0x1] %vm455, %v562
        %v565 = vld [vmem:[#allocation2 + $0x8] sm:$0x1]
        %567 = vrot.lane.b32.xlu0 %v565, 98
        %v568 = vpop.permute.xlu0 %567
        %570 = vst.msk [vmem:[#allocation4 + $0x19] sm:$0x1] %vm463, %v568
        %571 = vst.msk [vmem:[#allocation4 + $0x21] sm:$0x1] %vm465, %v568
        %v572 = vld [vmem:[#allocation2 + $0xa] sm:$0x1]
        %574 = vrot.lane.b32.xlu0 %v572, 19
        %v575 = vpop.permute.xlu0 %574
        %577 = vst.msk [vmem:[#allocation4 + $0x21] sm:$0x1] %vm472, %v575
        %v578 = vld [vmem:[#allocation2 + $0x1] sm:$0x1]
        %580 = vrot.lane.b32.xlu0 %v578, 68
        %v581 = vpop.permute.xlu0 %580
        %583 = vst.msk [vmem:[#allocation4 + $0x21] sm:$0x1] %vm479, %v581
        %v584 = vld [vmem:[#allocation2 + $0x3] sm:$0x1]
        %586 = vrot.lane.b32.xlu0 %v584, 117
        %v587 = vpop.permute.xlu0 %586
        %589 = vst.msk [vmem:[#allocation4 + $0x21] sm:$0x1] %vm486, %v587
        %590 = vst.msk [vmem:[#allocation4 + $0x29] sm:$0x1] %vm488, %v587
        %v591 = vld [vmem:[#allocation2 + $0x9] sm:$0x1]
        %593 = vrot.lane.b32.xlu0 %v591, 38
        %v594 = vpop.permute.xlu0 %593
        %596 = vst.msk [vmem:[#allocation4 + $0x29] sm:$0x1] %vm495, %v594
        %v597 = vld [vmem:[#allocation2 + $0xb] sm:$0x1]
        %599 = vrot.lane.b32.xlu0 %v597, 87
        %v600 = vpop.permute.xlu0 %599
        %602 = vst.msk [vmem:[#allocation4 + $0x29] sm:$0x1] %vm502, %v600
        %603 = vst.msk [vmem:[#allocation4 + $0x31] sm:$0x1] %vm504, %v600
        %v604 = vld [vmem:[#allocation2 + $0xd] sm:$0x1]
        %606 = vrot.lane.b32.xlu0 %v604, 127
        %v607 = vpop.permute.xlu0 %606
        %609 = vst.msk [vmem:[#allocation4 + $0x2] sm:$0x1] %vm380, %v607
        %v610 = vld [vmem:[#allocation2 + $0xf] sm:$0x1]
        %612 = vrot.lane.b32.xlu0 %v610, 48
        %v613 = vpop.permute.xlu0 %612
        %615 = vst.msk [vmem:[#allocation4 + $0x2] sm:$0x1] %vm387, %v613
        %v616 = vld [vmem:[#allocation2 + $0x5] sm:$0x1]
        %618 = vrot.lane.b32.xlu0 %v616, 90
        %v619 = vpop.permute.xlu0 %618
        %621 = vst.msk [vmem:[#allocation4 + $0x2] sm:$0x1] %vm399, %v619
        %622 = vst.msk [vmem:[#allocation4 + $0xa] sm:$0x1] %vm401, %v619
        %v623 = vld [vmem:[#allocation2 + $0x7] sm:$0x1]
        %625 = vrot.lane.b32.xlu0 %v623, 11
        %v626 = vpop.permute.xlu0 %625
        %628 = vst.msk [vmem:[#allocation4 + $0xa] sm:$0x1] %vm408, %v626
        %v629 = vld [vmem:[#allocation2 + $0xe] sm:$0x1]
        %631 = vrot.lane.b32.xlu0 %v629, 67
        %v632 = vpop.permute.xlu0 %631
        %634 = vst.msk [vmem:[#allocation4 + $0xa] sm:$0x1] %vm415, %v632
        %v635 = vld [vmem:[#allocation2 + $0xc] sm:$0x1]
        %637 = vrot.lane.b32.xlu0 %v359, 2
        %v638 = vpop.permute.xlu0 %637
        %v640 = vmul.f32 %v635, %v638
        %642 = vrot.lane.b32.xlu0 %v640, 115
        %v643 = vpop.permute.xlu0 %642
        %645 = vst.msk [vmem:[#allocation4 + $0xa] sm:$0x1] %vm422, %v643
        %646 = vst.msk [vmem:[#allocation4 + $0x12] sm:$0x1] %vm424, %v643
        %v647 = vld [vmem:[#allocation2 + $0x6] sm:$0x1]
        %649 = vrot.lane.b32.xlu0 %v647, 30
        %v650 = vpop.permute.xlu0 %649
        %652 = vst.msk [vmem:[#allocation4 + $0x12] sm:$0x1] %vm431, %v650
        %v653 = vld [vmem:[#allocation2 + $0x4] sm:$0x1]
        %654 = vrot.lane.b32.xlu0 %v359, 9
        %v655 = vpop.permute.xlu0 %654
        %v657 = vmul.f32 %v653, %v655
        %659 = vrot.lane.b32.xlu0 %v657, 78
        %v660 = vpop.permute.xlu0 %659
        %662 = vst.msk [vmem:[#allocation4 + $0x12] sm:$0x1] %vm438, %v660
        %663 = vst.msk [vmem:[#allocation4 + $0x1a] sm:$0x1] %vm440, %v660
        %v664 = vld [vmem:[#allocation2 + $0x1] sm:$0x1]
        %665 = vst.msk [vmem:[#allocation4 + $0x1a] sm:$0x1] %vm448, %v664
        %v666 = vld [vmem:[#allocation2 + $0x3] sm:$0x1]
        %668 = vrot.lane.b32.xlu0 %v666, 49
        %v669 = vpop.permute.xlu0 %668
        %671 = vst.msk [vmem:[#allocation4 + $0x1a] sm:$0x1] %vm455, %v669
        %v672 = vld [vmem:[#allocation2 + $0x9] sm:$0x1]
        %674 = vrot.lane.b32.xlu0 %v672, 98
        %v675 = vpop.permute.xlu0 %674
        %677 = vst.msk [vmem:[#allocation4 + $0x1a] sm:$0x1] %vm463, %v675
        %678 = vst.msk [vmem:[#allocation4 + $0x22] sm:$0x1] %vm465, %v675
        %v679 = vld [vmem:[#allocation2 + $0xb] sm:$0x1]
        %681 = vrot.lane.b32.xlu0 %v679, 19
        %v682 = vpop.permute.xlu0 %681
        %684 = vst.msk [vmem:[#allocation4 + $0x22] sm:$0x1] %vm472, %v682
        %v685 = vld [vmem:[#allocation2 + $0x2] sm:$0x1]
        %687 = vrot.lane.b32.xlu0 %v685, 68
        %v688 = vpop.permute.xlu0 %687
        %690 = vst.msk [vmem:[#allocation4 + $0x22] sm:$0x1] %vm479, %v688
        %v691 = vld [vmem:[#allocation2] sm:$0x1]
        %v692 = vmul.f32 %v691, %v655
        %694 = vrot.lane.b32.xlu0 %v692, 116
        %v695 = vpop.permute.xlu0 %694
        %697 = vst.msk [vmem:[#allocation4 + $0x22] sm:$0x1] %vm486, %v695
        %698 = vst.msk [vmem:[#allocation4 + $0x2a] sm:$0x1] %vm488, %v695
        %v699 = vld [vmem:[#allocation2 + $0xa] sm:$0x1]
        %701 = vrot.lane.b32.xlu0 %v699, 38
        %v702 = vpop.permute.xlu0 %701
        %704 = vst.msk [vmem:[#allocation4 + $0x2a] sm:$0x1] %vm495, %v702
        %v705 = vld [vmem:[#allocation2 + $0x8] sm:$0x1]
        %v706 = vmul.f32 %v705, %v655
        %708 = vrot.lane.b32.xlu0 %v706, 86
        %v709 = vpop.permute.xlu0 %708
        %711 = vst.msk [vmem:[#allocation4 + $0x2a] sm:$0x1] %vm502, %v709
        %712 = vst.msk [vmem:[#allocation4 + $0x32] sm:$0x1] %vm504, %v709
        %v713 = vld [vmem:[#allocation2 + $0x3] sm:$0x1]
        %v714 = vmul.f32 %v713, %v392
        %716 = vrot.lane.b32.xlu0 %v714, 121
        %v717 = vpop.permute.xlu0 %716
        %719 = vst.msk [vmem:[#allocation4 + $0x3] sm:$0x1] %vm380, %v717
        %v720 = vld [vmem:[#allocation2 + $0x1] sm:$0x1]
        %722 = vrot.lane.b32.xlu0 %v720, 41
        %v723 = vpop.permute.xlu0 %722
        %725 = vst.msk [vmem:[#allocation4 + $0x3] sm:$0x1] %vm387, %v723
        %v726 = vld [vmem:[#allocation2 + $0xb] sm:$0x1]
        %v727 = vmul.f32 %v726, %v392
        %729 = vrot.lane.b32.xlu0 %v727, 91
        %v730 = vpop.permute.xlu0 %729
        %732 = vst.msk [vmem:[#allocation4 + $0x3] sm:$0x1] %vm399, %v730
        %733 = vst.msk [vmem:[#allocation4 + $0xb] sm:$0x1] %vm401, %v730
        %v734 = vld [vmem:[#allocation2 + $0x9] sm:$0x1]
        %736 = vrot.lane.b32.xlu0 %v734, 11
        %v737 = vpop.permute.xlu0 %736
        %739 = vst.msk [vmem:[#allocation4 + $0xb] sm:$0x1] %vm408, %v737
        %v740 = vld [vmem:[#allocation2] sm:$0x1]
        %742 = vrot.lane.b32.xlu0 %v740, 60
        %v743 = vpop.permute.xlu0 %742
        %745 = vst.msk [vmem:[#allocation4 + $0xb] sm:$0x1] %vm415, %v743
        %v746 = vld [vmem:[#allocation2 + $0x2] sm:$0x1]
        %748 = vrot.lane.b32.xlu0 %v746, 109
        %v749 = vpop.permute.xlu0 %748
        %751 = vst.msk [vmem:[#allocation4 + $0xb] sm:$0x1] %vm422, %v749
        %752 = vst.msk [vmem:[#allocation4 + $0x13] sm:$0x1] %vm424, %v749
        %v753 = vld [vmem:[#allocation2 + $0x8] sm:$0x1]
        %755 = vrot.lane.b32.xlu0 %v753, 30
        %v756 = vpop.permute.xlu0 %755
        %758 = vst.msk [vmem:[#allocation4 + $0x13] sm:$0x1] %vm431, %v756
        %v759 = vld [vmem:[#allocation2 + $0xa] sm:$0x1]
        %761 = vrot.lane.b32.xlu0 %v759, 79
        %v762 = vpop.permute.xlu0 %761
        %764 = vst.msk [vmem:[#allocation4 + $0x13] sm:$0x1] %vm438, %v762
        %765 = vst.msk [vmem:[#allocation4 + $0x1b] sm:$0x1] %vm440, %v762
        %v766 = vld [vmem:[#allocation2 + $0x7] sm:$0x1]
        %v767 = vmul.f32 %v766, %v392
        %769 = vrot.lane.b32.xlu0 %v767, 1
        %v770 = vpop.permute.xlu0 %769
        %772 = vst.msk [vmem:[#allocation4 + $0x1b] sm:$0x1] %vm448, %v770
        %v773 = vld [vmem:[#allocation2 + $0x5] sm:$0x1]
        %775 = vrot.lane.b32.xlu0 %v773, 49
        %v776 = vpop.permute.xlu0 %775
        %778 = vst.msk [vmem:[#allocation4 + $0x1b] sm:$0x1] %vm455, %v776
        %v779 = vld [vmem:[#allocation2 + $0xf] sm:$0x1]
        %v780 = vmul.f32 %v779, %v392
        %782 = vrot.lane.b32.xlu0 %v780, 99
        %v783 = vpop.permute.xlu0 %782
        %785 = vst.msk [vmem:[#allocation4 + $0x1b] sm:$0x1] %vm463, %v783
        %786 = vst.msk [vmem:[#allocation4 + $0x23] sm:$0x1] %vm465, %v783
        %v787 = vld [vmem:[#allocation2 + $0xd] sm:$0x1]
        %789 = vrot.lane.b32.xlu0 %v787, 19
        %v790 = vpop.permute.xlu0 %789
        %792 = vst.msk [vmem:[#allocation4 + $0x23] sm:$0x1] %vm472, %v790
        %v793 = vld [vmem:[#allocation2 + $0x4] sm:$0x1]
        %795 = vrot.lane.b32.xlu0 %v793, 68
        %v796 = vpop.permute.xlu0 %795
        %798 = vst.msk [vmem:[#allocation4 + $0x23] sm:$0x1] %vm479, %v796
        %v799 = vld [vmem:[#allocation2 + $0x6] sm:$0x1]
        %801 = vrot.lane.b32.xlu0 %v799, 117
        %v802 = vpop.permute.xlu0 %801
        %804 = vst.msk [vmem:[#allocation4 + $0x23] sm:$0x1] %vm486, %v802
        %805 = vst.msk [vmem:[#allocation4 + $0x2b] sm:$0x1] %vm488, %v802
        %v806 = vld [vmem:[#allocation2 + $0xc] sm:$0x1]
        %808 = vrot.lane.b32.xlu0 %v806, 38
        %v809 = vpop.permute.xlu0 %808
        %811 = vst.msk [vmem:[#allocation4 + $0x2b] sm:$0x1] %vm495, %v809
        %v812 = vld [vmem:[#allocation2 + $0xe] sm:$0x1]
        %814 = vrot.lane.b32.xlu0 %v812, 87
        %v815 = vpop.permute.xlu0 %814
        %817 = vst.msk [vmem:[#allocation4 + $0x2b] sm:$0x1] %vm502, %v815
        %818 = vst.msk [vmem:[#allocation4 + $0x33] sm:$0x1] %vm504, %v815
        %v819 = vld [vmem:[#allocation2] sm:$0x1]
        %821 = vrot.lane.b32.xlu0 %v819, 120
        %v822 = vpop.permute.xlu0 %821
        %824 = vst.msk [vmem:[#allocation4 + $0x4] sm:$0x1] %vm380, %v822
        %v825 = vld [vmem:[#allocation2 + $0x2] sm:$0x1]
        %827 = vrot.lane.b32.xlu0 %v825, 41
        %v828 = vpop.permute.xlu0 %827
        %830 = vst.msk [vmem:[#allocation4 + $0x4] sm:$0x1] %vm387, %v828
        %v831 = vld [vmem:[#allocation2 + $0x8] sm:$0x1]
        %833 = vrot.lane.b32.xlu0 %v831, 90
        %v834 = vpop.permute.xlu0 %833
        %836 = vst.msk [vmem:[#allocation4 + $0x4] sm:$0x1] %vm399, %v834
        %837 = vst.msk [vmem:[#allocation4 + $0xc] sm:$0x1] %vm401, %v834
        %v838 = vld [vmem:[#allocation2 + $0xa] sm:$0x1]
        %840 = vrot.lane.b32.xlu0 %v838, 11
        %v841 = vpop.permute.xlu0 %840
        %843 = vst.msk [vmem:[#allocation4 + $0xc] sm:$0x1] %vm408, %v841
        %v844 = vld [vmem:[#allocation2 + $0x1] sm:$0x1]
        %846 = vrot.lane.b32.xlu0 %v844, 60
        %v847 = vpop.permute.xlu0 %846
        %849 = vst.msk [vmem:[#allocation4 + $0xc] sm:$0x1] %vm415, %v847
        %v850 = vld [vmem:[#allocation2 + $0x3] sm:$0x1]
        %852 = vrot.lane.b32.xlu0 %v850, 109
        %v853 = vpop.permute.xlu0 %852
        %855 = vst.msk [vmem:[#allocation4 + $0xc] sm:$0x1] %vm422, %v853
        %856 = vst.msk [vmem:[#allocation4 + $0x14] sm:$0x1] %vm424, %v853
        %v857 = vld [vmem:[#allocation2 + $0x9] sm:$0x1]
        %859 = vrot.lane.b32.xlu0 %v857, 30
        %v860 = vpop.permute.xlu0 %859
        %862 = vst.msk [vmem:[#allocation4 + $0x14] sm:$0x1] %vm431, %v860
        %v863 = vld [vmem:[#allocation2 + $0xb] sm:$0x1]
        %865 = vrot.lane.b32.xlu0 %v863, 79
        %v866 = vpop.permute.xlu0 %865
        %868 = vst.msk [vmem:[#allocation4 + $0x14] sm:$0x1] %vm438, %v866
        %869 = vst.msk [vmem:[#allocation4 + $0x1c] sm:$0x1] %vm440, %v866
        %v870 = vld [vmem:[#allocation2 + $0x4] sm:$0x1]
        %871 = vst.msk [vmem:[#allocation4 + $0x1c] sm:$0x1] %vm448, %v870
        %v872 = vld [vmem:[#allocation2 + $0x6] sm:$0x1]
        %874 = vrot.lane.b32.xlu0 %v872, 49
        %v875 = vpop.permute.xlu0 %874
        %877 = vst.msk [vmem:[#allocation4 + $0x1c] sm:$0x1] %vm455, %v875
        %v878 = vld [vmem:[#allocation2 + $0xc] sm:$0x1]
        %880 = vrot.lane.b32.xlu0 %v878, 98
        %v881 = vpop.permute.xlu0 %880
        %883 = vst.msk [vmem:[#allocation4 + $0x1c] sm:$0x1] %vm463, %v881
        %884 = vst.msk [vmem:[#allocation4 + $0x24] sm:$0x1] %vm465, %v881
        %v885 = vld [vmem:[#allocation2 + $0xe] sm:$0x1]
        %887 = vrot.lane.b32.xlu0 %v885, 19
        %v888 = vpop.permute.xlu0 %887
        %890 = vst.msk [vmem:[#allocation4 + $0x24] sm:$0x1] %vm472, %v888
        %v891 = vld [vmem:[#allocation2 + $0x5] sm:$0x1]
        %893 = vrot.lane.b32.xlu0 %v891, 68
        %v894 = vpop.permute.xlu0 %893
        %896 = vst.msk [vmem:[#allocation4 + $0x24] sm:$0x1] %vm479, %v894
        %v897 = vld [vmem:[#allocation2 + $0x7] sm:$0x1]
        %899 = vrot.lane.b32.xlu0 %v897, 117
        %v900 = vpop.permute.xlu0 %899
        %902 = vst.msk [vmem:[#allocation4 + $0x24] sm:$0x1] %vm486, %v900
        %903 = vst.msk [vmem:[#allocation4 + $0x2c] sm:$0x1] %vm488, %v900
        %v904 = vld [vmem:[#allocation2 + $0xd] sm:$0x1]
        %906 = vrot.lane.b32.xlu0 %v904, 38
        %v907 = vpop.permute.xlu0 %906
        %909 = vst.msk [vmem:[#allocation4 + $0x2c] sm:$0x1] %vm495, %v907
        %v910 = vld [vmem:[#allocation2 + $0xf] sm:$0x1]
        %912 = vrot.lane.b32.xlu0 %v910, 87
        %v913 = vpop.permute.xlu0 %912
        %915 = vst.msk [vmem:[#allocation4 + $0x2c] sm:$0x1] %vm502, %v913
        %916 = vst.msk [vmem:[#allocation4 + $0x34] sm:$0x1] %vm504, %v913
        %v917 = vld [vmem:[#allocation2 + $0x1] sm:$0x1]
        %919 = vrot.lane.b32.xlu0 %v917, 120
        %v920 = vpop.permute.xlu0 %919
        %922 = vst.msk [vmem:[#allocation4 + $0x5] sm:$0x1] %vm380, %v920
        %v923 = vld [vmem:[#allocation2 + $0x3] sm:$0x1]
        %925 = vrot.lane.b32.xlu0 %v923, 41
        %v926 = vpop.permute.xlu0 %925
        %928 = vst.msk [vmem:[#allocation4 + $0x5] sm:$0x1] %vm387, %v926
        %v929 = vld [vmem:[#allocation2 + $0x9] sm:$0x1]
        %931 = vrot.lane.b32.xlu0 %v929, 90
        %v932 = vpop.permute.xlu0 %931
        %934 = vst.msk [vmem:[#allocation4 + $0x5] sm:$0x1] %vm399, %v932
        %935 = vst.msk [vmem:[#allocation4 + $0xd] sm:$0x1] %vm401, %v932
        %v936 = vld [vmem:[#allocation2 + $0xb] sm:$0x1]
        %938 = vrot.lane.b32.xlu0 %v936, 11
        %v939 = vpop.permute.xlu0 %938
        %941 = vst.msk [vmem:[#allocation4 + $0xd] sm:$0x1] %vm408, %v939
        %v942 = vld [vmem:[#allocation2 + $0x2] sm:$0x1]
        %944 = vrot.lane.b32.xlu0 %v942, 60
        %v945 = vpop.permute.xlu0 %944
        %947 = vst.msk [vmem:[#allocation4 + $0xd] sm:$0x1] %vm415, %v945
        %v948 = vld [vmem:[#allocation2] sm:$0x1]
        %v949 = vmul.f32 %v948, %v655
        %951 = vrot.lane.b32.xlu0 %v949, 108
        %v952 = vpop.permute.xlu0 %951
        %954 = vst.msk [vmem:[#allocation4 + $0xd] sm:$0x1] %vm422, %v952
        %955 = vst.msk [vmem:[#allocation4 + $0x15] sm:$0x1] %vm424, %v952
        %v956 = vld [vmem:[#allocation2 + $0xa] sm:$0x1]
        %958 = vrot.lane.b32.xlu0 %v956, 30
        %v959 = vpop.permute.xlu0 %958
        %961 = vst.msk [vmem:[#allocation4 + $0x15] sm:$0x1] %vm431, %v959
        %v962 = vld [vmem:[#allocation2 + $0x8] sm:$0x1]
        %v963 = vmul.f32 %v962, %v655
        %965 = vrot.lane.b32.xlu0 %v963, 78
        %v966 = vpop.permute.xlu0 %965
        %968 = vst.msk [vmem:[#allocation4 + $0x15] sm:$0x1] %vm438, %v966
        %969 = vst.msk [vmem:[#allocation4 + $0x1d] sm:$0x1] %vm440, %v966
        %v970 = vld [vmem:[#allocation2 + $0x5] sm:$0x1]
        %971 = vst.msk [vmem:[#allocation4 + $0x1d] sm:$0x1] %vm448, %v970
        %v972 = vld [vmem:[#allocation2 + $0x7] sm:$0x1]
        %974 = vrot.lane.b32.xlu0 %v972, 49
        %v975 = vpop.permute.xlu0 %974
        %977 = vst.msk [vmem:[#allocation4 + $0x1d] sm:$0x1] %vm455, %v975
        %v978 = vld [vmem:[#allocation2 + $0xd] sm:$0x1]
        %980 = vrot.lane.b32.xlu0 %v978, 98
        %v981 = vpop.permute.xlu0 %980
        %983 = vst.msk [vmem:[#allocation4 + $0x1d] sm:$0x1] %vm463, %v981
        %984 = vst.msk [vmem:[#allocation4 + $0x25] sm:$0x1] %vm465, %v981
        %v985 = vld [vmem:[#allocation2 + $0xf] sm:$0x1]
        %987 = vrot.lane.b32.xlu0 %v985, 19
        %v988 = vpop.permute.xlu0 %987
        %990 = vst.msk [vmem:[#allocation4 + $0x25] sm:$0x1] %vm472, %v988
        %v991 = vld [vmem:[#allocation2 + $0x6] sm:$0x1]
        %993 = vrot.lane.b32.xlu0 %v991, 68
        %v994 = vpop.permute.xlu0 %993
        %996 = vst.msk [vmem:[#allocation4 + $0x25] sm:$0x1] %vm479, %v994
        %v997 = vld [vmem:[#allocation2 + $0x4] sm:$0x1]
        %v998 = vmul.f32 %v997, %v655
        %1000 = vrot.lane.b32.xlu0 %v998, 116
        %v1001 = vpop.permute.xlu0 %1000
        %1003 = vst.msk [vmem:[#allocation4 + $0x25] sm:$0x1] %vm486, %v1001
        %1004 = vst.msk [vmem:[#allocation4 + $0x2d] sm:$0x1] %vm488, %v1001
        %v1005 = vld [vmem:[#allocation2 + $0xe] sm:$0x1]
        %1007 = vrot.lane.b32.xlu0 %v1005, 38
        %v1008 = vpop.permute.xlu0 %1007
        %1010 = vst.msk [vmem:[#allocation4 + $0x2d] sm:$0x1] %vm495, %v1008
        %v1011 = vld [vmem:[#allocation2 + $0xc] sm:$0x1]
        %v1012 = vmul.f32 %v1011, %v655
        %1014 = vrot.lane.b32.xlu0 %v1012, 86
        %v1015 = vpop.permute.xlu0 %1014
        %1017 = vst.msk [vmem:[#allocation4 + $0x2d] sm:$0x1] %vm502, %v1015
        %1018 = vst.msk [vmem:[#allocation4 + $0x35] sm:$0x1] %vm504, %v1015
        %v1019 = vld [vmem:[#allocation2 + $0x7] sm:$0x1]
        %v1020 = vmul.f32 %v1019, %v392
        %1022 = vrot.lane.b32.xlu0 %v1020, 121
        %v1023 = vpop.permute.xlu0 %1022
        %1025 = vst.msk [vmem:[#allocation4 + $0x6] sm:$0x1] %vm380, %v1023
        %v1026 = vld [vmem:[#allocation2 + $0x5] sm:$0x1]
        %1028 = vrot.lane.b32.xlu0 %v1026, 41
        %v1029 = vpop.permute.xlu0 %1028
        %1031 = vst.msk [vmem:[#allocation4 + $0x6] sm:$0x1] %vm387, %v1029
        %v1032 = vld [vmem:[#allocation2 + $0xf] sm:$0x1]
        %v1033 = vmul.f32 %v1032, %v392
        %1035 = vrot.lane.b32.xlu0 %v1033, 91
        %v1036 = vpop.permute.xlu0 %1035
        %1038 = vst.msk [vmem:[#allocation4 + $0x6] sm:$0x1] %vm399, %v1036
        %1039 = vst.msk [vmem:[#allocation4 + $0xe] sm:$0x1] %vm401, %v1036
        %v1040 = vld [vmem:[#allocation2 + $0xd] sm:$0x1]
        %1042 = vrot.lane.b32.xlu0 %v1040, 11
        %v1043 = vpop.permute.xlu0 %1042
        %1045 = vst.msk [vmem:[#allocation4 + $0xe] sm:$0x1] %vm408, %v1043
        %v1046 = vld [vmem:[#allocation2 + $0x4] sm:$0x1]
        %1048 = vrot.lane.b32.xlu0 %v1046, 60
        %v1049 = vpop.permute.xlu0 %1048
        %1051 = vst.msk [vmem:[#allocation4 + $0xe] sm:$0x1] %vm415, %v1049
        %v1052 = vld [vmem:[#allocation2 + $0x6] sm:$0x1]
        %1054 = vrot.lane.b32.xlu0 %v1052, 109
        %v1055 = vpop.permute.xlu0 %1054
        %1057 = vst.msk [vmem:[#allocation4 + $0xe] sm:$0x1] %vm422, %v1055
        %1058 = vst.msk [vmem:[#allocation4 + $0x16] sm:$0x1] %vm424, %v1055
        %v1059 = vld [vmem:[#allocation2 + $0xc] sm:$0x1]
        %1061 = vrot.lane.b32.xlu0 %v1059, 30
        %v1062 = vpop.permute.xlu0 %1061
        %1064 = vst.msk [vmem:[#allocation4 + $0x16] sm:$0x1] %vm431, %v1062
        %v1065 = vld [vmem:[#allocation2 + $0xe] sm:$0x1]
        %1067 = vrot.lane.b32.xlu0 %v1065, 79
        %v1068 = vpop.permute.xlu0 %1067
        %1070 = vst.msk [vmem:[#allocation4 + $0x16] sm:$0x1] %vm438, %v1068
        %1071 = vst.msk [vmem:[#allocation4 + $0x1e] sm:$0x1] %vm440, %v1068
        %v1072 = vld [vmem:[#allocation2 + $0xb] sm:$0x1]
        %v1073 = vmul.f32 %v1072, %v392
        %1075 = vrot.lane.b32.xlu0 %v1073, 1
        %v1076 = vpop.permute.xlu0 %1075
        %1078 = vst.msk [vmem:[#allocation4 + $0x1e] sm:$0x1] %vm448, %v1076
        %v1079 = vld [vmem:[#allocation2 + $0x9] sm:$0x1]
        %1081 = vrot.lane.b32.xlu0 %v1079, 49
        %v1082 = vpop.permute.xlu0 %1081
        %1084 = vst.msk [vmem:[#allocation4 + $0x1e] sm:$0x1] %vm455, %v1082
        %v1085 = vld [vmem:[#allocation2 + $0x3] sm:$0x1]
        %1086 = vrot.lane.b32.xlu0 %v358, 14
        %v1087 = vpop.permute.xlu0 %1086
        %v1089 = vmul.f32 %v1085, %v1087
        %1091 = vrot.lane.b32.xlu0 %v1089, 92
        %v1092 = vpop.permute.xlu0 %1091
        %1094 = vst.msk [vmem:[#allocation4 + $0x1e] sm:$0x1] %vm463, %v1092
        %1095 = vst.msk [vmem:[#allocation4 + $0x26] sm:$0x1] %vm465, %v1092
        %v1096 = vld [vmem:[#allocation2 + $0x1] sm:$0x1]
        %1098 = vrot.lane.b32.xlu0 %v1096, 12
        %v1099 = vpop.permute.xlu0 %1098
        %1101 = vst.msk [vmem:[#allocation4 + $0x26] sm:$0x1] %vm472, %v1099
        %v1102 = vld [vmem:[#allocation2 + $0x8] sm:$0x1]
        %1104 = vrot.lane.b32.xlu0 %v1102, 68
        %v1105 = vpop.permute.xlu0 %1104
        %1107 = vst.msk [vmem:[#allocation4 + $0x26] sm:$0x1] %vm479, %v1105
        %v1108 = vld [vmem:[#allocation2 + $0xa] sm:$0x1]
        %1110 = vrot.lane.b32.xlu0 %v1108, 117
        %v1111 = vpop.permute.xlu0 %1110
        %1113 = vst.msk [vmem:[#allocation4 + $0x26] sm:$0x1] %vm486, %v1111
        %1114 = vst.msk [vmem:[#allocation4 + $0x2e] sm:$0x1] %vm488, %v1111
        %v1115 = vld [vmem:[#allocation2] sm:$0x1]
        %1117 = vrot.lane.b32.xlu0 %v1115, 31
        %v1118 = vpop.permute.xlu0 %1117
        %1120 = vst.msk [vmem:[#allocation4 + $0x2e] sm:$0x1] %vm495, %v1118
        %v1121 = vld [vmem:[#allocation2 + $0x2] sm:$0x1]
        %1123 = vrot.lane.b32.xlu0 %v1121, 80
        %v1124 = vpop.permute.xlu0 %1123
        %1126 = vst.msk [vmem:[#allocation4 + $0x2e] sm:$0x1] %vm502, %v1124
        %1127 = vst.msk [vmem:[#allocation4 + $0x36] sm:$0x1] %vm504, %v1124
        %v1128 = vld [vmem:[#allocation2 + $0x4] sm:$0x1]
        %1130 = vrot.lane.b32.xlu0 %v1128, 120
        %v1131 = vpop.permute.xlu0 %1130
        %1133 = vst.msk [vmem:[#allocation4 + $0x7] sm:$0x1] %vm380, %v1131
        %v1134 = vld [vmem:[#allocation2 + $0x6] sm:$0x1]
        %1136 = vrot.lane.b32.xlu0 %v1134, 41
        %v1137 = vpop.permute.xlu0 %1136
        %1139 = vst.msk [vmem:[#allocation4 + $0x7] sm:$0x1] %vm387, %v1137
        %v1140 = vld [vmem:[#allocation2 + $0xc] sm:$0x1]
        %1142 = vrot.lane.b32.xlu0 %v1140, 90
        %v1143 = vpop.permute.xlu0 %1142
        %1145 = vst.msk [vmem:[#allocation4 + $0x7] sm:$0x1] %vm399, %v1143
        %1146 = vst.msk [vmem:[#allocation4 + $0xf] sm:$0x1] %vm401, %v1143
        %v1147 = vld [vmem:[#allocation2 + $0xe] sm:$0x1]
        %1149 = vrot.lane.b32.xlu0 %v1147, 11
        %v1150 = vpop.permute.xlu0 %1149
        %1152 = vst.msk [vmem:[#allocation4 + $0xf] sm:$0x1] %vm408, %v1150
        %v1153 = vld [vmem:[#allocation2 + $0x5] sm:$0x1]
        %1155 = vrot.lane.b32.xlu0 %v1153, 60
        %v1156 = vpop.permute.xlu0 %1155
        %1158 = vst.msk [vmem:[#allocation4 + $0xf] sm:$0x1] %vm415, %v1156
        %v1159 = vld [vmem:[#allocation2 + $0x7] sm:$0x1]
        %1161 = vrot.lane.b32.xlu0 %v1159, 109
        %v1162 = vpop.permute.xlu0 %1161
        %1164 = vst.msk [vmem:[#allocation4 + $0xf] sm:$0x1] %vm422, %v1162
        %1165 = vst.msk [vmem:[#allocation4 + $0x17] sm:$0x1] %vm424, %v1162
        %v1166 = vld [vmem:[#allocation2 + $0xd] sm:$0x1]
        %1168 = vrot.lane.b32.xlu0 %v1166, 30
        %v1169 = vpop.permute.xlu0 %1168
        %1171 = vst.msk [vmem:[#allocation4 + $0x17] sm:$0x1] %vm431, %v1169
        %v1172 = vld [vmem:[#allocation2 + $0xf] sm:$0x1]
        %1174 = vrot.lane.b32.xlu0 %v1172, 79
        %v1175 = vpop.permute.xlu0 %1174
        %1177 = vst.msk [vmem:[#allocation4 + $0x17] sm:$0x1] %vm438, %v1175
        %1178 = vst.msk [vmem:[#allocation4 + $0x1f] sm:$0x1] %vm440, %v1175
        %v1179 = vld [vmem:[#allocation2 + $0x8] sm:$0x1]
        %1180 = vst.msk [vmem:[#allocation4 + $0x1f] sm:$0x1] %vm448, %v1179
        %v1181 = vld [vmem:[#allocation2 + $0xa] sm:$0x1]
        %1183 = vrot.lane.b32.xlu0 %v1181, 49
        %v1184 = vpop.permute.xlu0 %1183
        %1186 = vst.msk [vmem:[#allocation4 + $0x1f] sm:$0x1] %vm455, %v1184
        %v1187 = vld [vmem:[#allocation2] sm:$0x1]
        %1189 = vrot.lane.b32.xlu0 %v1187, 91
        %v1190 = vpop.permute.xlu0 %1189
        %1192 = vst.msk [vmem:[#allocation4 + $0x1f] sm:$0x1] %vm463, %v1190
        %1193 = vst.msk [vmem:[#allocation4 + $0x27] sm:$0x1] %vm465, %v1190
        %v1194 = vld [vmem:[#allocation2 + $0x2] sm:$0x1]
        %1196 = vrot.lane.b32.xlu0 %v1194, 12
        %v1197 = vpop.permute.xlu0 %1196
        %1199 = vst.msk [vmem:[#allocation4 + $0x27] sm:$0x1] %vm472, %v1197
        %v1200 = vld [vmem:[#allocation2 + $0x9] sm:$0x1]
        %1202 = vrot.lane.b32.xlu0 %v1200, 68
        %v1203 = vpop.permute.xlu0 %1202
        %1205 = vst.msk [vmem:[#allocation4 + $0x27] sm:$0x1] %vm479, %v1203
        %v1206 = vld [vmem:[#allocation2 + $0xb] sm:$0x1]
        %1208 = vrot.lane.b32.xlu0 %v1206, 117
        %v1209 = vpop.permute.xlu0 %1208
        %1211 = vst.msk [vmem:[#allocation4 + $0x27] sm:$0x1] %vm486, %v1209
        %1212 = vst.msk [vmem:[#allocation4 + $0x2f] sm:$0x1] %vm488, %v1209
        %v1213 = vld [vmem:[#allocation2 + $0x1] sm:$0x1]
        %1215 = vrot.lane.b32.xlu0 %v1213, 31
        %v1216 = vpop.permute.xlu0 %1215
        %1218 = vst.msk [vmem:[#allocation4 + $0x2f] sm:$0x1] %vm495, %v1216
        %v1219 = vld [vmem:[#allocation2 + $0x3] sm:$0x1]
        %1221 = vrot.lane.b32.xlu0 %v1219, 80
        %v1222 = vpop.permute.xlu0 %1221
        %1224 = vst.msk [vmem:[#allocation4 + $0x2f] sm:$0x1] %vm502, %v1222
        %1225 = vst.msk [vmem:[#allocation4 + $0x37] sm:$0x1] %vm504, %v1222
        %v1226 = vld [vmem:[#allocation2 + $0x5] sm:$0x1]
        %1228 = vrot.lane.b32.xlu0 %v1226, 120
        %v1229 = vpop.permute.xlu0 %1228
        %1231 = vst.msk [vmem:[#allocation4 + $0x38] sm:$0x1] %vm380, %v1229
        %v1232 = vld [vmem:[#allocation2 + $0x7] sm:$0x1]
        %1234 = vrot.lane.b32.xlu0 %v1232, 41
        %v1235 = vpop.permute.xlu0 %1234
        %1237 = vst.msk [vmem:[#allocation4 + $0x38] sm:$0x1] %vm387, %v1235
        %v1238 = vld [vmem:[#allocation2 + $0xd] sm:$0x1]
        %1240 = vrot.lane.b32.xlu0 %v1238, 90
        %v1241 = vpop.permute.xlu0 %1240
        %1243 = vst.msk [vmem:[#allocation4 + $0x38] sm:$0x1] %vm399, %v1241
        %1244 = vst.msk [vmem:[#allocation4 + $0x40] sm:$0x1] %vm401, %v1241
        %v1245 = vld [vmem:[#allocation2 + $0xf] sm:$0x1]
        %1247 = vrot.lane.b32.xlu0 %v1245, 11
        %v1248 = vpop.permute.xlu0 %1247
        %1250 = vst.msk [vmem:[#allocation4 + $0x40] sm:$0x1] %vm408, %v1248
        %v1251 = vld [vmem:[#allocation2 + $0x6] sm:$0x1]
        %1253 = vrot.lane.b32.xlu0 %v1251, 60
        %v1254 = vpop.permute.xlu0 %1253
        %1256 = vst.msk [vmem:[#allocation4 + $0x40] sm:$0x1] %vm415, %v1254
        %v1257 = vld [vmem:[#allocation2 + $0x4] sm:$0x1]
        %v1258 = vmul.f32 %v1257, %v655
        %1260 = vrot.lane.b32.xlu0 %v1258, 108
        %v1261 = vpop.permute.xlu0 %1260
        %1263 = vst.msk [vmem:[#allocation4 + $0x40] sm:$0x1] %vm422, %v1261
        %1264 = vst.msk [vmem:[#allocation4 + $0x48] sm:$0x1] %vm424, %v1261
        %v1265 = vld [vmem:[#allocation2 + $0xe] sm:$0x1]
        %1267 = vrot.lane.b32.xlu0 %v1265, 30
        %v1268 = vpop.permute.xlu0 %1267
        %1270 = vst.msk [vmem:[#allocation4 + $0x48] sm:$0x1] %vm431, %v1268
        %v1271 = vld [vmem:[#allocation2 + $0xc] sm:$0x1]
        %v1272 = vmul.f32 %v1271, %v655
        %1274 = vrot.lane.b32.xlu0 %v1272, 78
        %v1275 = vpop.permute.xlu0 %1274
        %1277 = vst.msk [vmem:[#allocation4 + $0x48] sm:$0x1] %vm438, %v1275
        %1278 = vst.msk [vmem:[#allocation4 + $0x50] sm:$0x1] %vm440, %v1275
        %v1279 = vld [vmem:[#allocation2 + $0x9] sm:$0x1]
        %1280 = vst.msk [vmem:[#allocation4 + $0x50] sm:$0x1] %vm448, %v1279
        %v1281 = vld [vmem:[#allocation2 + $0xb] sm:$0x1]
        %1283 = vrot.lane.b32.xlu0 %v1281, 49
        %v1284 = vpop.permute.xlu0 %1283
        %1286 = vst.msk [vmem:[#allocation4 + $0x50] sm:$0x1] %vm455, %v1284
        %v1287 = vld [vmem:[#allocation2 + $0x1] sm:$0x1]
        %1289 = vrot.lane.b32.xlu0 %v1287, 91
        %v1290 = vpop.permute.xlu0 %1289
        %1292 = vst.msk [vmem:[#allocation4 + $0x50] sm:$0x1] %vm463, %v1290
        %1293 = vst.msk [vmem:[#allocation4 + $0x58] sm:$0x1] %vm465, %v1290
        %v1294 = vld [vmem:[#allocation2 + $0x3] sm:$0x1]
        %1296 = vrot.lane.b32.xlu0 %v1294, 12
        %v1297 = vpop.permute.xlu0 %1296
        %1299 = vst.msk [vmem:[#allocation4 + $0x58] sm:$0x1] %vm472, %v1297
        %v1300 = vld [vmem:[#allocation2 + $0xa] sm:$0x1]
        %1302 = vrot.lane.b32.xlu0 %v1300, 68
        %v1303 = vpop.permute.xlu0 %1302
        %1305 = vst.msk [vmem:[#allocation4 + $0x58] sm:$0x1] %vm479, %v1303
        %v1306 = vld [vmem:[#allocation2 + $0x8] sm:$0x1]
        %v1307 = vmul.f32 %v1306, %v655
        %1309 = vrot.lane.b32.xlu0 %v1307, 116
        %v1310 = vpop.permute.xlu0 %1309
        %1312 = vst.msk [vmem:[#allocation4 + $0x58] sm:$0x1] %vm486, %v1310
        %1313 = vst.msk [vmem:[#allocation4 + $0x60] sm:$0x1] %vm488, %v1310
        %v1314 = vld [vmem:[#allocation2 + $0x2] sm:$0x1]
        %1316 = vrot.lane.b32.xlu0 %v1314, 31
        %v1317 = vpop.permute.xlu0 %1316
        %1319 = vst.msk [vmem:[#allocation4 + $0x60] sm:$0x1] %vm495, %v1317
        %v1320 = vld [vmem:[#allocation2] sm:$0x1]
        %1321 = vrot.lane.b32.xlu0 %v359, 16
        %v1322 = vpop.permute.xlu0 %1321
        %v1324 = vmul.f32 %v1320, %v1322
        %1326 = vrot.lane.b32.xlu0 %v1324, 79
        %v1327 = vpop.permute.xlu0 %1326
        %1329 = vst.msk [vmem:[#allocation4 + $0x60] sm:$0x1] %vm502, %v1327
        %1330 = vst.msk [vmem:[#allocation4 + $0x68] sm:$0x1] %vm504, %v1327
        %v1331 = vld [vmem:[%s2] sm:$0xf]
        %v1332 = vld [vmem:[%s2 + $0x4] sm:$0xf]
        %v1333 = vld [vmem:[#allocation4] sm:$0xff]
        %v1334 = vld [vmem:[#allocation4 + $0x8] sm:$0xff]
        %v1335 = vld [vmem:[#allocation4 + $0x10] sm:$0xff]
        %v1336 = vld [vmem:[#allocation4 + $0x18] sm:$0xff]
        %v1337 = vld [vmem:[#allocation4 + $0x20] sm:$0xff]
        %v1338 = vld [vmem:[#allocation4 + $0x28] sm:$0xff]
        %v1339 = vld [vmem:[#allocation4 + $0x30] sm:$0xff]
        %v1340 = vld [vmem:[#allocation4 + $0x38] sm:$0x1]
        %v1341 = vld [vmem:[#allocation4 + $0x40] sm:$0x1]
        %v1342 = vld [vmem:[#allocation4 + $0x48] sm:$0x1]
        %v1343 = vld [vmem:[#allocation4 + $0x50] sm:$0x1]
        %v1344 = vld [vmem:[#allocation4 + $0x58] sm:$0x1]
        %v1345 = vld [vmem:[#allocation4 + $0x60] sm:$0x1]
        %v1346 = vld [vmem:[#allocation4 + $0x68] sm:$0x1]
        %v1347 = vpack.c.bf16 %v1340, %v1333
        %v1348 = vpack.c.bf16 %v1341, %v1334
        %v1349 = vpack.c.bf16 %v1342, %v1335
        %v1350 = vpack.c.bf16 %v1343, %v1336
        %v1351 = vpack.c.bf16 %v1344, %v1337
        %v1352 = vpack.c.bf16 %v1345, %v1338
        %v1353 = vpack.c.bf16 %v1346, %v1339
        %v1356 = vunpack.c.l.b16 %v1331
        %v1357 = vunpack.c.l.b16 %v1332
        %v1358 = vpack.c.b16 %v1357, %v1356
        %vm1359 = vcmask 72704
        %v1361 = vsel %vm1359, %v1358, 0
        %vm1363 = vcmask 1043456
        %vm1364 = vcmask 1044480
        %v1365 = vsel %vm1363, 4294967295, 65535
        %v1366 = vsel %vm1364, %v1365, 0
        %v1368 = vand.u32 %v1347, %v1366
        %v1371 = vand.u32 %v1348, %v1366
        %v1374 = vand.u32 %v1349, %v1366
        %v1377 = vand.u32 %v1350, %v1366
        %v1380 = vand.u32 %v1351, %v1366
        %v1383 = vand.u32 %v1352, %v1366
        %v1386 = vand.u32 %v1353, %v1366
        %1388 = vmatprep.subr.bf16.mxu0 %v1371
        %1389 = vmatpush1.bf16.msra.mxu0 %v1368
        %1390 = vmatprep.subr.bf16.mxu0 0
        %1391 = vmatpush1.bf16.msra.mxu0 0
        %1392 = vmatprep.subr.bf16.mxu0 0
        %1393 = vmatpush1.bf16.msra.mxu0 0
        %1394 = vmatprep.subr.bf16.mxu0 0
        %1395 = vmatpush1.bf16.msra.mxu0 0
        %1396 = vmatprep.subr.bf16.mxu0 0
        %1397 = vmatpush1.bf16.msra.mxu0 0
        %1398 = vmatprep.subr.bf16.mxu0 0
        %1399 = vmatpush1.bf16.msra.mxu0 0
        %1400 = vmatprep.subr.bf16.mxu0 0
        %1401 = vmatpush1.bf16.msra.mxu0 0
        %1402 = vmatprep.subr.bf16.mxu0 0
        %1403 = vmatpush1.bf16.msra.mxu0 0
        %1404 = vmatprep.subr.bf16.mxu0 0
        %1405 = vmatpush1.bf16.msra.mxu0 0
        %1406 = vmatprep.subr.bf16.mxu0 0
        %1407 = vmatpush1.bf16.msra.mxu0 0
        %1408 = vmatprep.subr.bf16.mxu0 0
        %1409 = vmatpush1.bf16.msra.mxu0 0
        %1410 = vmatprep.subr.bf16.mxu0 0
        %1411 = vmatpush1.bf16.msra.mxu0 0
        %1412 = vmatprep.subr.bf16.mxu0 0
        %1413 = vmatpush1.bf16.msra.mxu0 0
        %1414 = vmatprep.subr.bf16.mxu0 0
        %1415 = vmatpush1.bf16.msra.mxu0 0
        %1416 = vmatprep.subr.bf16.mxu0 0
        %1417 = vmatpush1.bf16.msra.mxu0 0
        %1418 = vmatprep.subr.bf16.mxu0 0
        %1419 = vmatpush1.bf16.msra.mxu0 0
        %1420 = vmatprep.mubr.bf16.mxu0 0
        %1421 = vmatmul.mubr.bf16.gmra.mrb[0].mxu0 %v1361
        %v1422 = vpop.f32.mrb[0].mxu0
        %v1423 = vadd.f32 0.0, %v1422
        %v1424 = vpop.f32.mrb[0].mxu0
        %v1425 = vadd.f32 0.0, %v1424
        %v1426 = vpop.f32.mrb[0].mxu0
        %v1427 = vadd.f32 0.0, %v1426
        %v1428 = vpop.f32.mrb[0].mxu0
        %v1429 = vadd.f32 0.0, %v1428
        %1430 = vdwg.mxu0
        %1431 = vmatprep.subr.bf16.mxu0 %v1377
        %1432 = vmatpush1.bf16.msra.mxu0 %v1374
        %1433 = vmatprep.subr.bf16.mxu0 0
        %1434 = vmatpush1.bf16.msra.mxu0 0
        %1435 = vmatprep.subr.bf16.mxu0 0
        %1436 = vmatpush1.bf16.msra.mxu0 0
        %1437 = vmatprep.subr.bf16.mxu0 0
        %1438 = vmatpush1.bf16.msra.mxu0 0
        %1439 = vmatprep.subr.bf16.mxu0 0
        %1440 = vmatpush1.bf16.msra.mxu0 0
        %1441 = vmatprep.subr.bf16.mxu0 0
        %1442 = vmatpush1.bf16.msra.mxu0 0
        %1443 = vmatprep.subr.bf16.mxu0 0
        %1444 = vmatpush1.bf16.msra.mxu0 0
        %1445 = vmatprep.subr.bf16.mxu0 0
        %1446 = vmatpush1.bf16.msra.mxu0 0
        %1447 = vmatprep.subr.bf16.mxu0 0
        %1448 = vmatpush1.bf16.msra.mxu0 0
        %1449 = vmatprep.subr.bf16.mxu0 0
        %1450 = vmatpush1.bf16.msra.mxu0 0
        %1451 = vmatprep.subr.bf16.mxu0 0
        %1452 = vmatpush1.bf16.msra.mxu0 0
        %1453 = vmatprep.subr.bf16.mxu0 0
        %1454 = vmatpush1.bf16.msra.mxu0 0
        %1455 = vmatprep.subr.bf16.mxu0 0
        %1456 = vmatpush1.bf16.msra.mxu0 0
        %1457 = vmatprep.subr.bf16.mxu0 0
        %1458 = vmatpush1.bf16.msra.mxu0 0
        %1459 = vmatprep.subr.bf16.mxu0 0
        %1460 = vmatpush1.bf16.msra.mxu0 0
        %1461 = vmatprep.subr.bf16.mxu0 0
        %1462 = vmatpush1.bf16.msra.mxu0 0
        %1463 = vmatprep.mubr.bf16.mxu0 0
        %1464 = vmatmul.mubr.bf16.gmra.mrb[0].mxu0 %v1361
        %v1465 = vpop.f32.mrb[0].mxu0
        %v1466 = vadd.f32 0.0, %v1465
        %v1467 = vpop.f32.mrb[0].mxu0
        %v1468 = vadd.f32 0.0, %v1467
        %v1469 = vpop.f32.mrb[0].mxu0
        %v1470 = vadd.f32 0.0, %v1469
        %v1471 = vpop.f32.mrb[0].mxu0
        %v1472 = vadd.f32 0.0, %v1471
        %1473 = vdwg.mxu0
        %1474 = vmatprep.subr.bf16.mxu0 %v1383
        %1475 = vmatpush1.bf16.msra.mxu0 %v1380
        %1476 = vmatprep.subr.bf16.mxu0 0
        %1477 = vmatpush1.bf16.msra.mxu0 0
        %1478 = vmatprep.subr.bf16.mxu0 0
        %1479 = vmatpush1.bf16.msra.mxu0 0
        %1480 = vmatprep.subr.bf16.mxu0 0
        %1481 = vmatpush1.bf16.msra.mxu0 0
        %1482 = vmatprep.subr.bf16.mxu0 0
        %1483 = vmatpush1.bf16.msra.mxu0 0
        %1484 = vmatprep.subr.bf16.mxu0 0
        %1485 = vmatpush1.bf16.msra.mxu0 0
        %1486 = vmatprep.subr.bf16.mxu0 0
        %1487 = vmatpush1.bf16.msra.mxu0 0
        %1488 = vmatprep.subr.bf16.mxu0 0
        %1489 = vmatpush1.bf16.msra.mxu0 0
        %1490 = vmatprep.subr.bf16.mxu0 0
        %1491 = vmatpush1.bf16.msra.mxu0 0
        %1492 = vmatprep.subr.bf16.mxu0 0
        %1493 = vmatpush1.bf16.msra.mxu0 0
        %1494 = vmatprep.subr.bf16.mxu0 0
        %1495 = vmatpush1.bf16.msra.mxu0 0
        %1496 = vmatprep.subr.bf16.mxu0 0
        %1497 = vmatpush1.bf16.msra.mxu0 0
        %1498 = vmatprep.subr.bf16.mxu0 0
        %1499 = vmatpush1.bf16.msra.mxu0 0
        %1500 = vmatprep.subr.bf16.mxu0 0
        %1501 = vmatpush1.bf16.msra.mxu0 0
        %1502 = vmatprep.subr.bf16.mxu0 0
        %1503 = vmatpush1.bf16.msra.mxu0 0
        %1504 = vmatprep.subr.bf16.mxu0 0
        %1505 = vmatpush1.bf16.msra.mxu0 0
        %1506 = vmatprep.mubr.bf16.mxu0 0
        %1507 = vmatmul.mubr.bf16.gmra.mrb[0].mxu0 %v1361
        %v1508 = vpop.f32.mrb[0].mxu0
        %v1509 = vadd.f32 0.0, %v1508
        %v1510 = vpop.f32.mrb[0].mxu0
        %v1511 = vadd.f32 0.0, %v1510
        %v1512 = vpop.f32.mrb[0].mxu0
        %v1513 = vadd.f32 0.0, %v1512
        %v1514 = vpop.f32.mrb[0].mxu0
        %v1515 = vadd.f32 0.0, %v1514
        %1516 = vdwg.mxu0
        %1517 = vmatprep.subr.bf16.mxu0 0
        %1518 = vmatpush1.bf16.msra.mxu0 %v1386
        %1519 = vmatprep.subr.bf16.mxu0 0
        %1520 = vmatpush1.bf16.msra.mxu0 0
        %1521 = vmatprep.subr.bf16.mxu0 0
        %1522 = vmatpush1.bf16.msra.mxu0 0
        %1523 = vmatprep.subr.bf16.mxu0 0
        %1524 = vmatpush1.bf16.msra.mxu0 0
        %1525 = vmatprep.subr.bf16.mxu0 0
        %1526 = vmatpush1.bf16.msra.mxu0 0
        %1527 = vmatprep.subr.bf16.mxu0 0
        %1528 = vmatpush1.bf16.msra.mxu0 0
        %1529 = vmatprep.subr.bf16.mxu0 0
        %1530 = vmatpush1.bf16.msra.mxu0 0
        %1531 = vmatprep.subr.bf16.mxu0 0
        %1532 = vmatpush1.bf16.msra.mxu0 0
        %1533 = vmatprep.subr.bf16.mxu0 0
        %1534 = vmatpush1.bf16.msra.mxu0 0
        %1535 = vmatprep.subr.bf16.mxu0 0
        %1536 = vmatpush1.bf16.msra.mxu0 0
        %1537 = vmatprep.subr.bf16.mxu0 0
        %1538 = vmatpush1.bf16.msra.mxu0 0
        %1539 = vmatprep.subr.bf16.mxu0 0
        %1540 = vmatpush1.bf16.msra.mxu0 0
        %1541 = vmatprep.subr.bf16.mxu0 0
        %1542 = vmatpush1.bf16.msra.mxu0 0
        %1543 = vmatprep.subr.bf16.mxu0 0
        %1544 = vmatpush1.bf16.msra.mxu0 0
        %1545 = vmatprep.subr.bf16.mxu0 0
        %1546 = vmatpush1.bf16.msra.mxu0 0
        %1547 = vmatprep.subr.bf16.mxu0 0
        %1548 = vmatpush1.bf16.msra.mxu0 0
        %1549 = vmatprep.mubr.bf16.mxu0 0
        %1550 = vmatmul.mubr.bf16.gmra.mrb[0].mxu0 %v1361
        %v1551 = vpop.f32.mrb[0].mxu0
        %v1552 = vadd.f32 0.0, %v1551
        %v1553 = vpop.f32.mrb[0].mxu0
        %v1554 = vpop.f32.mrb[0].mxu0
        %v1555 = vadd.f32 0.0, %v1554
        %v1556 = vpop.f32.mrb[0].mxu0
        %1557 = vdwg.mxu0
        %1564 = vrot.lane.b32.xlu0 %v1425, 60
        %v1565 = vpop.permute.xlu0 %1564
        %1566 = vrot.lane.b32.xlu0 %v1466, 60
        %v1567 = vpop.permute.xlu0 %1566
        %1568 = vrot.lane.b32.xlu0 %v1468, 60
        %v1569 = vpop.permute.xlu0 %1568
        %1570 = vrot.lane.b32.xlu0 %v1429, 60
        %v1571 = vpop.permute.xlu0 %1570
        %1572 = vrot.lane.b32.xlu0 %v1470, 60
        %v1573 = vpop.permute.xlu0 %1572
        %1574 = vrot.lane.b32.xlu0 %v1472, 60
        %v1575 = vpop.permute.xlu0 %1574
        %vm1576 = vcmask 490496
        %v1577 = vsel %vm1576, %v1565, %v1567
        %v1578 = vsel %vm1576, %v1567, %v1569
        %v1579 = vsel %vm1576, %v1571, %v1573
        %v1580 = vsel %vm1576, %v1573, %v1575
        %v1585 = vmax.f32 %v1423, %v1577
        %v1586 = vmax.f32 %v1425, %v1578
        %v1587 = vmax.f32 %v1427, %v1579
        %v1588 = vmax.f32 %v1429, %v1580
        %1595 = vrot.lane.b32.xlu0 %v1509, 60
        %v1596 = vpop.permute.xlu0 %1595
        %1597 = vrot.lane.b32.xlu0 %v1511, 60
        %v1598 = vpop.permute.xlu0 %1597
        %1599 = vrot.lane.b32.xlu0 %v1552, 60
        %v1600 = vpop.permute.xlu0 %1599
        %1601 = vrot.lane.b32.xlu0 %v1513, 60
        %v1602 = vpop.permute.xlu0 %1601
        %1603 = vrot.lane.b32.xlu0 %v1515, 60
        %v1604 = vpop.permute.xlu0 %1603
        %1605 = vrot.lane.b32.xlu0 %v1555, 60
        %v1606 = vpop.permute.xlu0 %1605
        %v1607 = vsel %vm1576, %v1596, %v1598
        %v1608 = vsel %vm1576, %v1598, %v1600
        %v1609 = vsel %vm1576, %v1602, %v1604
        %v1610 = vsel %vm1576, %v1604, %v1606
        %v1615 = vmax.f32 %v1468, %v1607
        %v1616 = vmax.f32 %v1509, %v1608
        %v1617 = vmax.f32 %v1472, %v1609
        %v1618 = vmax.f32 %v1513, %v1610
        %1623 = vrot.lane.b32.xlu0 %v1615, 120
        %v1624 = vpop.permute.xlu0 %1623
        %1625 = vrot.lane.b32.xlu0 %v1616, 120
        %v1626 = vpop.permute.xlu0 %1625
        %1627 = vrot.lane.b32.xlu0 %v1617, 120
        %v1628 = vpop.permute.xlu0 %1627
        %1629 = vrot.lane.b32.xlu0 %v1618, 120
        %v1630 = vpop.permute.xlu0 %1629
        %vm1631 = vcmask 982016
        %v1632 = vsel %vm1631, %v1624, %v1626
        %v1633 = vsel %vm1631, %v1628, %v1630
        %v1638 = vmax.f32 %v1585, %v1632
        %v1639 = vmax.f32 %v1586, %v1626
        %v1640 = vmax.f32 %v1587, %v1633
        %v1641 = vmax.f32 %v1588, %v1630
        %v1642 = vld [vmem:[%s3] sm:$0xff]
        %v1643 = vld [vmem:[%s3 + $0x8] sm:$0xff]
        %1645 = vset.pattern.permute.xlu0 0
        %1646 = vperm.xlu0 %1645, %v1642
        %v1647 = vpop.permute.xlu0 %1646
        %1650 = vset.pattern.permute.xlu0 0
        %1651 = vperm.xlu0 %1650, %v1643
        %v1652 = vpop.permute.xlu0 %1651
        %v1654 = vadd.f32 %v1638, %v1647
        %v1655 = vadd.f32 %v1639, %v1647
        %v1656 = vadd.f32 %v1640, %v1652
        %v1657 = vadd.f32 %v1641, %v1652
        %v1658 = vmax.f32 %v1654, 0.0
        %v1659 = vmax.f32 %v1655, 0.0
        %v1660 = vmax.f32 %v1656, 0.0
        %v1661 = vmax.f32 %v1657, 0.0
        %1662 = vst.msk [vmem:[#allocation3] sm:$0xff] %vm360, 0.0
        %1663 = vst.msk [vmem:[#allocation3 + $0x8] sm:$0xff] %vm360, 0.0
        %1664 = vst.msk [vmem:[#allocation3 + $0x10] sm:$0xff] %vm360, 0.0
        %1665 = vst.msk [vmem:[#allocation3 + $0x18] sm:$0xff] %vm360, 0.0
        %1666 = vst.msk [vmem:[#allocation3 + $0x20] sm:$0xff] %vm360, 0.0
        %1667 = vst.msk [vmem:[#allocation3 + $0x28] sm:$0xff] %vm360, 0.0
        %1668 = vst.msk [vmem:[#allocation3 + $0x30] sm:$0xff] %vm360, 0.0
        %1669 = vst.msk [vmem:[#allocation3 + $0x38] sm:$0xff] %vm360, 0.0
        %1672 = vrot.lane.b32.xlu0 %v1658, 8
        %v1673 = vpop.permute.xlu0 %1672
        %1674 = vrot.lane.b32.xlu0 %v1660, 8
        %v1675 = vpop.permute.xlu0 %1674
        %1678 = vst.msk [vmem:[#allocation3] sm:$0xff] %vm375, %v1673
        %1679 = vst.msk [vmem:[#allocation3 + $0x8] sm:$0xff] %vm375, %v1675
        %1680 = vrot.lane.b32.xlu0 %v1658, 87
        %v1681 = vpop.permute.xlu0 %1680
        %1682 = vrot.lane.b32.xlu0 %v1660, 87
        %v1683 = vpop.permute.xlu0 %1682
        %1686 = vst.msk [vmem:[#allocation3 + $0x10] sm:$0xff] %vm375, %v1681
        %1687 = vst.msk [vmem:[#allocation3 + $0x18] sm:$0xff] %vm375, %v1683
        %1690 = vrot.lane.b32.xlu0 %v1658, 38
        %v1691 = vpop.permute.xlu0 %1690
        %1692 = vrot.lane.b32.xlu0 %v1659, 38
        %v1693 = vpop.permute.xlu0 %1692
        %1694 = vrot.lane.b32.xlu0 %v1660, 38
        %v1695 = vpop.permute.xlu0 %1694
        %1696 = vrot.lane.b32.xlu0 %v1661, 38
        %v1697 = vpop.permute.xlu0 %1696
        %vm1698 = vcmask 310272
        %v1699 = vsel %vm1698, %v1691, %v1693
        %v1700 = vsel %vm1698, %v1695, %v1697
        %1703 = vst.msk [vmem:[#allocation3 + $0x20] sm:$0xff] %vm375, %v1699
        %1704 = vst.msk [vmem:[#allocation3 + $0x28] sm:$0xff] %vm375, %v1700
        %1705 = vrot.lane.b32.xlu0 %v1659, 117
        %v1706 = vpop.permute.xlu0 %1705
        %1707 = vrot.lane.b32.xlu0 %v1661, 117
        %v1708 = vpop.permute.xlu0 %1707
        %1711 = vst.msk [vmem:[#allocation3 + $0x30] sm:$0xff] %vm375, %v1706
        %1712 = vst.msk [vmem:[#allocation3 + $0x38] sm:$0xff] %vm375, %v1708
        %v1713 = vld [vmem:[#allocation3 + $0x30] sm:$0xff]
        %v1714 = vld [vmem:[#allocation3 + $0x38] sm:$0xff]
        %v1715 = vlaneseq
        %v1716 = vshrl.u32 %v1715, 7
        %v1717 = vsub.s32 0, %v1716
        %v1718 = vrot.slane %v358, %v1717
        %v1719 = vmul.f32 %v1713, %v1718
        %v1720 = vmul.f32 %v1714, %v1718
        %vm1721 = vcmask 400384
        %1722 = vst.msk [vmem:[#allocation5] sm:$0xff] %vm1721, %v1719
        %1723 = vst.msk [vmem:[#allocation5 + $0x10] sm:$0xff] %vm1721, %v1720
        %v1724 = vld [vmem:[#allocation3 + $0x20] sm:$0xff]
        %v1725 = vld [vmem:[#allocation3 + $0x28] sm:$0xff]
        %1728 = vrot.lane.b32.xlu0 %v1724, 48
        %v1729 = vpop.permute.xlu0 %1728
        %1730 = vrot.lane.b32.xlu0 %v1725, 48
        %v1731 = vpop.permute.xlu0 %1730
        %vm1734 = vcmask 802184
        %1735 = vst.msk [vmem:[#allocation5] sm:$0xff] %vm1734, %v1729
        %1736 = vst.msk [vmem:[#allocation5 + $0x10] sm:$0xff] %vm1734, %v1731
        %v1737 = vld [vmem:[#allocation3 + $0x10] sm:$0xff]
        %v1738 = vld [vmem:[#allocation3 + $0x18] sm:$0xff]
        %1740 = vrot.lane.b32.xlu0 %v1718, 7
        %v1741 = vpop.permute.xlu0 %1740
        %v1743 = vmul.f32 %v1737, %v1741
        %v1744 = vmul.f32 %v1738, %v1741
        %1747 = vrot.lane.b32.xlu0 %v1743, 91
        %v1748 = vpop.permute.xlu0 %1747
        %1749 = vrot.lane.b32.xlu0 %v1744, 91
        %v1750 = vpop.permute.xlu0 %1749
        %vm1753 = vcmask 1048336
        %1754 = vst.msk [vmem:[#allocation5] sm:$0xff] %vm1753, %v1748
        %vm1755 = vcmask 154624
        %1756 = vst.msk [vmem:[#allocation5 + $0x8] sm:$0xff] %vm1755, %v1748
        %1757 = vst.msk [vmem:[#allocation5 + $0x10] sm:$0xff] %vm1753, %v1750
        %1758 = vst.msk [vmem:[#allocation5 + $0x18] sm:$0xff] %vm1755, %v1750
        %v1759 = vld [vmem:[#allocation3] sm:$0xff]
        %v1760 = vld [vmem:[#allocation3 + $0x8] sm:$0xff]
        %1763 = vrot.lane.b32.xlu0 %v1759, 11
        %v1764 = vpop.permute.xlu0 %1763
        %1765 = vrot.lane.b32.xlu0 %v1760, 11
        %v1766 = vpop.permute.xlu0 %1765
        %vm1769 = vcmask 556184
        %1770 = vst.msk [vmem:[#allocation5 + $0x8] sm:$0xff] %vm1769, %v1764
        %1771 = vst.msk [vmem:[#allocation5 + $0x18] sm:$0xff] %vm1769, %v1766
        %v1772 = vld [vmem:[#allocation3 + $0x20] sm:$0xff]
        %v1773 = vld [vmem:[#allocation3 + $0x28] sm:$0xff]
        %1776 = vrot.lane.b32.xlu0 %v1772, 127
        %v1777 = vpop.permute.xlu0 %1776
        %1778 = vrot.lane.b32.xlu0 %v1773, 127
        %v1779 = vpop.permute.xlu0 %1778
        %1782 = vst.msk [vmem:[#allocation5 + $0x20] sm:$0xff] %vm1721, %v1777
        %1783 = vst.msk [vmem:[#allocation5 + $0x30] sm:$0xff] %vm1721, %v1779
        %v1784 = vld [vmem:[#allocation3 + $0x30] sm:$0xff]
        %v1785 = vld [vmem:[#allocation3 + $0x38] sm:$0xff]
        %1788 = vrot.lane.b32.xlu0 %v1784, 48
        %v1789 = vpop.permute.xlu0 %1788
        %1790 = vrot.lane.b32.xlu0 %v1785, 48
        %v1791 = vpop.permute.xlu0 %1790
        %1794 = vst.msk [vmem:[#allocation5 + $0x20] sm:$0xff] %vm1734, %v1789
        %1795 = vst.msk [vmem:[#allocation5 + $0x30] sm:$0xff] %vm1734, %v1791
        %v1796 = vld [vmem:[#allocation3] sm:$0xff]
        %v1797 = vld [vmem:[#allocation3 + $0x8] sm:$0xff]
        %1800 = vrot.lane.b32.xlu0 %v1796, 90
        %v1801 = vpop.permute.xlu0 %1800
        %1802 = vrot.lane.b32.xlu0 %v1797, 90
        %v1803 = vpop.permute.xlu0 %1802
        %1806 = vst.msk [vmem:[#allocation5 + $0x20] sm:$0xff] %vm1753, %v1801
        %1807 = vst.msk [vmem:[#allocation5 + $0x28] sm:$0xff] %vm1755, %v1801
        %1808 = vst.msk [vmem:[#allocation5 + $0x30] sm:$0xff] %vm1753, %v1803
        %1809 = vst.msk [vmem:[#allocation5 + $0x38] sm:$0xff] %vm1755, %v1803
        %v1810 = vld [vmem:[#allocation3 + $0x10] sm:$0xff]
        %v1811 = vld [vmem:[#allocation3 + $0x18] sm:$0xff]
        %1814 = vrot.lane.b32.xlu0 %v1810, 11
        %v1815 = vpop.permute.xlu0 %1814
        %1816 = vrot.lane.b32.xlu0 %v1811, 11
        %v1817 = vpop.permute.xlu0 %1816
        %1820 = vst.msk [vmem:[#allocation5 + $0x28] sm:$0xff] %vm1769, %v1815
        %1821 = vst.msk [vmem:[#allocation5 + $0x38] sm:$0xff] %vm1769, %v1817
        %v1822 = vld [vmem:[#allocation3 + $0x30] sm:$0xff]
        %v1823 = vld [vmem:[#allocation3 + $0x38] sm:$0xff]
        %1826 = vrot.lane.b32.xlu0 %v1822, 127
        %v1827 = vpop.permute.xlu0 %1826
        %1828 = vrot.lane.b32.xlu0 %v1823, 127
        %v1829 = vpop.permute.xlu0 %1828
        %1832 = vst.msk [vmem:[#allocation5 + $0x40] sm:$0xff] %vm1721, %v1827
        %1833 = vst.msk [vmem:[#allocation5 + $0x50] sm:$0xff] %vm1721, %v1829
        %v1834 = vld [vmem:[#allocation3 + $0x20] sm:$0xff]
        %v1835 = vld [vmem:[#allocation3 + $0x28] sm:$0xff]
        %v1836 = vlaneseq
        %v1837 = vshrl.u32 %v1836, 7
        %v1838 = vsub.s32 0, %v1837
        %v1839 = vrot.slane %v359, %v1838
        %1841 = vrot.lane.b32.xlu0 %v1839, 2
        %v1842 = vpop.permute.xlu0 %1841
        %v1844 = vmul.f32 %v1834, %v1842
        %v1845 = vmul.f32 %v1835, %v1842
        %1848 = vrot.lane.b32.xlu0 %v1844, 47
        %v1849 = vpop.permute.xlu0 %1848
        %1850 = vrot.lane.b32.xlu0 %v1845, 47
        %v1851 = vpop.permute.xlu0 %1850
        %1854 = vst.msk [vmem:[#allocation5 + $0x40] sm:$0xff] %vm1734, %v1849
        %1855 = vst.msk [vmem:[#allocation5 + $0x50] sm:$0xff] %vm1734, %v1851
        %v1856 = vld [vmem:[#allocation3 + $0x10] sm:$0xff]
        %v1857 = vld [vmem:[#allocation3 + $0x18] sm:$0xff]
        %1860 = vrot.lane.b32.xlu0 %v1856, 90
        %v1861 = vpop.permute.xlu0 %1860
        %1862 = vrot.lane.b32.xlu0 %v1857, 90
        %v1863 = vpop.permute.xlu0 %1862
        %1866 = vst.msk [vmem:[#allocation5 + $0x40] sm:$0xff] %vm1753, %v1861
        %1867 = vst.msk [vmem:[#allocation5 + $0x48] sm:$0xff] %vm1755, %v1861
        %1868 = vst.msk [vmem:[#allocation5 + $0x50] sm:$0xff] %vm1753, %v1863
        %1869 = vst.msk [vmem:[#allocation5 + $0x58] sm:$0xff] %vm1755, %v1863
        %v1870 = vld [vmem:[#allocation3] sm:$0xff]
        %v1871 = vld [vmem:[#allocation3 + $0x8] sm:$0xff]
        %1872 = vrot.lane.b32.xlu0 %v1839, 9
        %v1873 = vpop.permute.xlu0 %1872
        %v1875 = vmul.f32 %v1870, %v1873
        %v1876 = vmul.f32 %v1871, %v1873
        %1879 = vrot.lane.b32.xlu0 %v1875, 10
        %v1880 = vpop.permute.xlu0 %1879
        %1881 = vrot.lane.b32.xlu0 %v1876, 10
        %v1882 = vpop.permute.xlu0 %1881
        %1885 = vst.msk [vmem:[#allocation5 + $0x48] sm:$0xff] %vm1769, %v1880
        %1886 = vst.msk [vmem:[#allocation5 + $0x58] sm:$0xff] %vm1769, %v1882
        %v1887 = vld [vmem:[#allocation3 + $0x10] sm:$0xff]
        %v1888 = vld [vmem:[#allocation3 + $0x18] sm:$0xff]
        %v1889 = vmul.f32 %v1887, %v1741
        %v1890 = vmul.f32 %v1888, %v1741
        %1893 = vrot.lane.b32.xlu0 %v1889, 121
        %v1894 = vpop.permute.xlu0 %1893
        %1895 = vrot.lane.b32.xlu0 %v1890, 121
        %v1896 = vpop.permute.xlu0 %1895
        %1899 = vst.msk [vmem:[#allocation5 + $0x60] sm:$0xff] %vm1721, %v1894
        %1900 = vst.msk [vmem:[#allocation5 + $0x70] sm:$0xff] %vm1721, %v1896
        %v1901 = vld [vmem:[#allocation3] sm:$0xff]
        %v1902 = vld [vmem:[#allocation3 + $0x8] sm:$0xff]
        %1905 = vrot.lane.b32.xlu0 %v1901, 41
        %v1906 = vpop.permute.xlu0 %1905
        %1907 = vrot.lane.b32.xlu0 %v1902, 41
        %v1908 = vpop.permute.xlu0 %1907
        %1911 = vst.msk [vmem:[#allocation5 + $0x60] sm:$0xff] %vm1734, %v1906
        %1912 = vst.msk [vmem:[#allocation5 + $0x70] sm:$0xff] %vm1734, %v1908
        %v1913 = vld [vmem:[#allocation3 + $0x30] sm:$0xff]
        %v1914 = vld [vmem:[#allocation3 + $0x38] sm:$0xff]
        %v1915 = vmul.f32 %v1913, %v1741
        %v1916 = vmul.f32 %v1914, %v1741
        %1919 = vrot.lane.b32.xlu0 %v1915, 91
        %v1920 = vpop.permute.xlu0 %1919
        %1921 = vrot.lane.b32.xlu0 %v1916, 91
        %v1922 = vpop.permute.xlu0 %1921
        %1925 = vst.msk [vmem:[#allocation5 + $0x60] sm:$0xff] %vm1753, %v1920
        %1926 = vst.msk [vmem:[#allocation5 + $0x68] sm:$0xff] %vm1755, %v1920
        %1927 = vst.msk [vmem:[#allocation5 + $0x70] sm:$0xff] %vm1753, %v1922
        %1928 = vst.msk [vmem:[#allocation5 + $0x78] sm:$0xff] %vm1755, %v1922
        %v1929 = vld [vmem:[#allocation3 + $0x20] sm:$0xff]
        %v1930 = vld [vmem:[#allocation3 + $0x28] sm:$0xff]
        %1933 = vrot.lane.b32.xlu0 %v1929, 11
        %v1934 = vpop.permute.xlu0 %1933
        %1935 = vrot.lane.b32.xlu0 %v1930, 11
        %v1936 = vpop.permute.xlu0 %1935
        %1939 = vst.msk [vmem:[#allocation5 + $0x68] sm:$0xff] %vm1769, %v1934
        %1940 = vst.msk [vmem:[#allocation5 + $0x78] sm:$0xff] %vm1769, %v1936
        %v1941 = vld [vmem:[#allocation3] sm:$0xff]
        %v1942 = vld [vmem:[#allocation3 + $0x8] sm:$0xff]
        %1945 = vrot.lane.b32.xlu0 %v1941, 120
        %v1946 = vpop.permute.xlu0 %1945
        %1947 = vrot.lane.b32.xlu0 %v1942, 120
        %v1948 = vpop.permute.xlu0 %1947
        %1951 = vst.msk [vmem:[#allocation5 + $0x80] sm:$0xff] %vm1721, %v1946
        %1952 = vst.msk [vmem:[#allocation5 + $0x90] sm:$0xff] %vm1721, %v1948
        %v1953 = vld [vmem:[#allocation3 + $0x10] sm:$0xff]
        %v1954 = vld [vmem:[#allocation3 + $0x18] sm:$0xff]
        %1957 = vrot.lane.b32.xlu0 %v1953, 41
        %v1958 = vpop.permute.xlu0 %1957
        %1959 = vrot.lane.b32.xlu0 %v1954, 41
        %v1960 = vpop.permute.xlu0 %1959
        %1963 = vst.msk [vmem:[#allocation5 + $0x80] sm:$0xff] %vm1734, %v1958
        %1964 = vst.msk [vmem:[#allocation5 + $0x90] sm:$0xff] %vm1734, %v1960
        %v1965 = vld [vmem:[#allocation3 + $0x20] sm:$0xff]
        %v1966 = vld [vmem:[#allocation3 + $0x28] sm:$0xff]
        %1969 = vrot.lane.b32.xlu0 %v1965, 90
        %v1970 = vpop.permute.xlu0 %1969
        %1971 = vrot.lane.b32.xlu0 %v1966, 90
        %v1972 = vpop.permute.xlu0 %1971
        %1975 = vst.msk [vmem:[#allocation5 + $0x80] sm:$0xff] %vm1753, %v1970
        %1976 = vst.msk [vmem:[#allocation5 + $0x88] sm:$0xff] %vm1755, %v1970
        %1977 = vst.msk [vmem:[#allocation5 + $0x90] sm:$0xff] %vm1753, %v1972
        %1978 = vst.msk [vmem:[#allocation5 + $0x98] sm:$0xff] %vm1755, %v1972
        %v1979 = vld [vmem:[#allocation3 + $0x30] sm:$0xff]
        %v1980 = vld [vmem:[#allocation3 + $0x38] sm:$0xff]
        %1983 = vrot.lane.b32.xlu0 %v1979, 11
        %v1984 = vpop.permute.xlu0 %1983
        %1985 = vrot.lane.b32.xlu0 %v1980, 11
        %v1986 = vpop.permute.xlu0 %1985
        %1989 = vst.msk [vmem:[#allocation5 + $0x88] sm:$0xff] %vm1769, %v1984
        %1990 = vst.msk [vmem:[#allocation5 + $0x98] sm:$0xff] %vm1769, %v1986
        %v1991 = vld [vmem:[#allocation3 + $0x10] sm:$0xff]
        %v1992 = vld [vmem:[#allocation3 + $0x18] sm:$0xff]
        %1995 = vrot.lane.b32.xlu0 %v1991, 120
        %v1996 = vpop.permute.xlu0 %1995
        %1997 = vrot.lane.b32.xlu0 %v1992, 120
        %v1998 = vpop.permute.xlu0 %1997
        %2001 = vst.msk [vmem:[#allocation5 + $0xa0] sm:$0xff] %vm1721, %v1996
        %2002 = vst.msk [vmem:[#allocation5 + $0xb0] sm:$0xff] %vm1721, %v1998
        %v2003 = vld [vmem:[#allocation3] sm:$0xff]
        %v2004 = vld [vmem:[#allocation3 + $0x8] sm:$0xff]
        %v2005 = vmul.f32 %v2003, %v1873
        %v2006 = vmul.f32 %v2004, %v1873
        %2009 = vrot.lane.b32.xlu0 %v2005, 40
        %v2010 = vpop.permute.xlu0 %2009
        %2011 = vrot.lane.b32.xlu0 %v2006, 40
        %v2012 = vpop.permute.xlu0 %2011
        %2015 = vst.msk [vmem:[#allocation5 + $0xa0] sm:$0xff] %vm1734, %v2010
        %2016 = vst.msk [vmem:[#allocation5 + $0xb0] sm:$0xff] %vm1734, %v2012
        %v2017 = vld [vmem:[#allocation3 + $0x30] sm:$0xff]
        %v2018 = vld [vmem:[#allocation3 + $0x38] sm:$0xff]
        %2021 = vrot.lane.b32.xlu0 %v2017, 90
        %v2022 = vpop.permute.xlu0 %2021
        %2023 = vrot.lane.b32.xlu0 %v2018, 90
        %v2024 = vpop.permute.xlu0 %2023
        %2027 = vst.msk [vmem:[#allocation5 + $0xa0] sm:$0xff] %vm1753, %v2022
        %2028 = vst.msk [vmem:[#allocation5 + $0xa8] sm:$0xff] %vm1755, %v2022
        %2029 = vst.msk [vmem:[#allocation5 + $0xb0] sm:$0xff] %vm1753, %v2024
        %2030 = vst.msk [vmem:[#allocation5 + $0xb8] sm:$0xff] %vm1755, %v2024
        %v2031 = vld [vmem:[#allocation3 + $0x20] sm:$0xff]
        %v2032 = vld [vmem:[#allocation3 + $0x28] sm:$0xff]
        %v2033 = vmul.f32 %v2031, %v1873
        %v2034 = vmul.f32 %v2032, %v1873
        %2037 = vrot.lane.b32.xlu0 %v2033, 10
        %v2038 = vpop.permute.xlu0 %2037
        %2039 = vrot.lane.b32.xlu0 %v2034, 10
        %v2040 = vpop.permute.xlu0 %2039
        %2043 = vst.msk [vmem:[#allocation5 + $0xa8] sm:$0xff] %vm1769, %v2038
        %2044 = vst.msk [vmem:[#allocation5 + $0xb8] sm:$0xff] %vm1769, %v2040
        %v2045 = vld [vmem:[#allocation3 + $0x30] sm:$0xff]
        %v2046 = vld [vmem:[#allocation3 + $0x38] sm:$0xff]
        %v2047 = vmul.f32 %v2045, %v1741
        %v2048 = vmul.f32 %v2046, %v1741
        %2051 = vrot.lane.b32.xlu0 %v2047, 121
        %v2052 = vpop.permute.xlu0 %2051
        %2053 = vrot.lane.b32.xlu0 %v2048, 121
        %v2054 = vpop.permute.xlu0 %2053
        %2057 = vst.msk [vmem:[#allocation5 + $0xc0] sm:$0xff] %vm1721, %v2052
        %2058 = vst.msk [vmem:[#allocation5 + $0xd0] sm:$0xff] %vm1721, %v2054
        %v2059 = vld [vmem:[#allocation3 + $0x20] sm:$0xff]
        %v2060 = vld [vmem:[#allocation3 + $0x28] sm:$0xff]
        %2063 = vrot.lane.b32.xlu0 %v2059, 41
        %v2064 = vpop.permute.xlu0 %2063
        %2065 = vrot.lane.b32.xlu0 %v2060, 41
        %v2066 = vpop.permute.xlu0 %2065
        %2069 = vst.msk [vmem:[#allocation5 + $0xc0] sm:$0xff] %vm1734, %v2064
        %2070 = vst.msk [vmem:[#allocation5 + $0xd0] sm:$0xff] %vm1734, %v2066
        %v2071 = vld [vmem:[#allocation3 + $0x10] sm:$0xff]
        %v2072 = vld [vmem:[#allocation3 + $0x18] sm:$0xff]
        %2073 = vrot.lane.b32.xlu0 %v1718, 14
        %v2074 = vpop.permute.xlu0 %2073
        %v2076 = vmul.f32 %v2071, %v2074
        %v2077 = vmul.f32 %v2072, %v2074
        %2080 = vrot.lane.b32.xlu0 %v2076, 84
        %v2081 = vpop.permute.xlu0 %2080
        %2082 = vrot.lane.b32.xlu0 %v2077, 84
        %v2083 = vpop.permute.xlu0 %2082
        %2086 = vst.msk [vmem:[#allocation5 + $0xc0] sm:$0xff] %vm1753, %v2081
        %2087 = vst.msk [vmem:[#allocation5 + $0xc8] sm:$0xff] %vm1755, %v2081
        %2088 = vst.msk [vmem:[#allocation5 + $0xd0] sm:$0xff] %vm1753, %v2083
        %2089 = vst.msk [vmem:[#allocation5 + $0xd8] sm:$0xff] %vm1755, %v2083
        %v2090 = vld [vmem:[#allocation3] sm:$0xff]
        %v2091 = vld [vmem:[#allocation3 + $0x8] sm:$0xff]
        %2094 = vrot.lane.b32.xlu0 %v2090, 4
        %v2095 = vpop.permute.xlu0 %2094
        %2096 = vrot.lane.b32.xlu0 %v2091, 4
        %v2097 = vpop.permute.xlu0 %2096
        %2100 = vst.msk [vmem:[#allocation5 + $0xc8] sm:$0xff] %vm1769, %v2095
        %2101 = vst.msk [vmem:[#allocation5 + $0xd8] sm:$0xff] %vm1769, %v2097
        %v2102 = vld [vmem:[#allocation3 + $0x20] sm:$0xff]
        %v2103 = vld [vmem:[#allocation3 + $0x28] sm:$0xff]
        %2106 = vrot.lane.b32.xlu0 %v2102, 120
        %v2107 = vpop.permute.xlu0 %2106
        %2108 = vrot.lane.b32.xlu0 %v2103, 120
        %v2109 = vpop.permute.xlu0 %2108
        %2112 = vst.msk [vmem:[#allocation5 + $0xe0] sm:$0xff] %vm1721, %v2107
        %2113 = vst.msk [vmem:[#allocation5 + $0xf0] sm:$0xff] %vm1721, %v2109
        %v2114 = vld [vmem:[#allocation3 + $0x30] sm:$0xff]
        %v2115 = vld [vmem:[#allocation3 + $0x38] sm:$0xff]
        %2118 = vrot.lane.b32.xlu0 %v2114, 41
        %v2119 = vpop.permute.xlu0 %2118
        %2120 = vrot.lane.b32.xlu0 %v2115, 41
        %v2121 = vpop.permute.xlu0 %2120
        %2124 = vst.msk [vmem:[#allocation5 + $0xe0] sm:$0xff] %vm1734, %v2119
        %2125 = vst.msk [vmem:[#allocation5 + $0xf0] sm:$0xff] %vm1734, %v2121
        %v2126 = vld [vmem:[#allocation3] sm:$0xff]
        %v2127 = vld [vmem:[#allocation3 + $0x8] sm:$0xff]
        %2130 = vrot.lane.b32.xlu0 %v2126, 83
        %v2131 = vpop.permute.xlu0 %2130
        %2132 = vrot.lane.b32.xlu0 %v2127, 83
        %v2133 = vpop.permute.xlu0 %2132
        %2136 = vst.msk [vmem:[#allocation5 + $0xe0] sm:$0xff] %vm1753, %v2131
        %2137 = vst.msk [vmem:[#allocation5 + $0xe8] sm:$0xff] %vm1755, %v2131
        %2138 = vst.msk [vmem:[#allocation5 + $0xf0] sm:$0xff] %vm1753, %v2133
        %2139 = vst.msk [vmem:[#allocation5 + $0xf8] sm:$0xff] %vm1755, %v2133
        %v2140 = vld [vmem:[#allocation3 + $0x10] sm:$0xff]
        %v2141 = vld [vmem:[#allocation3 + $0x18] sm:$0xff]
        %2144 = vrot.lane.b32.xlu0 %v2140, 4
        %v2145 = vpop.permute.xlu0 %2144
        %2146 = vrot.lane.b32.xlu0 %v2141, 4
        %v2147 = vpop.permute.xlu0 %2146
        %2150 = vst.msk [vmem:[#allocation5 + $0xe8] sm:$0xff] %vm1769, %v2145
        %2151 = vst.msk [vmem:[#allocation5 + $0xf8] sm:$0xff] %vm1769, %v2147
        %v2152 = vld [vmem:[#allocation3 + $0x30] sm:$0xff]
        %v2153 = vld [vmem:[#allocation3 + $0x38] sm:$0xff]
        %2156 = vrot.lane.b32.xlu0 %v2152, 120
        %v2157 = vpop.permute.xlu0 %2156
        %2158 = vrot.lane.b32.xlu0 %v2153, 120
        %v2159 = vpop.permute.xlu0 %2158
        %2162 = vst.msk [vmem:[#allocation5 + $0x100] sm:$0xff] %vm1721, %v2157
        %2163 = vst.msk [vmem:[#allocation5 + $0x110] sm:$0xff] %vm1721, %v2159
        %v2164 = vld [vmem:[#allocation3 + $0x20] sm:$0xff]
        %v2165 = vld [vmem:[#allocation3 + $0x28] sm:$0xff]
        %v2166 = vmul.f32 %v2164, %v1873
        %v2167 = vmul.f32 %v2165, %v1873
        %2170 = vrot.lane.b32.xlu0 %v2166, 40
        %v2171 = vpop.permute.xlu0 %2170
        %2172 = vrot.lane.b32.xlu0 %v2167, 40
        %v2173 = vpop.permute.xlu0 %2172
        %2176 = vst.msk [vmem:[#allocation5 + $0x100] sm:$0xff] %vm1734, %v2171
        %2177 = vst.msk [vmem:[#allocation5 + $0x110] sm:$0xff] %vm1734, %v2173
        %v2178 = vld [vmem:[#allocation3 + $0x10] sm:$0xff]
        %v2179 = vld [vmem:[#allocation3 + $0x18] sm:$0xff]
        %2182 = vrot.lane.b32.xlu0 %v2178, 83
        %v2183 = vpop.permute.xlu0 %2182
        %2184 = vrot.lane.b32.xlu0 %v2179, 83
        %v2185 = vpop.permute.xlu0 %2184
        %2188 = vst.msk [vmem:[#allocation5 + $0x100] sm:$0xff] %vm1753, %v2183
        %2189 = vst.msk [vmem:[#allocation5 + $0x108] sm:$0xff] %vm1755, %v2183
        %2190 = vst.msk [vmem:[#allocation5 + $0x110] sm:$0xff] %vm1753, %v2185
        %2191 = vst.msk [vmem:[#allocation5 + $0x118] sm:$0xff] %vm1755, %v2185
        %v2192 = vld [vmem:[#allocation3] sm:$0xff]
        %v2193 = vld [vmem:[#allocation3 + $0x8] sm:$0xff]
        %2194 = vrot.lane.b32.xlu0 %v1839, 16
        %v2195 = vpop.permute.xlu0 %2194
        %v2197 = vmul.f32 %v2192, %v2195
        %v2198 = vmul.f32 %v2193, %v2195
        %2201 = vrot.lane.b32.xlu0 %v2197, 3
        %v2202 = vpop.permute.xlu0 %2201
        %2203 = vrot.lane.b32.xlu0 %v2198, 3
        %v2204 = vpop.permute.xlu0 %2203
        %2207 = vst.msk [vmem:[#allocation5 + $0x108] sm:$0xff] %vm1769, %v2202
        %2208 = vst.msk [vmem:[#allocation5 + $0x118] sm:$0xff] %vm1769, %v2204
        %v2209 = vld [vmem:[%s4] sm:$0xff]
        %v2210 = vld [vmem:[%s4 + $0x8] sm:$0xff]
        %v2211 = vld [vmem:[%s4 + $0x10] sm:$0xff]
        %v2212 = vld [vmem:[%s4 + $0x18] sm:$0xff]
        %v2213 = vld [vmem:[#allocation5] sm:$0xff]
        %v2214 = vld [vmem:[#allocation5 + $0x8] sm:$0xff]
        %v2215 = vld [vmem:[#allocation5 + $0x10] sm:$0xff]
        %v2216 = vld [vmem:[#allocation5 + $0x18] sm:$0xff]
        %v2217 = vld [vmem:[#allocation5 + $0x20] sm:$0xff]
        %v2218 = vld [vmem:[#allocation5 + $0x28] sm:$0xff]
        %v2219 = vld [vmem:[#allocation5 + $0x30] sm:$0xff]
        %v2220 = vld [vmem:[#allocation5 + $0x38] sm:$0xff]
        %v2221 = vld [vmem:[#allocation5 + $0x40] sm:$0xff]
        %v2222 = vld [vmem:[#allocation5 + $0x48] sm:$0xff]
        %v2223 = vld [vmem:[#allocation5 + $0x50] sm:$0xff]
        %v2224 = vld [vmem:[#allocation5 + $0x58] sm:$0xff]
        %v2225 = vld [vmem:[#allocation5 + $0x60] sm:$0xff]
        %v2226 = vld [vmem:[#allocation5 + $0x68] sm:$0xff]
        %v2227 = vld [vmem:[#allocation5 + $0x70] sm:$0xff]
        %v2228 = vld [vmem:[#allocation5 + $0x78] sm:$0xff]
        %v2229 = vld [vmem:[#allocation5 + $0x80] sm:$0xff]
        %v2230 = vld [vmem:[#allocation5 + $0x88] sm:$0xff]
        %v2231 = vld [vmem:[#allocation5 + $0x90] sm:$0xff]
        %v2232 = vld [vmem:[#allocation5 + $0x98] sm:$0xff]
        %v2233 = vld [vmem:[#allocation5 + $0xa0] sm:$0xff]
        %v2234 = vld [vmem:[#allocation5 + $0xa8] sm:$0xff]
        %v2235 = vld [vmem:[#allocation5 + $0xb0] sm:$0xff]
        %v2236 = vld [vmem:[#allocation5 + $0xb8] sm:$0xff]
        %v2237 = vld [vmem:[#allocation5 + $0xc0] sm:$0xff]
        %v2238 = vld [vmem:[#allocation5 + $0xc8] sm:$0xff]
        %v2239 = vld [vmem:[#allocation5 + $0xd0] sm:$0xff]
        %v2240 = vld [vmem:[#allocation5 + $0xd8] sm:$0xff]
        %v2241 = vld [vmem:[#allocation5 + $0xe0] sm:$0xff]
        %v2242 = vld [vmem:[#allocation5 + $0xe8] sm:$0xff]
        %v2243 = vld [vmem:[#allocation5 + $0xf0] sm:$0xff]
        %v2244 = vld [vmem:[#allocation5 + $0xf8] sm:$0xff]
        %v2245 = vld [vmem:[#allocation5 + $0x100] sm:$0xff]
        %v2246 = vld [vmem:[#allocation5 + $0x108] sm:$0xff]
        %v2247 = vld [vmem:[#allocation5 + $0x110] sm:$0xff]
        %v2248 = vld [vmem:[#allocation5 + $0x118] sm:$0xff]
        %v2249 = vpack.c.bf16 %v2215, %v2213
        %v2250 = vpack.c.bf16 %v2216, %v2214
        %v2251 = vpack.c.bf16 %v2219, %v2217
        %v2252 = vpack.c.bf16 %v2220, %v2218
        %v2253 = vpack.c.bf16 %v2223, %v2221
        %v2254 = vpack.c.bf16 %v2224, %v2222
        %v2255 = vpack.c.bf16 %v2227, %v2225
        %v2256 = vpack.c.bf16 %v2228, %v2226
        %v2257 = vpack.c.bf16 %v2231, %v2229
        %v2258 = vpack.c.bf16 %v2232, %v2230
        %v2259 = vpack.c.bf16 %v2235, %v2233
        %v2260 = vpack.c.bf16 %v2236, %v2234
        %v2261 = vpack.c.bf16 %v2239, %v2237
        %v2262 = vpack.c.bf16 %v2240, %v2238
        %v2263 = vpack.c.bf16 %v2243, %v2241
        %v2264 = vpack.c.bf16 %v2244, %v2242
        %v2265 = vpack.c.bf16 %v2247, %v2245
        %v2266 = vpack.c.bf16 %v2248, %v2246
        %v2271 = vunpack.c.l.b16 %v2209
        %v2272 = vunpack.c.h.b16 %v2209
        %v2273 = vunpack.c.l.b16 %v2210
        %v2274 = vunpack.c.h.b16 %v2210
        %v2275 = vunpack.c.l.b16 %v2211
        %v2276 = vunpack.c.h.b16 %v2211
        %v2277 = vunpack.c.l.b16 %v2212
        %v2278 = vunpack.c.h.b16 %v2212
        %v2279 = vpack.c.b16 %v2273, %v2271
        %v2280 = vpack.c.b16 %v2274, %v2272
        %v2281 = vpack.c.b16 %v2277, %v2275
        %v2282 = vpack.c.b16 %v2278, %v2276
        %vm2285 = vcmask 130048
        %v2287 = vsel %vm2285, %v2280, 0
        %v2290 = vsel %vm2285, %v2282, 0
        %2292 = vmatprep.subr.bf16.mxu0 %v2250
        %2293 = vmatpush1.bf16.msra.mxu0 %v2249
        %2294 = vmatprep.subr.bf16.mxu0 %v2252
        %2295 = vmatpush1.bf16.msra.mxu0 %v2251
        %2296 = vmatprep.subr.bf16.mxu0 %v2254
        %2297 = vmatpush1.bf16.msra.mxu0 %v2253
        %2298 = vmatprep.subr.bf16.mxu0 %v2256
        %2299 = vmatpush1.bf16.msra.mxu0 %v2255
        %2300 = vmatprep.subr.bf16.mxu0 %v2258
        %2301 = vmatpush1.bf16.msra.mxu0 %v2257
        %2302 = vmatprep.subr.bf16.mxu0 %v2260
        %2303 = vmatpush1.bf16.msra.mxu0 %v2259
        %2304 = vmatprep.subr.bf16.mxu0 %v2262
        %2305 = vmatpush1.bf16.msra.mxu0 %v2261
        %2306 = vmatprep.subr.bf16.mxu0 %v2264
        %2307 = vmatpush1.bf16.msra.mxu0 %v2263
        %2308 = vmatprep.subr.bf16.mxu0 %v2266
        %2309 = vmatpush1.bf16.msra.mxu0 %v2265
        %2310 = vmatprep.subr.bf16.mxu0 0
        %2311 = vmatpush1.bf16.msra.mxu0 0
        %2312 = vmatprep.subr.bf16.mxu0 0
        %2313 = vmatpush1.bf16.msra.mxu0 0
        %2314 = vmatprep.subr.bf16.mxu0 0
        %2315 = vmatpush1.bf16.msra.mxu0 0
        %2316 = vmatprep.subr.bf16.mxu0 0
        %2317 = vmatpush1.bf16.msra.mxu0 0
        %2318 = vmatprep.subr.bf16.mxu0 0
        %2319 = vmatpush1.bf16.msra.mxu0 0
        %2320 = vmatprep.subr.bf16.mxu0 0
        %2321 = vmatpush1.bf16.msra.mxu0 0
        %2322 = vmatprep.subr.bf16.mxu0 0
        %2323 = vmatpush1.bf16.msra.mxu0 0
        %2324 = vmatprep.mubr.bf16.mxu0 %v2287
        %2325 = vmatmul.mubr.bf16.gmra.mrb[0].mxu0 %v2279
        %v2326 = vpop.f32.mrb[0].mxu0
        %v2327 = vadd.f32 0.0, %v2326
        %v2328 = vpop.f32.mrb[0].mxu0
        %v2329 = vadd.f32 0.0, %v2328
        %v2330 = vpop.f32.mrb[0].mxu0
        %v2331 = vadd.f32 0.0, %v2330
        %v2332 = vpop.f32.mrb[0].mxu0
        %v2333 = vadd.f32 0.0, %v2332
        %2334 = vmatprep.mubr.bf16.mxu0 %v2290
        %2335 = vmatmul.mubr.bf16.gmra.mrb[0].mxu0 %v2281
        %v2336 = vpop.f32.mrb[0].mxu0
        %v2337 = vadd.f32 0.0, %v2336
        %v2338 = vpop.f32.mrb[0].mxu0
        %v2339 = vadd.f32 0.0, %v2338
        %v2340 = vpop.f32.mrb[0].mxu0
        %v2341 = vadd.f32 0.0, %v2340
        %v2342 = vpop.f32.mrb[0].mxu0
        %v2343 = vadd.f32 0.0, %v2342
        %2344 = vdwg.mxu0
        %2349 = vrot.lane.b32.xlu0 %v2327, 79
        %v2350 = vpop.permute.xlu0 %2349
        %2351 = vrot.lane.b32.xlu0 %v2331, 79
        %v2352 = vpop.permute.xlu0 %2351
        %2353 = vrot.lane.b32.xlu0 %v2337, 79
        %v2354 = vpop.permute.xlu0 %2353
        %2355 = vrot.lane.b32.xlu0 %v2341, 79
        %v2356 = vpop.permute.xlu0 %2355
        %v2361 = vmax.f32 %v2327, %v2350
        %v2362 = vmax.f32 %v2331, %v2352
        %v2363 = vmax.f32 %v2337, %v2354
        %v2364 = vmax.f32 %v2341, %v2356
        %2369 = vrot.lane.b32.xlu0 %v2329, 79
        %v2370 = vpop.permute.xlu0 %2369
        %2371 = vrot.lane.b32.xlu0 %v2333, 79
        %v2372 = vpop.permute.xlu0 %2371
        %2373 = vrot.lane.b32.xlu0 %v2339, 79
        %v2374 = vpop.permute.xlu0 %2373
        %2375 = vrot.lane.b32.xlu0 %v2343, 79
        %v2376 = vpop.permute.xlu0 %2375
        %v2381 = vmax.f32 %v2327, %v2370
        %v2382 = vmax.f32 %v2329, %v2370
        %v2383 = vmax.f32 %v2331, %v2372
        %v2384 = vmax.f32 %v2333, %v2372
        %v2385 = vmax.f32 %v2337, %v2374
        %v2386 = vmax.f32 %v2339, %v2374
        %v2387 = vmax.f32 %v2341, %v2376
        %v2388 = vmax.f32 %v2343, %v2376
        %2397 = vrot.lane.b32.xlu0 %v2381, 30
        %v2398 = vpop.permute.xlu0 %2397
        %2399 = vrot.lane.b32.xlu0 %v2382, 30
        %v2400 = vpop.permute.xlu0 %2399
        %2401 = vrot.lane.b32.xlu0 %v2383, 30
        %v2402 = vpop.permute.xlu0 %2401
        %2403 = vrot.lane.b32.xlu0 %v2384, 30
        %v2404 = vpop.permute.xlu0 %2403
        %2405 = vrot.lane.b32.xlu0 %v2385, 30
        %v2406 = vpop.permute.xlu0 %2405
        %2407 = vrot.lane.b32.xlu0 %v2386, 30
        %v2408 = vpop.permute.xlu0 %2407
        %2409 = vrot.lane.b32.xlu0 %v2387, 30
        %v2410 = vpop.permute.xlu0 %2409
        %2411 = vrot.lane.b32.xlu0 %v2388, 30
        %v2412 = vpop.permute.xlu0 %2411
        %vm2413 = vcmask 244736
        %v2414 = vsel %vm2413, %v2398, %v2400
        %v2415 = vsel %vm2413, %v2402, %v2404
        %v2416 = vsel %vm2413, %v2406, %v2408
        %v2417 = vsel %vm2413, %v2410, %v2412
        %v2422 = vmax.f32 %v2361, %v2414
        %v2423 = vmax.f32 %v2362, %v2415
        %v2424 = vmax.f32 %v2363, %v2416
        %v2425 = vmax.f32 %v2364, %v2417
        %v2426 = vld [vmem:[%s5] sm:$0xff]
        %v2427 = vld [vmem:[%s5 + $0x8] sm:$0xff]
        %v2428 = vld [vmem:[%s5 + $0x10] sm:$0xff]
        %v2429 = vld [vmem:[%s5 + $0x18] sm:$0xff]
        %2431 = vset.pattern.permute.xlu0 0
        %2432 = vperm.xlu0 %2431, %v2426
        %v2433 = vpop.permute.xlu0 %2432
        %2436 = vset.pattern.permute.xlu0 0
        %2437 = vperm.xlu0 %2436, %v2427
        %v2438 = vpop.permute.xlu0 %2437
        %2441 = vset.pattern.permute.xlu0 0
        %2442 = vperm.xlu0 %2441, %v2428
        %v2443 = vpop.permute.xlu0 %2442
        %2446 = vset.pattern.permute.xlu0 0
        %2447 = vperm.xlu0 %2446, %v2429
        %v2448 = vpop.permute.xlu0 %2447
        %v2450 = vadd.f32 %v2422, %v2433
        %v2451 = vadd.f32 %v2423, %v2438
        %v2452 = vadd.f32 %v2424, %v2443
        %v2453 = vadd.f32 %v2425, %v2448
        %v2454 = vmax.f32 %v2450, 0.0
        %v2455 = vmax.f32 %v2451, 0.0
        %v2456 = vmax.f32 %v2452, 0.0
        %v2457 = vmax.f32 %v2453, 0.0
        %2458 = vst [vmem:[#allocation6] sm:$0xff] 0.0
        %2459 = vst [vmem:[#allocation6 + $0x8] sm:$0xff] 0.0
        %2460 = vst [vmem:[#allocation6 + $0x10] sm:$0xff] 0.0
        %2461 = vst [vmem:[#allocation6 + $0x18] sm:$0xff] 0.0
        %2462 = vst [vmem:[#allocation6 + $0x20] sm:$0xff] 0.0
        %2463 = vst [vmem:[#allocation6 + $0x28] sm:$0xff] 0.0
        %2464 = vst [vmem:[#allocation6 + $0x30] sm:$0xff] 0.0
        %2465 = vst [vmem:[#allocation6 + $0x38] sm:$0xff] 0.0
        %2466 = vst [vmem:[#allocation6 + $0x40] sm:$0xff] 0.0
        %2467 = vst [vmem:[#allocation6 + $0x48] sm:$0xff] 0.0
        %2468 = vst [vmem:[#allocation6 + $0x50] sm:$0xff] 0.0
        %2469 = vst [vmem:[#allocation6 + $0x58] sm:$0xff] 0.0
        %vm2470 = vcmask 261120
        %2471 = vst.msk [vmem:[#allocation6 + $0x60] sm:$0xff] %vm2470, 0.0
        %2472 = vst.msk [vmem:[#allocation6] sm:$0x1] %vm380, %v2454
        %v2474 = vrot.slane %v2454, 1
        %2475 = vrot.lane.b32.xlu0 %v2474, 49
        %v2476 = vpop.permute.xlu0 %2475
        %2478 = vst.msk [vmem:[#allocation6] sm:$0x1] %vm387, %v2476
        %v2479 = vrot.slane %v2454, 2
        %2480 = vrot.lane.b32.xlu0 %v2479, 98
        %v2481 = vpop.permute.xlu0 %2480
        %2483 = vst.msk [vmem:[#allocation6] sm:$0x1] %vm399, %v2481
        %2484 = vst.msk [vmem:[#allocation6 + $0x8] sm:$0x1] %vm401, %v2481
        %v2485 = vrot.slane %v2454, 3
        %2486 = vrot.lane.b32.xlu0 %v2485, 19
        %v2487 = vpop.permute.xlu0 %2486
        %2489 = vst.msk [vmem:[#allocation6 + $0x8] sm:$0x1] %vm408, %v2487
        %v2490 = vrot.slane %v2454, 4
        %2491 = vrot.lane.b32.xlu0 %v2490, 68
        %v2492 = vpop.permute.xlu0 %2491
        %2494 = vst.msk [vmem:[#allocation6 + $0x8] sm:$0x1] %vm415, %v2492
        %v2495 = vrot.slane %v2454, 5
        %2496 = vrot.lane.b32.xlu0 %v2495, 117
        %v2497 = vpop.permute.xlu0 %2496
        %2499 = vst.msk [vmem:[#allocation6 + $0x8] sm:$0x1] %vm422, %v2497
        %2500 = vst.msk [vmem:[#allocation6 + $0x10] sm:$0x1] %vm424, %v2497
        %v2501 = vrot.slane %v2454, 6
        %2502 = vrot.lane.b32.xlu0 %v2501, 38
        %v2503 = vpop.permute.xlu0 %2502
        %2505 = vst.msk [vmem:[#allocation6 + $0x10] sm:$0x1] %vm431, %v2503
        %v2506 = vrot.slane %v2454, 7
        %2507 = vrot.lane.b32.xlu0 %v2506, 87
        %v2508 = vpop.permute.xlu0 %2507
        %2510 = vst.msk [vmem:[#allocation6 + $0x10] sm:$0x1] %vm438, %v2508
        %2511 = vst.msk [vmem:[#allocation6 + $0x18] sm:$0x1] %vm440, %v2508
        %2513 = vrot.lane.b32.xlu0 %v2455, 8
        %v2514 = vpop.permute.xlu0 %2513
        %2516 = vst.msk [vmem:[#allocation6 + $0x18] sm:$0x1] %vm448, %v2514
        %v2517 = vrot.slane %v2455, 1
        %2518 = vrot.lane.b32.xlu0 %v2517, 57
        %v2519 = vpop.permute.xlu0 %2518
        %2521 = vst.msk [vmem:[#allocation6 + $0x18] sm:$0x1] %vm455, %v2519
        %v2522 = vrot.slane %v2455, 2
        %2523 = vrot.lane.b32.xlu0 %v2522, 106
        %v2524 = vpop.permute.xlu0 %2523
        %2526 = vst.msk [vmem:[#allocation6 + $0x18] sm:$0x1] %vm463, %v2524
        %2527 = vst.msk [vmem:[#allocation6 + $0x20] sm:$0x1] %vm465, %v2524
        %v2528 = vrot.slane %v2455, 3
        %2529 = vrot.lane.b32.xlu0 %v2528, 27
        %v2530 = vpop.permute.xlu0 %2529
        %2532 = vst.msk [vmem:[#allocation6 + $0x20] sm:$0x1] %vm472, %v2530
        %v2533 = vrot.slane %v2455, 4
        %2534 = vrot.lane.b32.xlu0 %v2533, 76
        %v2535 = vpop.permute.xlu0 %2534
        %2537 = vst.msk [vmem:[#allocation6 + $0x20] sm:$0x1] %vm479, %v2535
        %v2538 = vrot.slane %v2455, 5
        %2539 = vrot.lane.b32.xlu0 %v2538, 125
        %v2540 = vpop.permute.xlu0 %2539
        %2542 = vst.msk [vmem:[#allocation6 + $0x20] sm:$0x1] %vm486, %v2540
        %2543 = vst.msk [vmem:[#allocation6 + $0x28] sm:$0x1] %vm488, %v2540
        %v2544 = vrot.slane %v2455, 6
        %2545 = vrot.lane.b32.xlu0 %v2544, 46
        %v2546 = vpop.permute.xlu0 %2545
        %2548 = vst.msk [vmem:[#allocation6 + $0x28] sm:$0x1] %vm495, %v2546
        %v2549 = vrot.slane %v2455, 7
        %2550 = vrot.lane.b32.xlu0 %v2549, 95
        %v2551 = vpop.permute.xlu0 %2550
        %2553 = vst.msk [vmem:[#allocation6 + $0x28] sm:$0x1] %vm502, %v2551
        %2554 = vst.msk [vmem:[#allocation6 + $0x30] sm:$0x1] %vm504, %v2551
        %2556 = vrot.lane.b32.xlu0 %v2456, 16
        %v2557 = vpop.permute.xlu0 %2556
        %vm2559 = vcmask 524416
        %2560 = vst.msk [vmem:[#allocation6 + $0x30] sm:$0x1] %vm2559, %v2557
        %v2561 = vrot.slane %v2456, 1
        %2562 = vrot.lane.b32.xlu0 %v2561, 65
        %v2563 = vpop.permute.xlu0 %2562
        %vm2565 = vcmask 926216
        %2566 = vst.msk [vmem:[#allocation6 + $0x30] sm:$0x1] %vm2565, %v2563
        %v2567 = vrot.slane %v2456, 2
        %2568 = vrot.lane.b32.xlu0 %v2567, 114
        %v2569 = vpop.permute.xlu0 %2568
        %vm2571 = vcmask 1041296
        %2572 = vst.msk [vmem:[#allocation6 + $0x30] sm:$0x1] %vm2571, %v2569
        %vm2573 = vcmask 278528
        %2574 = vst.msk [vmem:[#allocation6 + $0x38] sm:$0x1] %vm2573, %v2569
        %v2575 = vrot.slane %v2456, 3
        %2576 = vrot.lane.b32.xlu0 %v2575, 35
        %v2577 = vpop.permute.xlu0 %2576
        %vm2579 = vcmask 680216
        %2580 = vst.msk [vmem:[#allocation6 + $0x38] sm:$0x1] %vm2579, %v2577
        %v2581 = vrot.slane %v2456, 4
        %2582 = vrot.lane.b32.xlu0 %v2581, 84
        %v2583 = vpop.permute.xlu0 %2582
        %vm2585 = vcmask 1041056
        %2586 = vst.msk [vmem:[#allocation6 + $0x38] sm:$0x1] %vm2585, %v2583
        %vm2587 = vcmask 32768
        %2588 = vst.msk [vmem:[#allocation6 + $0x40] sm:$0x1] %vm2587, %v2583
        %v2589 = vrot.slane %v2456, 5
        %2590 = vrot.lane.b32.xlu0 %v2589, 5
        %v2591 = vpop.permute.xlu0 %2590
        %vm2593 = vcmask 434216
        %2594 = vst.msk [vmem:[#allocation6 + $0x40] sm:$0x1] %vm2593, %v2591
        %v2595 = vrot.slane %v2456, 6
        %2596 = vrot.lane.b32.xlu0 %v2595, 54
        %v2597 = vpop.permute.xlu0 %2596
        %vm2599 = vcmask 836016
        %2600 = vst.msk [vmem:[#allocation6 + $0x40] sm:$0x1] %vm2599, %v2597
        %v2601 = vrot.slane %v2456, 7
        %2602 = vrot.lane.b32.xlu0 %v2601, 103
        %v2603 = vpop.permute.xlu0 %2602
        %vm2605 = vcmask 1041208
        %2606 = vst.msk [vmem:[#allocation6 + $0x40] sm:$0x1] %vm2605, %v2603
        %vm2607 = vcmask 188416
        %2608 = vst.msk [vmem:[#allocation6 + $0x48] sm:$0x1] %vm2607, %v2603
        %2610 = vrot.lane.b32.xlu0 %v2457, 24
        %v2611 = vpop.permute.xlu0 %2610
        %vm2613 = vcmask 590016
        %2614 = vst.msk [vmem:[#allocation6 + $0x48] sm:$0x1] %vm2613, %v2611
        %v2615 = vrot.slane %v2457, 1
        %2616 = vrot.lane.b32.xlu0 %v2615, 73
        %v2617 = vpop.permute.xlu0 %2616
        %vm2619 = vcmask 991816
        %2620 = vst.msk [vmem:[#allocation6 + $0x48] sm:$0x1] %vm2619, %v2617
        %v2621 = vrot.slane %v2457, 2
        %2622 = vrot.lane.b32.xlu0 %v2621, 122
        %v2623 = vpop.permute.xlu0 %2622
        %vm2625 = vcmask 1041360
        %2626 = vst.msk [vmem:[#allocation6 + $0x48] sm:$0x1] %vm2625, %v2623
        %vm2627 = vcmask 344064
        %2628 = vst.msk [vmem:[#allocation6 + $0x50] sm:$0x1] %vm2627, %v2623
        %v2629 = vrot.slane %v2457, 3
        %2630 = vrot.lane.b32.xlu0 %v2629, 43
        %v2631 = vpop.permute.xlu0 %2630
        %vm2633 = vcmask 745816
        %2634 = vst.msk [vmem:[#allocation6 + $0x50] sm:$0x1] %vm2633, %v2631
        %v2635 = vrot.slane %v2457, 4
        %2636 = vrot.lane.b32.xlu0 %v2635, 92
        %v2637 = vpop.permute.xlu0 %2636
        %vm2639 = vcmask 1041120
        %2640 = vst.msk [vmem:[#allocation6 + $0x50] sm:$0x1] %vm2639, %v2637
        %vm2641 = vcmask 98304
        %2642 = vst.msk [vmem:[#allocation6 + $0x58] sm:$0x1] %vm2641, %v2637
        %v2643 = vrot.slane %v2457, 5
        %2644 = vrot.lane.b32.xlu0 %v2643, 13
        %v2645 = vpop.permute.xlu0 %2644
        %vm2647 = vcmask 499816
        %2648 = vst.msk [vmem:[#allocation6 + $0x58] sm:$0x1] %vm2647, %v2645
        %v2649 = vrot.slane %v2457, 6
        %2650 = vrot.lane.b32.xlu0 %v2649, 62
        %v2651 = vpop.permute.xlu0 %2650
        %vm2653 = vcmask 901616
        %2654 = vst.msk [vmem:[#allocation6 + $0x58] sm:$0x1] %vm2653, %v2651
        %v2655 = vrot.slane %v2457, 7
        %2656 = vrot.lane.b32.xlu0 %v2655, 111
        %v2657 = vpop.permute.xlu0 %2656
        %vm2659 = vcmask 1041272
        %2660 = vst.msk [vmem:[#allocation6 + $0x58] sm:$0x1] %vm2659, %v2657
        %vm2661 = vcmask 253952
        %2662 = vst.msk [vmem:[#allocation6 + $0x60] sm:$0x1] %vm2661, %v2657
        %v2663 = vld [vmem:[#allocation6] sm:$0xff]
        %v2664 = vld [vmem:[#allocation6 + $0x8] sm:$0xff]
        %v2665 = vld [vmem:[#allocation6 + $0x10] sm:$0xff]
        %v2666 = vld [vmem:[#allocation6 + $0x18] sm:$0xff]
        %v2667 = vld [vmem:[#allocation6 + $0x20] sm:$0xff]
        %v2668 = vld [vmem:[#allocation6 + $0x28] sm:$0xff]
        %v2669 = vld [vmem:[#allocation6 + $0x30] sm:$0xff]
        %v2670 = vld [vmem:[#allocation6 + $0x38] sm:$0xff]
        %v2671 = vld [vmem:[#allocation6 + $0x40] sm:$0xff]
        %v2672 = vld [vmem:[#allocation6 + $0x48] sm:$0xff]
        %v2673 = vld [vmem:[#allocation6 + $0x50] sm:$0xff]
        %v2674 = vld [vmem:[#allocation6 + $0x58] sm:$0xff]
        %v2675 = vld [vmem:[#allocation6 + $0x60] sm:$0xff]
        %v2676 = vpack.c.bf16 %v2663, %v2663
        %v2677 = vpack.c.bf16 %v2664, %v2664
        %v2678 = vpack.c.bf16 %v2665, %v2665
        %v2679 = vpack.c.bf16 %v2666, %v2666
        %v2680 = vpack.c.bf16 %v2667, %v2667
        %v2681 = vpack.c.bf16 %v2668, %v2668
        %v2682 = vpack.c.bf16 %v2669, %v2669
        %v2683 = vpack.c.bf16 %v2670, %v2670
        %v2684 = vpack.c.bf16 %v2671, %v2671
        %v2685 = vpack.c.bf16 %v2672, %v2672
        %v2686 = vpack.c.bf16 %v2673, %v2673
        %v2687 = vpack.c.bf16 %v2674, %v2674
        %v2688 = vpack.c.bf16 %v2675, %v2675
        %v2689 = vld [vmem:[%s6] sm:$0xf]
        %v2690 = vld [vmem:[%s6 + $0x4] sm:$0xf]
        %v2691 = vld [vmem:[%s6 + $0x8] sm:$0xf]
        %v2692 = vld [vmem:[%s6 + $0xc] sm:$0xf]
        %v2693 = vld [vmem:[%s6 + $0x10] sm:$0xf]
        %v2694 = vld [vmem:[%s6 + $0x14] sm:$0xf]
        %v2695 = vld [vmem:[%s6 + $0x18] sm:$0xf]
        %v2696 = vld [vmem:[%s6 + $0x1c] sm:$0xf]
        %v2697 = vld [vmem:[%s6 + $0x20] sm:$0xf]
        %v2698 = vld [vmem:[%s6 + $0x24] sm:$0xf]
        %v2699 = vld [vmem:[%s6 + $0x28] sm:$0xf]
        %v2700 = vld [vmem:[%s6 + $0x2c] sm:$0xf]
        %v2701 = vld [vmem:[%s6 + $0x30] sm:$0xf]
        %v2702 = vld [vmem:[%s6 + $0x34] sm:$0xf]
        %v2703 = vld [vmem:[%s6 + $0x38] sm:$0xf]
        %v2704 = vld [vmem:[%s6 + $0x3c] sm:$0xf]
        %v2705 = vld [vmem:[%s6 + $0x40] sm:$0xf]
        %v2706 = vld [vmem:[%s6 + $0x44] sm:$0xf]
        %v2707 = vld [vmem:[%s6 + $0x48] sm:$0xf]
        %v2708 = vld [vmem:[%s6 + $0x4c] sm:$0xf]
        %v2709 = vld [vmem:[%s6 + $0x50] sm:$0xf]
        %v2710 = vld [vmem:[%s6 + $0x54] sm:$0xf]
        %v2711 = vld [vmem:[%s6 + $0x58] sm:$0xf]
        %v2712 = vld [vmem:[%s6 + $0x5c] sm:$0xf]
        %v2713 = vld [vmem:[%s6 + $0x60] sm:$0xf]
        %v2714 = vld [vmem:[%s6 + $0x64] sm:$0xf]
        %v2715 = vld [vmem:[%s6 + $0x68] sm:$0xf]
        %v2716 = vld [vmem:[%s6 + $0x6c] sm:$0xf]
        %v2717 = vld [vmem:[%s6 + $0x70] sm:$0xf]
        %v2718 = vld [vmem:[%s6 + $0x74] sm:$0xf]
        %v2719 = vld [vmem:[%s6 + $0x78] sm:$0xf]
        %v2720 = vld [vmem:[%s6 + $0x7c] sm:$0xf]
        %v2721 = vld [vmem:[%s6 + $0x80] sm:$0xf]
        %v2722 = vld [vmem:[%s6 + $0x84] sm:$0xf]
        %v2723 = vld [vmem:[%s6 + $0x88] sm:$0xf]
        %v2724 = vld [vmem:[%s6 + $0x8c] sm:$0xf]
        %v2725 = vld [vmem:[%s6 + $0x90] sm:$0xf]
        %v2726 = vld [vmem:[%s6 + $0x94] sm:$0xf]
        %v2727 = vld [vmem:[%s6 + $0x98] sm:$0xf]
        %v2728 = vld [vmem:[%s6 + $0x9c] sm:$0xf]
        %v2729 = vld [vmem:[%s6 + $0xa0] sm:$0xf]
        %v2730 = vld [vmem:[%s6 + $0xa4] sm:$0xf]
        %v2731 = vld [vmem:[%s6 + $0xa8] sm:$0xf]
        %v2732 = vld [vmem:[%s6 + $0xac] sm:$0xf]
        %v2733 = vld [vmem:[%s6 + $0xb0] sm:$0xf]
        %v2734 = vld [vmem:[%s6 + $0xb4] sm:$0xf]
        %v2735 = vld [vmem:[%s6 + $0xb8] sm:$0xf]
        %v2736 = vld [vmem:[%s6 + $0xbc] sm:$0xf]
        %v2737 = vld [vmem:[%s6 + $0xc0] sm:$0xf]
        %v2738 = vld [vmem:[%s6 + $0xc4] sm:$0xf]
        %v2739 = vld [vmem:[%s6 + $0xc8] sm:$0xf]
        %v2740 = vld [vmem:[%s6 + $0xcc] sm:$0xf]
        %v2741 = vld [vmem:[%s6 + $0xd0] sm:$0xf]
        %v2742 = vld [vmem:[%s6 + $0xd4] sm:$0xf]
        %v2743 = vld [vmem:[%s6 + $0xd8] sm:$0xf]
        %v2744 = vld [vmem:[%s6 + $0xdc] sm:$0xf]
        %v2745 = vld [vmem:[%s6 + $0xe0] sm:$0xf]
        %v2746 = vld [vmem:[%s6 + $0xe4] sm:$0xf]
        %v2747 = vld [vmem:[%s6 + $0xe8] sm:$0xf]
        %v2748 = vld [vmem:[%s6 + $0xec] sm:$0xf]
        %v2749 = vld [vmem:[%s6 + $0xf0] sm:$0xf]
        %v2750 = vld [vmem:[%s6 + $0xf4] sm:$0xf]
        %v2751 = vld [vmem:[%s6 + $0xf8] sm:$0xf]
        %v2752 = vld [vmem:[%s6 + $0xfc] sm:$0xf]
        %v2753 = vld [vmem:[%s6 + $0x100] sm:$0xf]
        %v2754 = vld [vmem:[%s6 + $0x104] sm:$0xf]
        %v2755 = vld [vmem:[%s6 + $0x108] sm:$0xf]
        %v2756 = vld [vmem:[%s6 + $0x10c] sm:$0xf]
        %v2757 = vld [vmem:[%s6 + $0x110] sm:$0xf]
        %v2758 = vld [vmem:[%s6 + $0x114] sm:$0xf]
        %v2759 = vld [vmem:[%s6 + $0x118] sm:$0xf]
        %v2760 = vld [vmem:[%s6 + $0x11c] sm:$0xf]
        %v2761 = vld [vmem:[%s6 + $0x120] sm:$0xf]
        %v2762 = vld [vmem:[%s6 + $0x124] sm:$0xf]
        %v2763 = vld [vmem:[%s6 + $0x128] sm:$0xf]
        %v2764 = vld [vmem:[%s6 + $0x12c] sm:$0xf]
        %v2765 = vld [vmem:[%s6 + $0x130] sm:$0xf]
        %v2766 = vld [vmem:[%s6 + $0x134] sm:$0xf]
        %v2767 = vld [vmem:[%s6 + $0x138] sm:$0xf]
        %v2768 = vld [vmem:[%s6 + $0x13c] sm:$0xf]
        %v2769 = vld [vmem:[%s6 + $0x140] sm:$0xf]
        %v2770 = vld [vmem:[%s6 + $0x144] sm:$0xf]
        %v2771 = vld [vmem:[%s6 + $0x148] sm:$0xf]
        %v2772 = vld [vmem:[%s6 + $0x14c] sm:$0xf]
        %v2773 = vld [vmem:[%s6 + $0x150] sm:$0xf]
        %v2774 = vld [vmem:[%s6 + $0x154] sm:$0xf]
        %v2775 = vld [vmem:[%s6 + $0x158] sm:$0xf]
        %v2776 = vld [vmem:[%s6 + $0x15c] sm:$0xf]
        %v2777 = vld [vmem:[%s6 + $0x160] sm:$0xf]
        %v2778 = vld [vmem:[%s6 + $0x164] sm:$0xf]
        %v2779 = vld [vmem:[%s6 + $0x168] sm:$0xf]
        %v2780 = vld [vmem:[%s6 + $0x16c] sm:$0xf]
        %v2781 = vld [vmem:[%s6 + $0x170] sm:$0xf]
        %v2782 = vld [vmem:[%s6 + $0x174] sm:$0xf]
        %v2783 = vld [vmem:[%s6 + $0x178] sm:$0xf]
        %v2784 = vld [vmem:[%s6 + $0x17c] sm:$0xf]
        %v2785 = vld [vmem:[%s6 + $0x180] sm:$0xf]
        %v2786 = vld [vmem:[%s6 + $0x184] sm:$0xf]
        %v2787 = vld [vmem:[%s6 + $0x188] sm:$0xf]
        %v2788 = vld [vmem:[%s6 + $0x18c] sm:$0xf]
        %v2789 = vld [vmem:[%s6 + $0x190] sm:$0xf]
        %v2790 = vld [vmem:[%s6 + $0x194] sm:$0xf]
        %v2791 = vld [vmem:[%s6 + $0x198] sm:$0xf]
        %v2792 = vld [vmem:[%s6 + $0x19c] sm:$0xf]
        %v2793 = vld [vmem:[%s6 + $0x1a0] sm:$0xf]
        %v2794 = vld [vmem:[%s6 + $0x1a4] sm:$0xf]
        %v2795 = vld [vmem:[%s6 + $0x1a8] sm:$0xf]
        %v2796 = vld [vmem:[%s6 + $0x1ac] sm:$0xf]
        %v2797 = vld [vmem:[%s6 + $0x1b0] sm:$0xf]
        %v2798 = vld [vmem:[%s6 + $0x1b4] sm:$0xf]
        %v2799 = vld [vmem:[%s6 + $0x1b8] sm:$0xf]
        %v2800 = vld [vmem:[%s6 + $0x1bc] sm:$0xf]
        %v2801 = vld [vmem:[%s6 + $0x1c0] sm:$0xf]
        %v2802 = vld [vmem:[%s6 + $0x1c4] sm:$0xf]
        %v2803 = vld [vmem:[%s6 + $0x1c8] sm:$0xf]
        %v2804 = vld [vmem:[%s6 + $0x1cc] sm:$0xf]
        %v2805 = vld [vmem:[%s6 + $0x1d0] sm:$0xf]
        %v2806 = vld [vmem:[%s6 + $0x1d4] sm:$0xf]
        %v2807 = vld [vmem:[%s6 + $0x1d8] sm:$0xf]
        %v2808 = vld [vmem:[%s6 + $0x1dc] sm:$0xf]
        %v2809 = vld [vmem:[%s6 + $0x1e0] sm:$0xf]
        %v2810 = vld [vmem:[%s6 + $0x1e4] sm:$0xf]
        %v2811 = vld [vmem:[%s6 + $0x1e8] sm:$0xf]
        %v2812 = vld [vmem:[%s6 + $0x1ec] sm:$0xf]
        %v2813 = vld [vmem:[%s6 + $0x1f0] sm:$0xf]
        %v2814 = vld [vmem:[%s6 + $0x1f4] sm:$0xf]
        %v2815 = vld [vmem:[%s6 + $0x1f8] sm:$0xf]
        %v2816 = vld [vmem:[%s6 + $0x1fc] sm:$0xf]
        %v2817 = vld [vmem:[%s6 + $0x200] sm:$0xf]
        %v2818 = vld [vmem:[%s6 + $0x204] sm:$0xf]
        %v2819 = vld [vmem:[%s6 + $0x208] sm:$0xf]
        %v2820 = vld [vmem:[%s6 + $0x20c] sm:$0xf]
        %v2821 = vld [vmem:[%s6 + $0x210] sm:$0xf]
        %v2822 = vld [vmem:[%s6 + $0x214] sm:$0xf]
        %v2823 = vld [vmem:[%s6 + $0x218] sm:$0xf]
        %v2824 = vld [vmem:[%s6 + $0x21c] sm:$0xf]
        %v2825 = vld [vmem:[%s6 + $0x220] sm:$0xf]
        %v2826 = vld [vmem:[%s6 + $0x224] sm:$0xf]
        %v2827 = vld [vmem:[%s6 + $0x228] sm:$0xf]
        %v2828 = vld [vmem:[%s6 + $0x22c] sm:$0xf]
        %v2829 = vld [vmem:[%s6 + $0x230] sm:$0xf]
        %v2830 = vld [vmem:[%s6 + $0x234] sm:$0xf]
        %v2831 = vld [vmem:[%s6 + $0x238] sm:$0xf]
        %v2832 = vld [vmem:[%s6 + $0x23c] sm:$0xf]
        %v2833 = vld [vmem:[%s6 + $0x240] sm:$0xf]
        %v2834 = vld [vmem:[%s6 + $0x244] sm:$0xf]
        %v2835 = vld [vmem:[%s6 + $0x248] sm:$0xf]
        %v2836 = vld [vmem:[%s6 + $0x24c] sm:$0xf]
        %v2837 = vld [vmem:[%s6 + $0x250] sm:$0xf]
        %v2838 = vld [vmem:[%s6 + $0x254] sm:$0xf]
        %v2839 = vld [vmem:[%s6 + $0x258] sm:$0xf]
        %v2840 = vld [vmem:[%s6 + $0x25c] sm:$0xf]
        %v2841 = vld [vmem:[%s6 + $0x260] sm:$0xf]
        %v2842 = vld [vmem:[%s6 + $0x264] sm:$0xf]
        %v2843 = vld [vmem:[%s6 + $0x268] sm:$0xf]
        %v2844 = vld [vmem:[%s6 + $0x26c] sm:$0xf]
        %v2845 = vld [vmem:[%s6 + $0x270] sm:$0xf]
        %v2846 = vld [vmem:[%s6 + $0x274] sm:$0xf]
        %v2847 = vld [vmem:[%s6 + $0x278] sm:$0xf]
        %v2848 = vld [vmem:[%s6 + $0x27c] sm:$0xf]
        %v2849 = vld [vmem:[%s6 + $0x280] sm:$0xf]
        %v2850 = vld [vmem:[%s6 + $0x284] sm:$0xf]
        %v2851 = vld [vmem:[%s6 + $0x288] sm:$0xf]
        %v2852 = vld [vmem:[%s6 + $0x28c] sm:$0xf]
        %v2853 = vld [vmem:[%s6 + $0x290] sm:$0xf]
        %v2854 = vld [vmem:[%s6 + $0x294] sm:$0xf]
        %v2855 = vld [vmem:[%s6 + $0x298] sm:$0xf]
        %v2856 = vld [vmem:[%s6 + $0x29c] sm:$0xf]
        %v2857 = vld [vmem:[%s6 + $0x2a0] sm:$0xf]
        %v2858 = vld [vmem:[%s6 + $0x2a4] sm:$0xf]
        %v2859 = vld [vmem:[%s6 + $0x2a8] sm:$0xf]
        %v2860 = vld [vmem:[%s6 + $0x2ac] sm:$0xf]
        %v2861 = vld [vmem:[%s6 + $0x2b0] sm:$0xf]
        %v2862 = vld [vmem:[%s6 + $0x2b4] sm:$0xf]
        %v2863 = vld [vmem:[%s6 + $0x2b8] sm:$0xf]
        %v2864 = vld [vmem:[%s6 + $0x2bc] sm:$0xf]
        %v2865 = vld [vmem:[%s6 + $0x2c0] sm:$0xf]
        %v2866 = vld [vmem:[%s6 + $0x2c4] sm:$0xf]
        %v2867 = vld [vmem:[%s6 + $0x2c8] sm:$0xf]
        %v2868 = vld [vmem:[%s6 + $0x2cc] sm:$0xf]
        %v2869 = vld [vmem:[%s6 + $0x2d0] sm:$0xf]
        %v2870 = vld [vmem:[%s6 + $0x2d4] sm:$0xf]
        %v2871 = vld [vmem:[%s6 + $0x2d8] sm:$0xf]
        %v2872 = vld [vmem:[%s6 + $0x2dc] sm:$0xf]
        %v2873 = vld [vmem:[%s6 + $0x2e0] sm:$0xf]
        %v2874 = vld [vmem:[%s6 + $0x2e4] sm:$0xf]
        %v2875 = vld [vmem:[%s6 + $0x2e8] sm:$0xf]
        %v2876 = vld [vmem:[%s6 + $0x2ec] sm:$0xf]
        %v2877 = vld [vmem:[%s6 + $0x2f0] sm:$0xf]
        %v2878 = vld [vmem:[%s6 + $0x2f4] sm:$0xf]
        %v2879 = vld [vmem:[%s6 + $0x2f8] sm:$0xf]
        %v2880 = vld [vmem:[%s6 + $0x2fc] sm:$0xf]
        %v2881 = vld [vmem:[%s6 + $0x300] sm:$0xf]
        %v2882 = vld [vmem:[%s6 + $0x304] sm:$0xf]
        %v2883 = vld [vmem:[%s6 + $0x308] sm:$0xf]
        %v2884 = vld [vmem:[%s6 + $0x30c] sm:$0xf]
        %v2885 = vld [vmem:[%s7] sm:$0x1]
        %v2887 = vlaneseq
        %v2888 = vshrl.u32 %v2887, 7
        %v2889 = vsub.s32 0, %v2888
        %v2890 = vrot.slane %v2885, %v2889
        %v3088 = vunpack.c.l.b16 %v2689
        %v3089 = vunpack.c.l.b16 %v2690
        %v3090 = vunpack.c.l.b16 %v2691
        %v3091 = vunpack.c.l.b16 %v2692
        %v3092 = vunpack.c.l.b16 %v2693
        %v3093 = vunpack.c.l.b16 %v2694
        %v3094 = vunpack.c.l.b16 %v2695
        %v3095 = vunpack.c.l.b16 %v2696
        %v3096 = vunpack.c.l.b16 %v2697
        %v3097 = vunpack.c.l.b16 %v2698
        %v3098 = vunpack.c.l.b16 %v2699
        %v3099 = vunpack.c.l.b16 %v2700
        %v3100 = vunpack.c.l.b16 %v2701
        %v3101 = vunpack.c.l.b16 %v2702
        %v3102 = vunpack.c.l.b16 %v2703
        %v3103 = vunpack.c.l.b16 %v2704
        %v3104 = vunpack.c.l.b16 %v2705
        %v3105 = vunpack.c.l.b16 %v2706
        %v3106 = vunpack.c.l.b16 %v2707
        %v3107 = vunpack.c.l.b16 %v2708
        %v3108 = vunpack.c.l.b16 %v2709
        %v3109 = vunpack.c.l.b16 %v2710
        %v3110 = vunpack.c.l.b16 %v2711
        %v3111 = vunpack.c.l.b16 %v2712
        %v3112 = vunpack.c.l.b16 %v2713
        %v3113 = vunpack.c.l.b16 %v2714
        %v3114 = vunpack.c.l.b16 %v2715
        %v3115 = vunpack.c.l.b16 %v2716
        %v3116 = vunpack.c.l.b16 %v2717
        %v3117 = vunpack.c.l.b16 %v2718
        %v3118 = vunpack.c.l.b16 %v2719
        %v3119 = vunpack.c.l.b16 %v2720
        %v3120 = vunpack.c.l.b16 %v2721
        %v3121 = vunpack.c.l.b16 %v2722
        %v3122 = vunpack.c.l.b16 %v2723
        %v3123 = vunpack.c.l.b16 %v2724
        %v3124 = vunpack.c.l.b16 %v2725
        %v3125 = vunpack.c.l.b16 %v2726
        %v3126 = vunpack.c.l.b16 %v2727
        %v3127 = vunpack.c.l.b16 %v2728
        %v3128 = vunpack.c.l.b16 %v2729
        %v3129 = vunpack.c.l.b16 %v2730
        %v3130 = vunpack.c.l.b16 %v2731
        %v3131 = vunpack.c.l.b16 %v2732
        %v3132 = vunpack.c.l.b16 %v2733
        %v3133 = vunpack.c.l.b16 %v2734
        %v3134 = vunpack.c.l.b16 %v2735
        %v3135 = vunpack.c.l.b16 %v2736
        %v3136 = vunpack.c.l.b16 %v2737
        %v3137 = vunpack.c.l.b16 %v2738
        %v3138 = vunpack.c.l.b16 %v2739
        %v3139 = vunpack.c.l.b16 %v2740
        %v3140 = vunpack.c.l.b16 %v2741
        %v3141 = vunpack.c.l.b16 %v2742
        %v3142 = vunpack.c.l.b16 %v2743
        %v3143 = vunpack.c.l.b16 %v2744
        %v3144 = vunpack.c.l.b16 %v2745
        %v3145 = vunpack.c.l.b16 %v2746
        %v3146 = vunpack.c.l.b16 %v2747
        %v3147 = vunpack.c.l.b16 %v2748
        %v3148 = vunpack.c.l.b16 %v2749
        %v3149 = vunpack.c.l.b16 %v2750
        %v3150 = vunpack.c.l.b16 %v2751
        %v3151 = vunpack.c.l.b16 %v2752
        %v3152 = vunpack.c.l.b16 %v2753
        %v3153 = vunpack.c.l.b16 %v2754
        %v3154 = vunpack.c.l.b16 %v2755
        %v3155 = vunpack.c.l.b16 %v2756
        %v3156 = vunpack.c.l.b16 %v2757
        %v3157 = vunpack.c.l.b16 %v2758
        %v3158 = vunpack.c.l.b16 %v2759
        %v3159 = vunpack.c.l.b16 %v2760
        %v3160 = vunpack.c.l.b16 %v2761
        %v3161 = vunpack.c.l.b16 %v2762
        %v3162 = vunpack.c.l.b16 %v2763
        %v3163 = vunpack.c.l.b16 %v2764
        %v3164 = vunpack.c.l.b16 %v2765
        %v3165 = vunpack.c.l.b16 %v2766
        %v3166 = vunpack.c.l.b16 %v2767
        %v3167 = vunpack.c.l.b16 %v2768
        %v3168 = vunpack.c.l.b16 %v2769
        %v3169 = vunpack.c.l.b16 %v2770
        %v3170 = vunpack.c.l.b16 %v2771
        %v3171 = vunpack.c.l.b16 %v2772
        %v3172 = vunpack.c.l.b16 %v2773
        %v3173 = vunpack.c.l.b16 %v2774
        %v3174 = vunpack.c.l.b16 %v2775
        %v3175 = vunpack.c.l.b16 %v2776
        %v3176 = vunpack.c.l.b16 %v2777
        %v3177 = vunpack.c.l.b16 %v2778
        %v3178 = vunpack.c.l.b16 %v2779
        %v3179 = vunpack.c.l.b16 %v2780
        %v3180 = vunpack.c.l.b16 %v2781
        %v3181 = vunpack.c.l.b16 %v2782
        %v3182 = vunpack.c.l.b16 %v2783
        %v3183 = vunpack.c.l.b16 %v2784
        %v3184 = vunpack.c.l.b16 %v2785
        %v3185 = vunpack.c.l.b16 %v2786
        %v3186 = vunpack.c.l.b16 %v2787
        %v3187 = vunpack.c.l.b16 %v2788
        %v3188 = vunpack.c.l.b16 %v2789
        %v3189 = vunpack.c.l.b16 %v2790
        %v3190 = vunpack.c.l.b16 %v2791
        %v3191 = vunpack.c.l.b16 %v2792
        %v3192 = vunpack.c.l.b16 %v2793
        %v3193 = vunpack.c.l.b16 %v2794
        %v3194 = vunpack.c.l.b16 %v2795
        %v3195 = vunpack.c.l.b16 %v2796
        %v3196 = vunpack.c.l.b16 %v2797
        %v3197 = vunpack.c.l.b16 %v2798
        %v3198 = vunpack.c.l.b16 %v2799
        %v3199 = vunpack.c.l.b16 %v2800
        %v3200 = vunpack.c.l.b16 %v2801
        %v3201 = vunpack.c.l.b16 %v2802
        %v3202 = vunpack.c.l.b16 %v2803
        %v3203 = vunpack.c.l.b16 %v2804
        %v3204 = vunpack.c.l.b16 %v2805
        %v3205 = vunpack.c.l.b16 %v2806
        %v3206 = vunpack.c.l.b16 %v2807
        %v3207 = vunpack.c.l.b16 %v2808
        %v3208 = vunpack.c.l.b16 %v2809
        %v3209 = vunpack.c.l.b16 %v2810
        %v3210 = vunpack.c.l.b16 %v2811
        %v3211 = vunpack.c.l.b16 %v2812
        %v3212 = vunpack.c.l.b16 %v2813
        %v3213 = vunpack.c.l.b16 %v2814
        %v3214 = vunpack.c.l.b16 %v2815
        %v3215 = vunpack.c.l.b16 %v2816
        %v3216 = vunpack.c.l.b16 %v2817
        %v3217 = vunpack.c.l.b16 %v2818
        %v3218 = vunpack.c.l.b16 %v2819
        %v3219 = vunpack.c.l.b16 %v2820
        %v3220 = vunpack.c.l.b16 %v2821
        %v3221 = vunpack.c.l.b16 %v2822
        %v3222 = vunpack.c.l.b16 %v2823
        %v3223 = vunpack.c.l.b16 %v2824
        %v3224 = vunpack.c.l.b16 %v2825
        %v3225 = vunpack.c.l.b16 %v2826
        %v3226 = vunpack.c.l.b16 %v2827
        %v3227 = vunpack.c.l.b16 %v2828
        %v3228 = vunpack.c.l.b16 %v2829
        %v3229 = vunpack.c.l.b16 %v2830
        %v3230 = vunpack.c.l.b16 %v2831
        %v3231 = vunpack.c.l.b16 %v2832
        %v3232 = vunpack.c.l.b16 %v2833
        %v3233 = vunpack.c.l.b16 %v2834
        %v3234 = vunpack.c.l.b16 %v2835
        %v3235 = vunpack.c.l.b16 %v2836
        %v3236 = vunpack.c.l.b16 %v2837
        %v3237 = vunpack.c.l.b16 %v2838
        %v3238 = vunpack.c.l.b16 %v2839
        %v3239 = vunpack.c.l.b16 %v2840
        %v3240 = vunpack.c.l.b16 %v2841
        %v3241 = vunpack.c.l.b16 %v2842
        %v3242 = vunpack.c.l.b16 %v2843
        %v3243 = vunpack.c.l.b16 %v2844
        %v3244 = vunpack.c.l.b16 %v2845
        %v3245 = vunpack.c.l.b16 %v2846
        %v3246 = vunpack.c.l.b16 %v2847
        %v3247 = vunpack.c.l.b16 %v2848
        %v3248 = vunpack.c.l.b16 %v2849
        %v3249 = vunpack.c.l.b16 %v2850
        %v3250 = vunpack.c.l.b16 %v2851
        %v3251 = vunpack.c.l.b16 %v2852
        %v3252 = vunpack.c.l.b16 %v2853
        %v3253 = vunpack.c.l.b16 %v2854
        %v3254 = vunpack.c.l.b16 %v2855
        %v3255 = vunpack.c.l.b16 %v2856
        %v3256 = vunpack.c.l.b16 %v2857
        %v3257 = vunpack.c.l.b16 %v2858
        %v3258 = vunpack.c.l.b16 %v2859
        %v3259 = vunpack.c.l.b16 %v2860
        %v3260 = vunpack.c.l.b16 %v2861
        %v3261 = vunpack.c.l.b16 %v2862
        %v3262 = vunpack.c.l.b16 %v2863
        %v3263 = vunpack.c.l.b16 %v2864
        %v3264 = vunpack.c.l.b16 %v2865
        %v3265 = vunpack.c.l.b16 %v2866
        %v3266 = vunpack.c.l.b16 %v2867
        %v3267 = vunpack.c.l.b16 %v2868
        %v3268 = vunpack.c.l.b16 %v2869
        %v3269 = vunpack.c.l.b16 %v2870
        %v3270 = vunpack.c.l.b16 %v2871
        %v3271 = vunpack.c.l.b16 %v2872
        %v3272 = vunpack.c.l.b16 %v2873
        %v3273 = vunpack.c.l.b16 %v2874
        %v3274 = vunpack.c.l.b16 %v2875
        %v3275 = vunpack.c.l.b16 %v2876
        %v3276 = vunpack.c.l.b16 %v2877
        %v3277 = vunpack.c.l.b16 %v2878
        %v3278 = vunpack.c.l.b16 %v2879
        %v3279 = vunpack.c.l.b16 %v2880
        %v3280 = vunpack.c.l.b16 %v2881
        %v3281 = vunpack.c.l.b16 %v2882
        %v3282 = vunpack.c.l.b16 %v2883
        %v3283 = vunpack.c.l.b16 %v2884
        %v3284 = vpack.c.b16 %v3089, %v3088
        %v3285 = vpack.c.b16 %v3091, %v3090
        %v3286 = vpack.c.b16 %v3093, %v3092
        %v3287 = vpack.c.b16 %v3095, %v3094
        %v3288 = vpack.c.b16 %v3097, %v3096
        %v3289 = vpack.c.b16 %v3099, %v3098
        %v3290 = vpack.c.b16 %v3101, %v3100
        %v3291 = vpack.c.b16 %v3103, %v3102
        %v3292 = vpack.c.b16 %v3105, %v3104
        %v3293 = vpack.c.b16 %v3107, %v3106
        %v3294 = vpack.c.b16 %v3109, %v3108
        %v3295 = vpack.c.b16 %v3111, %v3110
        %v3296 = vpack.c.b16 %v3113, %v3112
        %v3297 = vpack.c.b16 %v3115, %v3114
        %v3298 = vpack.c.b16 %v3117, %v3116
        %v3299 = vpack.c.b16 %v3119, %v3118
        %v3300 = vpack.c.b16 %v3121, %v3120
        %v3301 = vpack.c.b16 %v3123, %v3122
        %v3302 = vpack.c.b16 %v3125, %v3124
        %v3303 = vpack.c.b16 %v3127, %v3126
        %v3304 = vpack.c.b16 %v3129, %v3128
        %v3305 = vpack.c.b16 %v3131, %v3130
        %v3306 = vpack.c.b16 %v3133, %v3132
        %v3307 = vpack.c.b16 %v3135, %v3134
        %v3308 = vpack.c.b16 %v3137, %v3136
        %v3309 = vpack.c.b16 %v3139, %v3138
        %v3310 = vpack.c.b16 %v3141, %v3140
        %v3311 = vpack.c.b16 %v3143, %v3142
        %v3312 = vpack.c.b16 %v3145, %v3144
        %v3313 = vpack.c.b16 %v3147, %v3146
        %v3314 = vpack.c.b16 %v3149, %v3148
        %v3315 = vpack.c.b16 %v3151, %v3150
        %v3316 = vpack.c.b16 %v3153, %v3152
        %v3317 = vpack.c.b16 %v3155, %v3154
        %v3318 = vpack.c.b16 %v3157, %v3156
        %v3319 = vpack.c.b16 %v3159, %v3158
        %v3320 = vpack.c.b16 %v3161, %v3160
        %v3321 = vpack.c.b16 %v3163, %v3162
        %v3322 = vpack.c.b16 %v3165, %v3164
        %v3323 = vpack.c.b16 %v3167, %v3166
        %v3324 = vpack.c.b16 %v3169, %v3168
        %v3325 = vpack.c.b16 %v3171, %v3170
        %v3326 = vpack.c.b16 %v3173, %v3172
        %v3327 = vpack.c.b16 %v3175, %v3174
        %v3328 = vpack.c.b16 %v3177, %v3176
        %v3329 = vpack.c.b16 %v3179, %v3178
        %v3330 = vpack.c.b16 %v3181, %v3180
        %v3331 = vpack.c.b16 %v3183, %v3182
        %v3332 = vpack.c.b16 %v3185, %v3184
        %v3333 = vpack.c.b16 %v3187, %v3186
        %v3334 = vpack.c.b16 %v3189, %v3188
        %v3335 = vpack.c.b16 %v3191, %v3190
        %v3336 = vpack.c.b16 %v3193, %v3192
        %v3337 = vpack.c.b16 %v3195, %v3194
        %v3338 = vpack.c.b16 %v3197, %v3196
        %v3339 = vpack.c.b16 %v3199, %v3198
        %v3340 = vpack.c.b16 %v3201, %v3200
        %v3341 = vpack.c.b16 %v3203, %v3202
        %v3342 = vpack.c.b16 %v3205, %v3204
        %v3343 = vpack.c.b16 %v3207, %v3206
        %v3344 = vpack.c.b16 %v3209, %v3208
        %v3345 = vpack.c.b16 %v3211, %v3210
        %v3346 = vpack.c.b16 %v3213, %v3212
        %v3347 = vpack.c.b16 %v3215, %v3214
        %v3348 = vpack.c.b16 %v3217, %v3216
        %v3349 = vpack.c.b16 %v3219, %v3218
        %v3350 = vpack.c.b16 %v3221, %v3220
        %v3351 = vpack.c.b16 %v3223, %v3222
        %v3352 = vpack.c.b16 %v3225, %v3224
        %v3353 = vpack.c.b16 %v3227, %v3226
        %v3354 = vpack.c.b16 %v3229, %v3228
        %v3355 = vpack.c.b16 %v3231, %v3230
        %v3356 = vpack.c.b16 %v3233, %v3232
        %v3357 = vpack.c.b16 %v3235, %v3234
        %v3358 = vpack.c.b16 %v3237, %v3236
        %v3359 = vpack.c.b16 %v3239, %v3238
        %v3360 = vpack.c.b16 %v3241, %v3240
        %v3361 = vpack.c.b16 %v3243, %v3242
        %v3362 = vpack.c.b16 %v3245, %v3244
        %v3363 = vpack.c.b16 %v3247, %v3246
        %v3364 = vpack.c.b16 %v3249, %v3248
        %v3365 = vpack.c.b16 %v3251, %v3250
        %v3366 = vpack.c.b16 %v3253, %v3252
        %v3367 = vpack.c.b16 %v3255, %v3254
        %v3368 = vpack.c.b16 %v3257, %v3256
        %v3369 = vpack.c.b16 %v3259, %v3258
        %v3370 = vpack.c.b16 %v3261, %v3260
        %v3371 = vpack.c.b16 %v3263, %v3262
        %v3372 = vpack.c.b16 %v3265, %v3264
        %v3373 = vpack.c.b16 %v3267, %v3266
        %v3374 = vpack.c.b16 %v3269, %v3268
        %v3375 = vpack.c.b16 %v3271, %v3270
        %v3376 = vpack.c.b16 %v3273, %v3272
        %v3377 = vpack.c.b16 %v3275, %v3274
        %v3378 = vpack.c.b16 %v3277, %v3276
        %v3379 = vpack.c.b16 %v3279, %v3278
        %v3380 = vpack.c.b16 %v3281, %v3280
        %v3381 = vpack.c.b16 %v3283, %v3282
        %v3481 = vsel %vm2470, %v2688, 0
        %3483 = vmatprep.subr.bf16.mxu0 0
        %3484 = vmatpush1.bf16.msra.mxu0 %v3284
        %3485 = vmatprep.subr.bf16.mxu0 0
        %3486 = vmatpush1.bf16.msra.mxu0 %v3285
        %3487 = vmatprep.subr.bf16.mxu0 0
        %3488 = vmatpush1.bf16.msra.mxu0 %v3286
        %3489 = vmatprep.subr.bf16.mxu0 0
        %3490 = vmatpush1.bf16.msra.mxu0 %v3287
        %3491 = vmatprep.subr.bf16.mxu0 0
        %3492 = vmatpush1.bf16.msra.mxu0 %v3288
        %3493 = vmatprep.subr.bf16.mxu0 0
        %3494 = vmatpush1.bf16.msra.mxu0 %v3289
        %3495 = vmatprep.subr.bf16.mxu0 0
        %3496 = vmatpush1.bf16.msra.mxu0 %v3290
        %3497 = vmatprep.subr.bf16.mxu0 0
        %3498 = vmatpush1.bf16.msra.mxu0 %v3291
        %3499 = vmatprep.subr.bf16.mxu0 0
        %3500 = vmatpush1.bf16.msra.mxu0 %v3292
        %3501 = vmatprep.subr.bf16.mxu0 0
        %3502 = vmatpush1.bf16.msra.mxu0 %v3293
        %3503 = vmatprep.subr.bf16.mxu0 0
        %3504 = vmatpush1.bf16.msra.mxu0 %v3294
        %3505 = vmatprep.subr.bf16.mxu0 0
        %3506 = vmatpush1.bf16.msra.mxu0 %v3295
        %3507 = vmatprep.subr.bf16.mxu0 0
        %3508 = vmatpush1.bf16.msra.mxu0 %v3296
        %3509 = vmatprep.subr.bf16.mxu0 0
        %3510 = vmatpush1.bf16.msra.mxu0 %v3297
        %3511 = vmatprep.subr.bf16.mxu0 0
        %3512 = vmatpush1.bf16.msra.mxu0 %v3298
        %3513 = vmatprep.subr.bf16.mxu0 0
        %3514 = vmatpush1.bf16.msra.mxu0 %v3299
        %3515 = vmatprep.mubr.bf16.mxu0 %v2677
        %3516 = vmatmul.mubr.bf16.gmra.mrb[0].mxu0 %v2676
        %v3517 = vpop.f32.mrb[0].mxu0
        %v3518 = vadd.f32 %v2890, %v3517
        %v3519 = vpop.f32.mrb[0].mxu0
        %v3520 = vpop.f32.mrb[0].mxu0
        %v3521 = vpop.f32.mrb[0].mxu0
        %3522 = vdwg.mxu0
        %3523 = vmatprep.subr.bf16.mxu0 0
        %3524 = vmatpush1.bf16.msra.mxu0 %v3300
        %3525 = vmatprep.subr.bf16.mxu0 0
        %3526 = vmatpush1.bf16.msra.mxu0 %v3301
        %3527 = vmatprep.subr.bf16.mxu0 0
        %3528 = vmatpush1.bf16.msra.mxu0 %v3302
        %3529 = vmatprep.subr.bf16.mxu0 0
        %3530 = vmatpush1.bf16.msra.mxu0 %v3303
        %3531 = vmatprep.subr.bf16.mxu0 0
        %3532 = vmatpush1.bf16.msra.mxu0 %v3304
        %3533 = vmatprep.subr.bf16.mxu0 0
        %3534 = vmatpush1.bf16.msra.mxu0 %v3305
        %3535 = vmatprep.subr.bf16.mxu0 0
        %3536 = vmatpush1.bf16.msra.mxu0 %v3306
        %3537 = vmatprep.subr.bf16.mxu0 0
        %3538 = vmatpush1.bf16.msra.mxu0 %v3307
        %3539 = vmatprep.subr.bf16.mxu0 0
        %3540 = vmatpush1.bf16.msra.mxu0 %v3308
        %3541 = vmatprep.subr.bf16.mxu0 0
        %3542 = vmatpush1.bf16.msra.mxu0 %v3309
        %3543 = vmatprep.subr.bf16.mxu0 0
        %3544 = vmatpush1.bf16.msra.mxu0 %v3310
        %3545 = vmatprep.subr.bf16.mxu0 0
        %3546 = vmatpush1.bf16.msra.mxu0 %v3311
        %3547 = vmatprep.subr.bf16.mxu0 0
        %3548 = vmatpush1.bf16.msra.mxu0 %v3312
        %3549 = vmatprep.subr.bf16.mxu0 0
        %3550 = vmatpush1.bf16.msra.mxu0 %v3313
        %3551 = vmatprep.subr.bf16.mxu0 0
        %3552 = vmatpush1.bf16.msra.mxu0 %v3314
        %3553 = vmatprep.subr.bf16.mxu0 0
        %3554 = vmatpush1.bf16.msra.mxu0 %v3315
        %3555 = vmatprep.mubr.bf16.mxu0 %v2679
        %3556 = vmatmul.mubr.bf16.gmra.mrb[0].mxu0 %v2678
        %v3557 = vpop.f32.mrb[0].mxu0
        %v3558 = vadd.f32 %v3518, %v3557
        %v3559 = vpop.f32.mrb[0].mxu0
        %v3560 = vpop.f32.mrb[0].mxu0
        %v3561 = vpop.f32.mrb[0].mxu0
        %3562 = vdwg.mxu0
        %3563 = vmatprep.subr.bf16.mxu0 0
        %3564 = vmatpush1.bf16.msra.mxu0 %v3316
        %3565 = vmatprep.subr.bf16.mxu0 0
        %3566 = vmatpush1.bf16.msra.mxu0 %v3317
        %3567 = vmatprep.subr.bf16.mxu0 0
        %3568 = vmatpush1.bf16.msra.mxu0 %v3318
        %3569 = vmatprep.subr.bf16.mxu0 0
        %3570 = vmatpush1.bf16.msra.mxu0 %v3319
        %3571 = vmatprep.subr.bf16.mxu0 0
        %3572 = vmatpush1.bf16.msra.mxu0 %v3320
        %3573 = vmatprep.subr.bf16.mxu0 0
        %3574 = vmatpush1.bf16.msra.mxu0 %v3321
        %3575 = vmatprep.subr.bf16.mxu0 0
        %3576 = vmatpush1.bf16.msra.mxu0 %v3322
        %3577 = vmatprep.subr.bf16.mxu0 0
        %3578 = vmatpush1.bf16.msra.mxu0 %v3323
        %3579 = vmatprep.subr.bf16.mxu0 0
        %3580 = vmatpush1.bf16.msra.mxu0 %v3324
        %3581 = vmatprep.subr.bf16.mxu0 0
        %3582 = vmatpush1.bf16.msra.mxu0 %v3325
        %3583 = vmatprep.subr.bf16.mxu0 0
        %3584 = vmatpush1.bf16.msra.mxu0 %v3326
        %3585 = vmatprep.subr.bf16.mxu0 0
        %3586 = vmatpush1.bf16.msra.mxu0 %v3327
        %3587 = vmatprep.subr.bf16.mxu0 0
        %3588 = vmatpush1.bf16.msra.mxu0 %v3328
        %3589 = vmatprep.subr.bf16.mxu0 0
        %3590 = vmatpush1.bf16.msra.mxu0 %v3329
        %3591 = vmatprep.subr.bf16.mxu0 0
        %3592 = vmatpush1.bf16.msra.mxu0 %v3330
        %3593 = vmatprep.subr.bf16.mxu0 0
        %3594 = vmatpush1.bf16.msra.mxu0 %v3331
        %3595 = vmatprep.mubr.bf16.mxu0 %v2681
        %3596 = vmatmul.mubr.bf16.gmra.mrb[0].mxu0 %v2680
        %v3597 = vpop.f32.mrb[0].mxu0
        %v3598 = vadd.f32 %v3558, %v3597
        %v3599 = vpop.f32.mrb[0].mxu0
        %v3600 = vpop.f32.mrb[0].mxu0
        %v3601 = vpop.f32.mrb[0].mxu0
        %3602 = vdwg.mxu0
        %3603 = vmatprep.subr.bf16.mxu0 0
        %3604 = vmatpush1.bf16.msra.mxu0 %v3332
        %3605 = vmatprep.subr.bf16.mxu0 0
        %3606 = vmatpush1.bf16.msra.mxu0 %v3333
        %3607 = vmatprep.subr.bf16.mxu0 0
        %3608 = vmatpush1.bf16.msra.mxu0 %v3334
        %3609 = vmatprep.subr.bf16.mxu0 0
        %3610 = vmatpush1.bf16.msra.mxu0 %v3335
        %3611 = vmatprep.subr.bf16.mxu0 0
        %3612 = vmatpush1.bf16.msra.mxu0 %v3336
        %3613 = vmatprep.subr.bf16.mxu0 0
        %3614 = vmatpush1.bf16.msra.mxu0 %v3337
        %3615 = vmatprep.subr.bf16.mxu0 0
        %3616 = vmatpush1.bf16.msra.mxu0 %v3338
        %3617 = vmatprep.subr.bf16.mxu0 0
        %3618 = vmatpush1.bf16.msra.mxu0 %v3339
        %3619 = vmatprep.subr.bf16.mxu0 0
        %3620 = vmatpush1.bf16.msra.mxu0 %v3340
        %3621 = vmatprep.subr.bf16.mxu0 0
        %3622 = vmatpush1.bf16.msra.mxu0 %v3341
        %3623 = vmatprep.subr.bf16.mxu0 0
        %3624 = vmatpush1.bf16.msra.mxu0 %v3342
        %3625 = vmatprep.subr.bf16.mxu0 0
        %3626 = vmatpush1.bf16.msra.mxu0 %v3343
        %3627 = vmatprep.subr.bf16.mxu0 0
        %3628 = vmatpush1.bf16.msra.mxu0 %v3344
        %3629 = vmatprep.subr.bf16.mxu0 0
        %3630 = vmatpush1.bf16.msra.mxu0 %v3345
        %3631 = vmatprep.subr.bf16.mxu0 0
        %3632 = vmatpush1.bf16.msra.mxu0 %v3346
        %3633 = vmatprep.subr.bf16.mxu0 0
        %3634 = vmatpush1.bf16.msra.mxu0 %v3347
        %3635 = vmatprep.mubr.bf16.mxu0 %v2683
        %3636 = vmatmul.mubr.bf16.gmra.mrb[0].mxu0 %v2682
        %v3637 = vpop.f32.mrb[0].mxu0
        %v3638 = vadd.f32 %v3598, %v3637
        %v3639 = vpop.f32.mrb[0].mxu0
        %v3640 = vpop.f32.mrb[0].mxu0
        %v3641 = vpop.f32.mrb[0].mxu0
        %3642 = vdwg.mxu0
        %3643 = vmatprep.subr.bf16.mxu0 0
        %3644 = vmatpush1.bf16.msra.mxu0 %v3348
        %3645 = vmatprep.subr.bf16.mxu0 0
        %3646 = vmatpush1.bf16.msra.mxu0 %v3349
        %3647 = vmatprep.subr.bf16.mxu0 0
        %3648 = vmatpush1.bf16.msra.mxu0 %v3350
        %3649 = vmatprep.subr.bf16.mxu0 0
        %3650 = vmatpush1.bf16.msra.mxu0 %v3351
        %3651 = vmatprep.subr.bf16.mxu0 0
        %3652 = vmatpush1.bf16.msra.mxu0 %v3352
        %3653 = vmatprep.subr.bf16.mxu0 0
        %3654 = vmatpush1.bf16.msra.mxu0 %v3353
        %3655 = vmatprep.subr.bf16.mxu0 0
        %3656 = vmatpush1.bf16.msra.mxu0 %v3354
        %3657 = vmatprep.subr.bf16.mxu0 0
        %3658 = vmatpush1.bf16.msra.mxu0 %v3355
        %3659 = vmatprep.subr.bf16.mxu0 0
        %3660 = vmatpush1.bf16.msra.mxu0 %v3356
        %3661 = vmatprep.subr.bf16.mxu0 0
        %3662 = vmatpush1.bf16.msra.mxu0 %v3357
        %3663 = vmatprep.subr.bf16.mxu0 0
        %3664 = vmatpush1.bf16.msra.mxu0 %v3358
        %3665 = vmatprep.subr.bf16.mxu0 0
        %3666 = vmatpush1.bf16.msra.mxu0 %v3359
        %3667 = vmatprep.subr.bf16.mxu0 0
        %3668 = vmatpush1.bf16.msra.mxu0 %v3360
        %3669 = vmatprep.subr.bf16.mxu0 0
        %3670 = vmatpush1.bf16.msra.mxu0 %v3361
        %3671 = vmatprep.subr.bf16.mxu0 0
        %3672 = vmatpush1.bf16.msra.mxu0 %v3362
        %3673 = vmatprep.subr.bf16.mxu0 0
        %3674 = vmatpush1.bf16.msra.mxu0 %v3363
        %3675 = vmatprep.mubr.bf16.mxu0 %v2685
        %3676 = vmatmul.mubr.bf16.gmra.mrb[0].mxu0 %v2684
        %v3677 = vpop.f32.mrb[0].mxu0
        %v3678 = vadd.f32 %v3638, %v3677
        %v3679 = vpop.f32.mrb[0].mxu0
        %v3680 = vpop.f32.mrb[0].mxu0
        %v3681 = vpop.f32.mrb[0].mxu0
        %3682 = vdwg.mxu0
        %3683 = vmatprep.subr.bf16.mxu0 0
        %3684 = vmatpush1.bf16.msra.mxu0 %v3364
        %3685 = vmatprep.subr.bf16.mxu0 0
        %3686 = vmatpush1.bf16.msra.mxu0 %v3365
        %3687 = vmatprep.subr.bf16.mxu0 0
        %3688 = vmatpush1.bf16.msra.mxu0 %v3366
        %3689 = vmatprep.subr.bf16.mxu0 0
        %3690 = vmatpush1.bf16.msra.mxu0 %v3367
        %3691 = vmatprep.subr.bf16.mxu0 0
        %3692 = vmatpush1.bf16.msra.mxu0 %v3368
        %3693 = vmatprep.subr.bf16.mxu0 0
        %3694 = vmatpush1.bf16.msra.mxu0 %v3369
        %3695 = vmatprep.subr.bf16.mxu0 0
        %3696 = vmatpush1.bf16.msra.mxu0 %v3370
        %3697 = vmatprep.subr.bf16.mxu0 0
        %3698 = vmatpush1.bf16.msra.mxu0 %v3371
        %3699 = vmatprep.subr.bf16.mxu0 0
        %3700 = vmatpush1.bf16.msra.mxu0 %v3372
        %3701 = vmatprep.subr.bf16.mxu0 0
        %3702 = vmatpush1.bf16.msra.mxu0 %v3373
        %3703 = vmatprep.subr.bf16.mxu0 0
        %3704 = vmatpush1.bf16.msra.mxu0 %v3374
        %3705 = vmatprep.subr.bf16.mxu0 0
        %3706 = vmatpush1.bf16.msra.mxu0 %v3375
        %3707 = vmatprep.subr.bf16.mxu0 0
        %3708 = vmatpush1.bf16.msra.mxu0 %v3376
        %3709 = vmatprep.subr.bf16.mxu0 0
        %3710 = vmatpush1.bf16.msra.mxu0 %v3377
        %3711 = vmatprep.subr.bf16.mxu0 0
        %3712 = vmatpush1.bf16.msra.mxu0 %v3378
        %3713 = vmatprep.subr.bf16.mxu0 0
        %3714 = vmatpush1.bf16.msra.mxu0 %v3379
        %3715 = vmatprep.mubr.bf16.mxu0 %v2687
        %3716 = vmatmul.mubr.bf16.gmra.mrb[0].mxu0 %v2686
        %v3717 = vpop.f32.mrb[0].mxu0
        %v3718 = vadd.f32 %v3678, %v3717
        %v3719 = vpop.f32.mrb[0].mxu0
        %v3720 = vpop.f32.mrb[0].mxu0
        %v3721 = vpop.f32.mrb[0].mxu0
        %3722 = vdwg.mxu0
        %3723 = vmatprep.subr.bf16.mxu0 0
        %3724 = vmatpush1.bf16.msra.mxu0 %v3380
        %3725 = vmatprep.subr.bf16.mxu0 0
        %3726 = vmatpush1.bf16.msra.mxu0 %v3381
        %3727 = vmatprep.subr.bf16.mxu0 0
        %3728 = vmatpush1.bf16.msra.mxu0 0
        %3729 = vmatprep.subr.bf16.mxu0 0
        %3730 = vmatpush1.bf16.msra.mxu0 0
        %3731 = vmatprep.subr.bf16.mxu0 0
        %3732 = vmatpush1.bf16.msra.mxu0 0
        %3733 = vmatprep.subr.bf16.mxu0 0
        %3734 = vmatpush1.bf16.msra.mxu0 0
        %3735 = vmatprep.subr.bf16.mxu0 0
        %3736 = vmatpush1.bf16.msra.mxu0 0
        %3737 = vmatprep.subr.bf16.mxu0 0
        %3738 = vmatpush1.bf16.msra.mxu0 0
        %3739 = vmatprep.subr.bf16.mxu0 0
        %3740 = vmatpush1.bf16.msra.mxu0 0
        %3741 = vmatprep.subr.bf16.mxu0 0
        %3742 = vmatpush1.bf16.msra.mxu0 0
        %3743 = vmatprep.subr.bf16.mxu0 0
        %3744 = vmatpush1.bf16.msra.mxu0 0
        %3745 = vmatprep.subr.bf16.mxu0 0
        %3746 = vmatpush1.bf16.msra.mxu0 0
        %3747 = vmatprep.subr.bf16.mxu0 0
        %3748 = vmatpush1.bf16.msra.mxu0 0
        %3749 = vmatprep.subr.bf16.mxu0 0
        %3750 = vmatpush1.bf16.msra.mxu0 0
        %3751 = vmatprep.subr.bf16.mxu0 0
        %3752 = vmatpush1.bf16.msra.mxu0 0
        %3753 = vmatprep.subr.bf16.mxu0 0
        %3754 = vmatpush1.bf16.msra.mxu0 0
        %3755 = vmatprep.mubr.bf16.mxu0 0
        %3756 = vmatmul.mubr.bf16.gmra.mrb[0].mxu0 %v3481
        %v3757 = vpop.f32.mrb[0].mxu0
        %v3758 = vadd.f32 %v3718, %v3757
        %v3759 = vpop.f32.mrb[0].mxu0
        %v3760 = vpop.f32.mrb[0].mxu0
        %v3761 = vpop.f32.mrb[0].mxu0
        %3762 = vdwg.mxu0
        %v3763 = vmax.f32 %v3758, 0.0
        %v3764 = vld [vmem:[%s8] sm:$0xff]
        %v3765 = vld [vmem:[%s8 + $0x8] sm:$0xff]
        %v3766 = vld [vmem:[%s8 + $0x10] sm:$0xff]
        %v3767 = vld [vmem:[%s8 + $0x18] sm:$0xff]
        %v3768 = vld [vmem:[%s9] sm:$0x1]
        %v3770 = vlaneseq
        %v3771 = vshrl.u32 %v3770, 7
        %v3772 = vsub.s32 0, %v3771
        %v3773 = vrot.slane %v3768, %v3772
        %v3776 = vsel %vm2470, %v3763, 0
        %3778 = vmatprep.subr.mxu0 0.0
        %3779 = vmatpush1.msra.mxu0 %v3764
        %3780 = vmatprep.subr.mxu0 0.0
        %3781 = vmatpush1.msra.mxu0 %v3765
        %3782 = vmatprep.subr.mxu0 0.0
        %3783 = vmatpush1.msra.mxu0 %v3766
        %3784 = vmatprep.subr.mxu0 0.0
        %3785 = vmatpush1.msra.mxu0 %v3767
        %3786 = vmatprep.subr.mxu0 0.0
        %3787 = vmatpush1.msra.mxu0 0.0
        %3788 = vmatprep.subr.mxu0 0.0
        %3789 = vmatpush1.msra.mxu0 0.0
        %3790 = vmatprep.subr.mxu0 0.0
        %3791 = vmatpush1.msra.mxu0 0.0
        %3792 = vmatprep.subr.mxu0 0.0
        %3793 = vmatpush1.msra.mxu0 0.0
        %3794 = vmatprep.subr.mxu0 0.0
        %3795 = vmatpush1.msra.mxu0 0.0
        %3796 = vmatprep.subr.mxu0 0.0
        %3797 = vmatpush1.msra.mxu0 0.0
        %3798 = vmatprep.subr.mxu0 0.0
        %3799 = vmatpush1.msra.mxu0 0.0
        %3800 = vmatprep.subr.mxu0 0.0
        %3801 = vmatpush1.msra.mxu0 0.0
        %3802 = vmatprep.subr.mxu0 0.0
        %3803 = vmatpush1.msra.mxu0 0.0
        %3804 = vmatprep.subr.mxu0 0.0
        %3805 = vmatpush1.msra.mxu0 0.0
        %3806 = vmatprep.subr.mxu0 0.0
        %3807 = vmatpush1.msra.mxu0 0.0
        %3808 = vmatprep.subr.mxu0 0.0
        %3809 = vmatpush1.msra.mxu0 0.0
        %3810 = vmatprep.subr.mxu0 0.0
        %3811 = vmatpush1.msra.mxu0 0.0
        %3812 = vmatprep.subr.mxu0 0.0
        %3813 = vmatpush1.msra.mxu0 0.0
        %3814 = vmatprep.subr.mxu0 0.0
        %3815 = vmatpush1.msra.mxu0 0.0
        %3816 = vmatprep.subr.mxu0 0.0
        %3817 = vmatpush1.msra.mxu0 0.0
        %3818 = vmatprep.subr.mxu0 0.0
        %3819 = vmatpush1.msra.mxu0 0.0
        %3820 = vmatprep.subr.mxu0 0.0
        %3821 = vmatpush1.msra.mxu0 0.0
        %3822 = vmatprep.subr.mxu0 0.0
        %3823 = vmatpush1.msra.mxu0 0.0
        %3824 = vmatprep.subr.mxu0 0.0
        %3825 = vmatpush1.msra.mxu0 0.0
        %3826 = vmatprep.subr.mxu0 0.0
        %3827 = vmatpush1.msra.mxu0 0.0
        %3828 = vmatprep.subr.mxu0 0.0
        %3829 = vmatpush1.msra.mxu0 0.0
        %3830 = vmatprep.subr.mxu0 0.0
        %3831 = vmatpush1.msra.mxu0 0.0
        %3832 = vmatprep.subr.mxu0 0.0
        %3833 = vmatpush1.msra.mxu0 0.0
        %3834 = vmatprep.subr.mxu0 0.0
        %3835 = vmatpush1.msra.mxu0 0.0
        %3836 = vmatprep.subr.mxu0 0.0
        %3837 = vmatpush1.msra.mxu0 0.0
        %3838 = vmatprep.subr.mxu0 0.0
        %3839 = vmatpush1.msra.mxu0 0.0
        %3840 = vmatprep.subr.mxu0 0.0
        %3841 = vmatpush1.msra.mxu0 0.0
        %3842 = vmatprep.mubr.f32.mxu0 0.0
        %3843 = vmatmul.mubr.f32.gmra.mrb[0].mxu0 %v3776
        %v3844 = vpop.f32.mrb[0].mxu0
        %v3845 = vadd.f32 %v3773, %v3844
        %v3846 = vpop.f32.mrb[0].mxu0
        %3847 = vdwg.mxu0
        %vm3848 = vcmask 73728
        %3849 = vst.msk [vmem:[%s351] sm:$0x1] %vm3848, %v3845
        %s3850 = sand.u32 %s247, 1
        %s3851 = scalar_lea.sflag [#allocation8], %s3850
        %s3852 = sand.u32 %s247, 1
        %s3853 = scalar_lea.vmem [#allocation7], %s3852
        // Predicated region
        $region61: #{cnn_forward.1} parent=59 // pred_check
          %p3854 = pneg %p257
        $region62: #{cnn_forward.1} parent=59 // pred_check_branch
          %3856 = sbr.rel (%p3854) target = $region64
        $region63: #{cnn_forward.1} parent=59 // pred_region
          %s3858 = ssub.s32 16, 16
          %3859 = vsyncadd %s3851, %s3858
          %s3860 = smul.addr %s24, 16
          %s3861 = scalar_lea.hbm %s10, %s3860
          %s3863 = sshll.u32 %s3853, 4
          %s3864 = int_to_ptr.vmem [resolvable:$true] %s3863
          %3866 = dma.vmem_to_hbm [thread:$0]  %s3864, 16, %s3861, %s3851
        $region64: #{cnn_forward.1} parent=59 // pred_fallthru
          _
      $region60: #{cnn_forward.1} parent=5 // pred_fallthru
        _
      %p3867 = scmp.le.s32.totalorder 2, %s19
      // Predicated region
      $region65: #{cnn_forward.1} parent=5 // pred_check
        %p3868 = pneg %p3867
      $region66: #{cnn_forward.1} parent=5 // pred_check_branch
        %3870 = sbr.rel (%p3868) target = $region68
      $region67: #{cnn_forward.1} parent=5 // pred_region
        %s3871 = ssub.s32 %s19, 2
        // Predicated region
        $region69: #{cnn_forward.1} parent=67 // pred_check
          %p3872 = pneg %p263
        $region70: #{cnn_forward.1} parent=67 // pred_check_branch
          %3874 = sbr.rel (%p3872) target = $region72
        $region71: #{cnn_forward.1} parent=67 // pred_region
          %s3875 = sand.u32 %s248, 1
          %s3876 = scalar_lea.sflag [#allocation8], %s3875
          %s3877 = sand.u32 %s248, 1
          %s3878 = scalar_lea.vmem [#allocation7], %s3877
          %3879 = dma.done %s3876, 16
        $region72: #{cnn_forward.1} parent=67 // pred_fallthru
          _
      $region68: #{cnn_forward.1} parent=5 // pred_fallthru
        _
    $region6: #{cnn_forward.1} parent=1 // loop_footer
      %s23 = sadd.s32 1, %s19
    $region7: #{cnn_forward.1} parent=1 // loop_footer_branch
      %18 = sbr.rel target = $region3
    $region8: #{cnn_forward.1} parent=1 // loop_exit
      _
    %3880 = vsyncpa [#allocation8], 1
    %s3881 = scalar_lea.sflag [#allocation8], 1
    %3882 = vsyncpa %s3881, 1

</llo_original>
